<compile_context>
chip_gen: v7x
topology: tpu7x:2x2x1
jax: 0.10.0
libtpu: 0.0.40
codegen_flags: <defaults>
</compile_context>

<pallas_src>
import functools

import jax
import jax.numpy as jnp
from jax.experimental import pallas as pl
from jax.experimental.pallas import tpu as pltpu

# ---- module hyper-parameters (match the PyTorch globals) ----
N_EMBD = 384
N_HEAD = 6
HEAD_SIZE = N_EMBD // N_HEAD   # 64
BLOCK_SIZE = 256               # max context length


def _mha_kernel(x_ref, wqkv_ref, wo_ref, bo_ref, o_ref, *, bb):
    """One batch-block per grid step. All operands live in VMEM."""
    T = x_ref.shape[1]
    C = x_ref.shape[2]
    hs = HEAD_SIZE
    rows = bb * T

    # ---- fused QKV projection on the (bb*T, C) row slab (bf16 in, f32 acc) ----
    # q columns are already pre-scaled by C**-0.5 (folded into wqkv on the host).
    xb = x_ref[...].reshape(rows, C).astype(jnp.bfloat16)
    qkv = jnp.dot(xb, wqkv_ref[...],
                  preferred_element_type=jnp.float32).astype(jnp.bfloat16)

    # ---- causal mask, built once and shared by all heads ----
    row_i = jax.lax.broadcasted_iota(jnp.int32, (T, T), 0)
    col_i = jax.lax.broadcasted_iota(jnp.int32, (T, T), 1)
    causal = (row_i >= col_i)[None]                       # (1, T, T), broadcast over bb

    # ---- per-head causal attention (bb batched inside each head) ----
    head_outs = []
    for h in range(N_HEAD):
        q_h = qkv[:, h * hs:(h + 1) * hs].reshape(bb, T, hs)                # (bb,T,hs)
        k_h = qkv[:, C + h * hs:C + (h + 1) * hs].reshape(bb, T, hs)
        v_h = qkv[:, 2 * C + h * hs:2 * C + (h + 1) * hs].reshape(bb, T, hs)
        kt_h = jnp.transpose(k_h, (0, 2, 1))                                # (bb,hs,T)

        s = jnp.einsum("btd,bds->bts", q_h, kt_h,
                       preferred_element_type=jnp.float32)                  # (bb,T,T) f32
        s = jnp.where(causal, s, jnp.float32(-1e30))                        # finite mask
        m = jnp.max(s, axis=-1, keepdims=True)
        s = jnp.exp(s - m)                                                  # overwrite s
        l = jnp.sum(s, axis=-1, keepdims=True)
        p = (s * pl.reciprocal(l, approx=True)).astype(jnp.bfloat16)        # EUP recip

        o_h = jnp.einsum("bts,bsd->btd", p, v_h,
                         preferred_element_type=jnp.float32)                # (bb,T,hs)
        head_outs.append(o_h.reshape(rows, hs).astype(jnp.bfloat16))

    # ---- one K=384 output projection on the re-concatenated heads ----
    oh = jnp.concatenate(head_outs, axis=-1)                                # (rows, C) bf16
    out = jnp.dot(oh, wo_ref[...], preferred_element_type=jnp.float32)
    out = out + bo_ref[...].astype(jnp.float32)                             # (1,C) bcast
    o_ref[...] = out.reshape(bb, T, C).astype(o_ref.dtype)


def _vmem_capacity_bytes():
    """Per-core VMEM capacity, with a conservative (v7x-sized) fallback."""
    try:
        cap = int(pltpu.get_tpu_info().vmem_capacity_bytes)
        if cap > 0:
            return cap
    except Exception:
        pass
    return 64 * 1024 * 1024


def _pick_batch_block(B, T, rows_cap):
    """Batch-block size: as many rows per step as the VMEM budget allows,
    but keep >= 2 grid steps when possible (megacore sharding + pipelining)."""
    bb = max(1, min(B, rows_cap // max(T, 1)))
    if B >= 2 and pl.cdiv(B, bb) < 2:
        bb = pl.cdiv(B, 2)
    return bb


def multi_head_attention(x, params):
    """x: (B, T, C) float32. params: dict from init_params()."""
    B, T, C = x.shape
    assert C == N_EMBD and T <= BLOCK_SIZE

    vmem_cap = _vmem_capacity_bytes()
    big_vmem = vmem_cap >= (96 << 20)            # v5e/v6e (128 MiB) vs v7x (64 MiB)
    rows_cap = 2048 if big_vmem else 1024
    vmem_limit = min(3 * vmem_cap // 4, 96 << 20)

    # Pad T to a sublane multiple and B to a multiple of the batch block.
    # Padded key positions fall above the causal diagonal of every real query
    # row, so they are masked out; padded query/batch rows are sliced off.
    Tp = max(8, ((T + 7) // 8) * 8)
    bb = _pick_batch_block(B, Tp, rows_cap)
    Bp = pl.cdiv(B, bb) * bb
    if (Bp, Tp) != (B, T):
        x = jnp.pad(x, ((0, Bp - B), (0, Tp - T), (0, 0)))

    grid = (Bp // bb,)

    # Host-side weight prep: fold the C**-0.5 scale into Wq, fuse Q|K|V along
    # columns (head-major within each), bf16 for the MXU path.
    scale = float(C) ** -0.5
    wqkv = jnp.concatenate(
        [params["wq"] * scale, params["wk"], params["wv"]], axis=1
    ).astype(jnp.bfloat16)
    wo = params["wo"].astype(jnp.bfloat16)
    bo = params["bo"].astype(jnp.float32)

    kernel = functools.partial(_mha_kernel, bb=bb)

    out = pl.pallas_call(
        kernel,
        out_shape=jax.ShapeDtypeStruct((Bp, Tp, C), x.dtype),
        grid=grid,
        in_specs=[
            pl.BlockSpec((bb, Tp, C), lambda i: (i, 0, 0)),      # x
            pl.BlockSpec((C, 3 * C), lambda i: (0, 0)),          # Wq|Wk|Wv fused
            pl.BlockSpec((C, C), lambda i: (0, 0)),              # Wo
            pl.BlockSpec((1, C), lambda i: (0, 0)),              # bo
        ],
        out_specs=pl.BlockSpec((bb, Tp, C), lambda i: (i, 0, 0)),
        compiler_params=pltpu.CompilerParams(
            dimension_semantics=("parallel",),
            vmem_limit_bytes=vmem_limit,
        ),
    )(x, wqkv, wo, bo)

    if (Bp, Tp) != (B, T):
        out = out[:B, :T]
    return out


def init_params(key):
    """Deterministic synthetic parameters matching the nn.Module shapes.

    Per-head Wq/Wk/Wv (no bias) are packed head-major along columns:
    (C, n_head*head_size) = (C, C), so column slice [h*hs:(h+1)*hs] is head h.
    """
    ks = jax.random.split(key, 5)
    s = 0.02
    C = N_EMBD
    return {
        "wq": s * jax.random.normal(ks[0], (C, C), jnp.float32),
        "wk": s * jax.random.normal(ks[1], (C, C), jnp.float32),
        "wv": s * jax.random.normal(ks[2], (C, C), jnp.float32),
        "wo": s * jax.random.normal(ks[3], (C, C), jnp.float32),
        "bo": s * jax.random.normal(ks[4], (1, C), jnp.float32),
    }


def reference_mha(x, p):
    """Pure-JAX f32 reference mirroring the PyTorch forward (eval mode)."""
    B, T, C = x.shape
    q = x @ p["wq"]
    k = x @ p["wk"]
    v = x @ p["wv"]
    qh = q.reshape(B, T, N_HEAD, HEAD_SIZE).transpose(0, 2, 1, 3)
    kh = k.reshape(B, T, N_HEAD, HEAD_SIZE).transpose(0, 2, 1, 3)
    vh = v.reshape(B, T, N_HEAD, HEAD_SIZE).transpose(0, 2, 1, 3)
    wei = jnp.einsum("bhqd,bhkd->bhqk", qh, kh) * (C ** -0.5)
    mask = jnp.tril(jnp.ones((T, T), bool))
    wei = jnp.where(mask, wei, -jnp.inf)
    wei = jax.nn.softmax(wei, axis=-1)
    o = jnp.einsum("bhqk,bhkd->bhqd", wei, vh).transpose(0, 2, 1, 3).reshape(B, T, C)
    return o @ p["wo"] + p["bo"][0]


if __name__ == "__main__":
    key = jax.random.PRNGKey(0)
    kx, kp = jax.random.split(key)

    B, T = 2, 64                       # small shapes; T <= block_size (256)
    x = jax.random.normal(kx, (B, T, N_EMBD), jnp.float32)
    params = init_params(kp)

    out = jax.block_until_ready(multi_head_attention(x, params))
    ref = jax.block_until_ready(reference_mha(x, params))

    assert out.shape == (B, T, N_EMBD)
    max_err = float(jnp.max(jnp.abs(out - ref)))
    assert jnp.allclose(out, ref, atol=3e-2, rtol=3e-2), (
        f"mismatch vs pure-JAX reference, max abs err = {max_err}")

    print("KERNEL_OK")
</pallas_src>

<mosaic_0001>
module attributes {stable_mosaic.version = 11 : i64} {
  func.func @_mha_kernel(%arg0: i32, %arg1: memref<1x64x384xf32, #tpu.memory_space<vmem>>, %arg2: memref<384x1152xbf16, #tpu.memory_space<vmem>>, %arg3: memref<384x384xbf16, #tpu.memory_space<vmem>>, %arg4: memref<1x384xf32, #tpu.memory_space<vmem>>, %arg5: memref<1x64x384xf32, #tpu.memory_space<vmem>>) attributes {dimension_semantics = [#tpu.dimension_semantics<parallel>], iteration_bounds = array<i64: 2>, scalar_prefetch = 0 : i64, scratch_operands = 0 : i64, tpu.core_type = #tpu.core_type<tc>, window_params = [{transform_indices = @transform_0, window_bounds = array<i64: 1, 64, 384>}, {pipeline_mode = #tpu.pipeline_mode<synchronous>, transform_indices = @transform_1, window_bounds = array<i64: 384, 1152>}, {pipeline_mode = #tpu.pipeline_mode<synchronous>, transform_indices = @transform_2, window_bounds = array<i64: 384, 384>}, {pipeline_mode = #tpu.pipeline_mode<synchronous>, transform_indices = @transform_3, window_bounds = array<i64: 1, 384>}, {transform_indices = @transform_4, window_bounds = array<i64: 1, 64, 384>}]} {
    %c0 = arith.constant 0 : index
    %c0_0 = arith.constant 0 : index
    %c0_1 = arith.constant 0 : index
    %0 = vector.load %arg1[%c0, %c0_0, %c0_1] : memref<1x64x384xf32, #tpu.memory_space<vmem>>, vector<1x64x384xf32>
    %1 = vector.shape_cast %0 : vector<1x64x384xf32> to vector<64x384xf32>
    %2 = arith.truncf %1 : vector<64x384xf32> to vector<64x384xbf16>
    %c0_2 = arith.constant 0 : index
    %c0_3 = arith.constant 0 : index
    %3 = vector.load %arg2[%c0_2, %c0_3] : memref<384x1152xbf16, #tpu.memory_space<vmem>>, vector<384x1152xbf16>
    %cst = arith.constant dense<0.000000e+00> : vector<64x1152xf32>
    %4 = tpu.matmul %2, %3, %cst {dimension_numbers = #tpu.dot_dimension_numbers<[1], [0], [0], [1], [0, 0, 1, 1], [], []>} : vector<64x384xbf16>, vector<384x1152xbf16>, vector<64x1152xf32> -> vector<64x1152xf32>
    %5 = arith.truncf %4 : vector<64x1152xf32> to vector<64x1152xbf16>
    %6 = tpu.iota {dimensions = array<i32: 0>} : vector<64x64xi32>
    %7 = tpu.iota {dimensions = array<i32: 1>} : vector<64x64xi32>
    %8 = arith.cmpi sge, %6, %7 : vector<64x64xi32>
    %9 = vector.shape_cast %8 : vector<64x64xi1> to vector<1x64x64xi1>
    %10 = vector.extract_strided_slice %5 {offsets = [0, 0], sizes = [64, 64], strides = [1, 1]} : vector<64x1152xbf16> to vector<64x64xbf16>
    %11 = vector.shape_cast %10 : vector<64x64xbf16> to vector<1x64x64xbf16>
    %12 = vector.extract_strided_slice %5 {offsets = [0, 384], sizes = [64, 64], strides = [1, 1]} : vector<64x1152xbf16> to vector<64x64xbf16>
    %13 = vector.shape_cast %12 : vector<64x64xbf16> to vector<1x64x64xbf16>
    %14 = vector.extract_strided_slice %5 {offsets = [0, 768], sizes = [64, 64], strides = [1, 1]} : vector<64x1152xbf16> to vector<64x64xbf16>
    %15 = vector.shape_cast %14 : vector<64x64xbf16> to vector<1x64x64xbf16>
    %16 = tpu.transpose %13, [0, 2, 1] : vector<1x64x64xbf16> -> vector<1x64x64xbf16>
    "tpu.trace_start"() <{level = 10 : i32, message = "btd,bds->bts"}> : () -> ()
    %cst_4 = arith.constant dense<0.000000e+00> : vector<1x64x64xf32>
    %17 = tpu.matmul %11, %16, %cst_4 {dimension_numbers = #tpu.dot_dimension_numbers<[2], [1], [1], [2], [0, 0, 0, 1, 1, 2], [0], [0]>} : vector<1x64x64xbf16>, vector<1x64x64xbf16>, vector<1x64x64xf32> -> vector<1x64x64xf32>
    %cst_5 = arith.constant -1.000000e+30 : f32
    "tpu.trace_stop"() : () -> ()
    %18 = vector.broadcast %cst_5 : f32 to vector<1x64x64xf32>
    %19 = arith.select %9, %17, %18 : vector<1x64x64xi1>, vector<1x64x64xf32>
    %cst_6 = arith.constant dense<0xFF800000> : vector<1x64xf32>
    %20 = vector.multi_reduction <maximumf>, %19, %cst_6 [2] : vector<1x64x64xf32> to vector<1x64xf32>
    %21 = vector.shape_cast %20 : vector<1x64xf32> to vector<1x64x1xf32>
    %22 = vector.broadcast %21 : vector<1x64x1xf32> to vector<1x64x64xf32>
    %23 = arith.subf %19, %22 : vector<1x64x64xf32>
    %24 = math.exp %23 : vector<1x64x64xf32>
    %cst_7 = arith.constant dense<0.000000e+00> : vector<1x64xf32>
    %25 = vector.multi_reduction <add>, %24, %cst_7 [2] : vector<1x64x64xf32> to vector<1x64xf32>
    %26 = vector.shape_cast %25 : vector<1x64xf32> to vector<1x64x1xf32>
    %27 = tpu.reciprocal %26 {approx = true} : vector<1x64x1xf32> -> vector<1x64x1xf32>
    %28 = vector.broadcast %27 : vector<1x64x1xf32> to vector<1x64x64xf32>
    %29 = arith.mulf %24, %28 : vector<1x64x64xf32>
    %30 = arith.truncf %29 : vector<1x64x64xf32> to vector<1x64x64xbf16>
    "tpu.trace_start"() <{level = 10 : i32, message = "bts,bsd->btd"}> : () -> ()
    %cst_8 = arith.constant dense<0.000000e+00> : vector<1x64x64xf32>
    %31 = tpu.matmul %30, %15, %cst_8 {dimension_numbers = #tpu.dot_dimension_numbers<[2], [1], [1], [2], [0, 0, 0, 1, 1, 2], [0], [0]>} : vector<1x64x64xbf16>, vector<1x64x64xbf16>, vector<1x64x64xf32> -> vector<1x64x64xf32>
    "tpu.trace_stop"() : () -> ()
    %32 = vector.shape_cast %31 : vector<1x64x64xf32> to vector<64x64xf32>
    %33 = arith.truncf %32 : vector<64x64xf32> to vector<64x64xbf16>
    %34 = vector.extract_strided_slice %5 {offsets = [0, 64], sizes = [64, 64], strides = [1, 1]} : vector<64x1152xbf16> to vector<64x64xbf16>
    %35 = vector.shape_cast %34 : vector<64x64xbf16> to vector<1x64x64xbf16>
    %36 = vector.extract_strided_slice %5 {offsets = [0, 448], sizes = [64, 64], strides = [1, 1]} : vector<64x1152xbf16> to vector<64x64xbf16>
    %37 = vector.shape_cast %36 : vector<64x64xbf16> to vector<1x64x64xbf16>
    %38 = vector.extract_strided_slice %5 {offsets = [0, 832], sizes = [64, 64], strides = [1, 1]} : vector<64x1152xbf16> to vector<64x64xbf16>
    %39 = vector.shape_cast %38 : vector<64x64xbf16> to vector<1x64x64xbf16>
    %40 = tpu.transpose %37, [0, 2, 1] : vector<1x64x64xbf16> -> vector<1x64x64xbf16>
    "tpu.trace_start"() <{level = 10 : i32, message = "btd,bds->bts"}> : () -> ()
    %cst_9 = arith.constant dense<0.000000e+00> : vector<1x64x64xf32>
    %41 = tpu.matmul %35, %40, %cst_9 {dimension_numbers = #tpu.dot_dimension_numbers<[2], [1], [1], [2], [0, 0, 0, 1, 1, 2], [0], [0]>} : vector<1x64x64xbf16>, vector<1x64x64xbf16>, vector<1x64x64xf32> -> vector<1x64x64xf32>
    %cst_10 = arith.constant -1.000000e+30 : f32
    "tpu.trace_stop"() : () -> ()
    %42 = vector.broadcast %cst_10 : f32 to vector<1x64x64xf32>
    %43 = arith.select %9, %41, %42 : vector<1x64x64xi1>, vector<1x64x64xf32>
    %cst_11 = arith.constant dense<0xFF800000> : vector<1x64xf32>
    %44 = vector.multi_reduction <maximumf>, %43, %cst_11 [2] : vector<1x64x64xf32> to vector<1x64xf32>
    %45 = vector.shape_cast %44 : vector<1x64xf32> to vector<1x64x1xf32>
    %46 = vector.broadcast %45 : vector<1x64x1xf32> to vector<1x64x64xf32>
    %47 = arith.subf %43, %46 : vector<1x64x64xf32>
    %48 = math.exp %47 : vector<1x64x64xf32>
    %cst_12 = arith.constant dense<0.000000e+00> : vector<1x64xf32>
    %49 = vector.multi_reduction <add>, %48, %cst_12 [2] : vector<1x64x64xf32> to vector<1x64xf32>
    %50 = vector.shape_cast %49 : vector<1x64xf32> to vector<1x64x1xf32>
    %51 = tpu.reciprocal %50 {approx = true} : vector<1x64x1xf32> -> vector<1x64x1xf32>
    %52 = vector.broadcast %51 : vector<1x64x1xf32> to vector<1x64x64xf32>
    %53 = arith.mulf %48, %52 : vector<1x64x64xf32>
    %54 = arith.truncf %53 : vector<1x64x64xf32> to vector<1x64x64xbf16>
    "tpu.trace_start"() <{level = 10 : i32, message = "bts,bsd->btd"}> : () -> ()
    %cst_13 = arith.constant dense<0.000000e+00> : vector<1x64x64xf32>
    %55 = tpu.matmul %54, %39, %cst_13 {dimension_numbers = #tpu.dot_dimension_numbers<[2], [1], [1], [2], [0, 0, 0, 1, 1, 2], [0], [0]>} : vector<1x64x64xbf16>, vector<1x64x64xbf16>, vector<1x64x64xf32> -> vector<1x64x64xf32>
    "tpu.trace_stop"() : () -> ()
    %56 = vector.shape_cast %55 : vector<1x64x64xf32> to vector<64x64xf32>
    %57 = arith.truncf %56 : vector<64x64xf32> to vector<64x64xbf16>
    %58 = vector.extract_strided_slice %5 {offsets = [0, 128], sizes = [64, 64], strides = [1, 1]} : vector<64x1152xbf16> to vector<64x64xbf16>
    %59 = vector.shape_cast %58 : vector<64x64xbf16> to vector<1x64x64xbf16>
    %60 = vector.extract_strided_slice %5 {offsets = [0, 512], sizes = [64, 64], strides = [1, 1]} : vector<64x1152xbf16> to vector<64x64xbf16>
    %61 = vector.shape_cast %60 : vector<64x64xbf16> to vector<1x64x64xbf16>
    %62 = vector.extract_strided_slice %5 {offsets = [0, 896], sizes = [64, 64], strides = [1, 1]} : vector<64x1152xbf16> to vector<64x64xbf16>
    %63 = vector.shape_cast %62 : vector<64x64xbf16> to vector<1x64x64xbf16>
    %64 = tpu.transpose %61, [0, 2, 1] : vector<1x64x64xbf16> -> vector<1x64x64xbf16>
    "tpu.trace_start"() <{level = 10 : i32, message = "btd,bds->bts"}> : () -> ()
    %cst_14 = arith.constant dense<0.000000e+00> : vector<1x64x64xf32>
    %65 = tpu.matmul %59, %64, %cst_14 {dimension_numbers = #tpu.dot_dimension_numbers<[2], [1], [1], [2], [0, 0, 0, 1, 1, 2], [0], [0]>} : vector<1x64x64xbf16>, vector<1x64x64xbf16>, vector<1x64x64xf32> -> vector<1x64x64xf32>
    %cst_15 = arith.constant -1.000000e+30 : f32
    "tpu.trace_stop"() : () -> ()
    %66 = vector.broadcast %cst_15 : f32 to vector<1x64x64xf32>
    %67 = arith.select %9, %65, %66 : vector<1x64x64xi1>, vector<1x64x64xf32>
    %cst_16 = arith.constant dense<0xFF800000> : vector<1x64xf32>
    %68 = vector.multi_reduction <maximumf>, %67, %cst_16 [2] : vector<1x64x64xf32> to vector<1x64xf32>
    %69 = vector.shape_cast %68 : vector<1x64xf32> to vector<1x64x1xf32>
    %70 = vector.broadcast %69 : vector<1x64x1xf32> to vector<1x64x64xf32>
    %71 = arith.subf %67, %70 : vector<1x64x64xf32>
    %72 = math.exp %71 : vector<1x64x64xf32>
    %cst_17 = arith.constant dense<0.000000e+00> : vector<1x64xf32>
    %73 = vector.multi_reduction <add>, %72, %cst_17 [2] : vector<1x64x64xf32> to vector<1x64xf32>
    %74 = vector.shape_cast %73 : vector<1x64xf32> to vector<1x64x1xf32>
    %75 = tpu.reciprocal %74 {approx = true} : vector<1x64x1xf32> -> vector<1x64x1xf32>
    %76 = vector.broadcast %75 : vector<1x64x1xf32> to vector<1x64x64xf32>
    %77 = arith.mulf %72, %76 : vector<1x64x64xf32>
    %78 = arith.truncf %77 : vector<1x64x64xf32> to vector<1x64x64xbf16>
    "tpu.trace_start"() <{level = 10 : i32, message = "bts,bsd->btd"}> : () -> ()
    %cst_18 = arith.constant dense<0.000000e+00> : vector<1x64x64xf32>
    %79 = tpu.matmul %78, %63, %cst_18 {dimension_numbers = #tpu.dot_dimension_numbers<[2], [1], [1], [2], [0, 0, 0, 1, 1, 2], [0], [0]>} : vector<1x64x64xbf16>, vector<1x64x64xbf16>, vector<1x64x64xf32> -> vector<1x64x64xf32>
    "tpu.trace_stop"() : () -> ()
    %80 = vector.shape_cast %79 : vector<1x64x64xf32> to vector<64x64xf32>
    %81 = arith.truncf %80 : vector<64x64xf32> to vector<64x64xbf16>
    %82 = vector.extract_strided_slice %5 {offsets = [0, 192], sizes = [64, 64], strides = [1, 1]} : vector<64x1152xbf16> to vector<64x64xbf16>
    %83 = vector.shape_cast %82 : vector<64x64xbf16> to vector<1x64x64xbf16>
    %84 = vector.extract_strided_slice %5 {offsets = [0, 576], sizes = [64, 64], strides = [1, 1]} : vector<64x1152xbf16> to vector<64x64xbf16>
    %85 = vector.shape_cast %84 : vector<64x64xbf16> to vector<1x64x64xbf16>
    %86 = vector.extract_strided_slice %5 {offsets = [0, 960], sizes = [64, 64], strides = [1, 1]} : vector<64x1152xbf16> to vector<64x64xbf16>
    %87 = vector.shape_cast %86 : vector<64x64xbf16> to vector<1x64x64xbf16>
    %88 = tpu.transpose %85, [0, 2, 1] : vector<1x64x64xbf16> -> vector<1x64x64xbf16>
    "tpu.trace_start"() <{level = 10 : i32, message = "btd,bds->bts"}> : () -> ()
    %cst_19 = arith.constant dense<0.000000e+00> : vector<1x64x64xf32>
    %89 = tpu.matmul %83, %88, %cst_19 {dimension_numbers = #tpu.dot_dimension_numbers<[2], [1], [1], [2], [0, 0, 0, 1, 1, 2], [0], [0]>} : vector<1x64x64xbf16>, vector<1x64x64xbf16>, vector<1x64x64xf32> -> vector<1x64x64xf32>
    %cst_20 = arith.constant -1.000000e+30 : f32
    "tpu.trace_stop"() : () -> ()
    %90 = vector.broadcast %cst_20 : f32 to vector<1x64x64xf32>
    %91 = arith.select %9, %89, %90 : vector<1x64x64xi1>, vector<1x64x64xf32>
    %cst_21 = arith.constant dense<0xFF800000> : vector<1x64xf32>
    %92 = vector.multi_reduction <maximumf>, %91, %cst_21 [2] : vector<1x64x64xf32> to vector<1x64xf32>
    %93 = vector.shape_cast %92 : vector<1x64xf32> to vector<1x64x1xf32>
    %94 = vector.broadcast %93 : vector<1x64x1xf32> to vector<1x64x64xf32>
    %95 = arith.subf %91, %94 : vector<1x64x64xf32>
    %96 = math.exp %95 : vector<1x64x64xf32>
    %cst_22 = arith.constant dense<0.000000e+00> : vector<1x64xf32>
    %97 = vector.multi_reduction <add>, %96, %cst_22 [2] : vector<1x64x64xf32> to vector<1x64xf32>
    %98 = vector.shape_cast %97 : vector<1x64xf32> to vector<1x64x1xf32>
    %99 = tpu.reciprocal %98 {approx = true} : vector<1x64x1xf32> -> vector<1x64x1xf32>
    %100 = vector.broadcast %99 : vector<1x64x1xf32> to vector<1x64x64xf32>
    %101 = arith.mulf %96, %100 : vector<1x64x64xf32>
    %102 = arith.truncf %101 : vector<1x64x64xf32> to vector<1x64x64xbf16>
    "tpu.trace_start"() <{level = 10 : i32, message = "bts,bsd->btd"}> : () -> ()
    %cst_23 = arith.constant dense<0.000000e+00> : vector<1x64x64xf32>
    %103 = tpu.matmul %102, %87, %cst_23 {dimension_numbers = #tpu.dot_dimension_numbers<[2], [1], [1], [2], [0, 0, 0, 1, 1, 2], [0], [0]>} : vector<1x64x64xbf16>, vector<1x64x64xbf16>, vector<1x64x64xf32> -> vector<1x64x64xf32>
    "tpu.trace_stop"() : () -> ()
    %104 = vector.shape_cast %103 : vector<1x64x64xf32> to vector<64x64xf32>
    %105 = arith.truncf %104 : vector<64x64xf32> to vector<64x64xbf16>
    %106 = vector.extract_strided_slice %5 {offsets = [0, 256], sizes = [64, 64], strides = [1, 1]} : vector<64x1152xbf16> to vector<64x64xbf16>
    %107 = vector.shape_cast %106 : vector<64x64xbf16> to vector<1x64x64xbf16>
    %108 = vector.extract_strided_slice %5 {offsets = [0, 640], sizes = [64, 64], strides = [1, 1]} : vector<64x1152xbf16> to vector<64x64xbf16>
    %109 = vector.shape_cast %108 : vector<64x64xbf16> to vector<1x64x64xbf16>
    %110 = vector.extract_strided_slice %5 {offsets = [0, 1024], sizes = [64, 64], strides = [1, 1]} : vector<64x1152xbf16> to vector<64x64xbf16>
    %111 = vector.shape_cast %110 : vector<64x64xbf16> to vector<1x64x64xbf16>
    %112 = tpu.transpose %109, [0, 2, 1] : vector<1x64x64xbf16> -> vector<1x64x64xbf16>
    "tpu.trace_start"() <{level = 10 : i32, message = "btd,bds->bts"}> : () -> ()
    %cst_24 = arith.constant dense<0.000000e+00> : vector<1x64x64xf32>
    %113 = tpu.matmul %107, %112, %cst_24 {dimension_numbers = #tpu.dot_dimension_numbers<[2], [1], [1], [2], [0, 0, 0, 1, 1, 2], [0], [0]>} : vector<1x64x64xbf16>, vector<1x64x64xbf16>, vector<1x64x64xf32> -> vector<1x64x64xf32>
    %cst_25 = arith.constant -1.000000e+30 : f32
    "tpu.trace_stop"() : () -> ()
    %114 = vector.broadcast %cst_25 : f32 to vector<1x64x64xf32>
    %115 = arith.select %9, %113, %114 : vector<1x64x64xi1>, vector<1x64x64xf32>
    %cst_26 = arith.constant dense<0xFF800000> : vector<1x64xf32>
    %116 = vector.multi_reduction <maximumf>, %115, %cst_26 [2] : vector<1x64x64xf32> to vector<1x64xf32>
    %117 = vector.shape_cast %116 : vector<1x64xf32> to vector<1x64x1xf32>
    %118 = vector.broadcast %117 : vector<1x64x1xf32> to vector<1x64x64xf32>
    %119 = arith.subf %115, %118 : vector<1x64x64xf32>
    %120 = math.exp %119 : vector<1x64x64xf32>
    %cst_27 = arith.constant dense<0.000000e+00> : vector<1x64xf32>
    %121 = vector.multi_reduction <add>, %120, %cst_27 [2] : vector<1x64x64xf32> to vector<1x64xf32>
    %122 = vector.shape_cast %121 : vector<1x64xf32> to vector<1x64x1xf32>
    %123 = tpu.reciprocal %122 {approx = true} : vector<1x64x1xf32> -> vector<1x64x1xf32>
    %124 = vector.broadcast %123 : vector<1x64x1xf32> to vector<1x64x64xf32>
    %125 = arith.mulf %120, %124 : vector<1x64x64xf32>
    %126 = arith.truncf %125 : vector<1x64x64xf32> to vector<1x64x64xbf16>
    "tpu.trace_start"() <{level = 10 : i32, message = "bts,bsd->btd"}> : () -> ()
    %cst_28 = arith.constant dense<0.000000e+00> : vector<1x64x64xf32>
    %127 = tpu.matmul %126, %111, %cst_28 {dimension_numbers = #tpu.dot_dimension_numbers<[2], [1], [1], [2], [0, 0, 0, 1, 1, 2], [0], [0]>} : vector<1x64x64xbf16>, vector<1x64x64xbf16>, vector<1x64x64xf32> -> vector<1x64x64xf32>
    "tpu.trace_stop"() : () -> ()
    %128 = vector.shape_cast %127 : vector<1x64x64xf32> to vector<64x64xf32>
    %129 = arith.truncf %128 : vector<64x64xf32> to vector<64x64xbf16>
    %130 = vector.extract_strided_slice %5 {offsets = [0, 320], sizes = [64, 64], strides = [1, 1]} : vector<64x1152xbf16> to vector<64x64xbf16>
    %131 = vector.shape_cast %130 : vector<64x64xbf16> to vector<1x64x64xbf16>
    %132 = vector.extract_strided_slice %5 {offsets = [0, 704], sizes = [64, 64], strides = [1, 1]} : vector<64x1152xbf16> to vector<64x64xbf16>
    %133 = vector.shape_cast %132 : vector<64x64xbf16> to vector<1x64x64xbf16>
    %134 = vector.extract_strided_slice %5 {offsets = [0, 1088], sizes = [64, 64], strides = [1, 1]} : vector<64x1152xbf16> to vector<64x64xbf16>
    %135 = vector.shape_cast %134 : vector<64x64xbf16> to vector<1x64x64xbf16>
    %136 = tpu.transpose %133, [0, 2, 1] : vector<1x64x64xbf16> -> vector<1x64x64xbf16>
    "tpu.trace_start"() <{level = 10 : i32, message = "btd,bds->bts"}> : () -> ()
    %cst_29 = arith.constant dense<0.000000e+00> : vector<1x64x64xf32>
    %137 = tpu.matmul %131, %136, %cst_29 {dimension_numbers = #tpu.dot_dimension_numbers<[2], [1], [1], [2], [0, 0, 0, 1, 1, 2], [0], [0]>} : vector<1x64x64xbf16>, vector<1x64x64xbf16>, vector<1x64x64xf32> -> vector<1x64x64xf32>
    %cst_30 = arith.constant -1.000000e+30 : f32
    "tpu.trace_stop"() : () -> ()
    %138 = vector.broadcast %cst_30 : f32 to vector<1x64x64xf32>
    %139 = arith.select %9, %137, %138 : vector<1x64x64xi1>, vector<1x64x64xf32>
    %cst_31 = arith.constant dense<0xFF800000> : vector<1x64xf32>
    %140 = vector.multi_reduction <maximumf>, %139, %cst_31 [2] : vector<1x64x64xf32> to vector<1x64xf32>
    %141 = vector.shape_cast %140 : vector<1x64xf32> to vector<1x64x1xf32>
    %142 = vector.broadcast %141 : vector<1x64x1xf32> to vector<1x64x64xf32>
    %143 = arith.subf %139, %142 : vector<1x64x64xf32>
    %144 = math.exp %143 : vector<1x64x64xf32>
    %cst_32 = arith.constant dense<0.000000e+00> : vector<1x64xf32>
    %145 = vector.multi_reduction <add>, %144, %cst_32 [2] : vector<1x64x64xf32> to vector<1x64xf32>
    %146 = vector.shape_cast %145 : vector<1x64xf32> to vector<1x64x1xf32>
    %147 = tpu.reciprocal %146 {approx = true} : vector<1x64x1xf32> -> vector<1x64x1xf32>
    %148 = vector.broadcast %147 : vector<1x64x1xf32> to vector<1x64x64xf32>
    %149 = arith.mulf %144, %148 : vector<1x64x64xf32>
    %150 = arith.truncf %149 : vector<1x64x64xf32> to vector<1x64x64xbf16>
    "tpu.trace_start"() <{level = 10 : i32, message = "bts,bsd->btd"}> : () -> ()
    %cst_33 = arith.constant dense<0.000000e+00> : vector<1x64x64xf32>
    %151 = tpu.matmul %150, %135, %cst_33 {dimension_numbers = #tpu.dot_dimension_numbers<[2], [1], [1], [2], [0, 0, 0, 1, 1, 2], [0], [0]>} : vector<1x64x64xbf16>, vector<1x64x64xbf16>, vector<1x64x64xf32> -> vector<1x64x64xf32>
    "tpu.trace_stop"() : () -> ()
    %152 = vector.shape_cast %151 : vector<1x64x64xf32> to vector<64x64xf32>
    %153 = arith.truncf %152 : vector<64x64xf32> to vector<64x64xbf16>
    %154 = tpu.concatenate %33, %57, %81, %105, %129, %153 in 1 : vector<64x64xbf16>, vector<64x64xbf16>, vector<64x64xbf16>, vector<64x64xbf16>, vector<64x64xbf16>, vector<64x64xbf16> -> vector<64x384xbf16>
    %c0_34 = arith.constant 0 : index
    %c0_35 = arith.constant 0 : index
    %155 = vector.load %arg3[%c0_34, %c0_35] : memref<384x384xbf16, #tpu.memory_space<vmem>>, vector<384x384xbf16>
    %cst_36 = arith.constant dense<0.000000e+00> : vector<64x384xf32>
    %156 = tpu.matmul %154, %155, %cst_36 {dimension_numbers = #tpu.dot_dimension_numbers<[1], [0], [0], [1], [0, 0, 1, 1], [], []>} : vector<64x384xbf16>, vector<384x384xbf16>, vector<64x384xf32> -> vector<64x384xf32>
    %c0_37 = arith.constant 0 : index
    %c0_38 = arith.constant 0 : index
    %157 = vector.load %arg4[%c0_37, %c0_38] : memref<1x384xf32, #tpu.memory_space<vmem>>, vector<1x384xf32>
    %158 = vector.broadcast %157 : vector<1x384xf32> to vector<64x384xf32>
    %159 = arith.addf %156, %158 : vector<64x384xf32>
    %160 = vector.shape_cast %159 : vector<64x384xf32> to vector<1x64x384xf32>
    %c0_39 = arith.constant 0 : index
    %c0_40 = arith.constant 0 : index
    %c0_41 = arith.constant 0 : index
    %161 = vector.load %arg5[%c0_39, %c0_40, %c0_41] : memref<1x64x384xf32, #tpu.memory_space<vmem>>, vector<1x64x384xf32>
    tpu.vector_store %arg5[%c0_39, %c0_40, %c0_41], %160 {strides = array<i32>} : memref<1x64x384xf32, #tpu.memory_space<vmem>>, vector<1x64x384xf32>,
    return
  }
  func.func @transform_0(%arg0: i32) -> (i32, i32, i32) {
    %c0_i32 = arith.constant 0 : i32
    %c0_i32_0 = arith.constant 0 : i32
    %c0_i32_1 = arith.constant 0 : i32
    return %arg0, %c0_i32, %c0_i32_0 : i32, i32, i32
  }
  func.func @transform_1(%arg0: i32) -> (i32, i32) {
    %c0_i32 = arith.constant 0 : i32
    %c0_i32_0 = arith.constant 0 : i32
    %c0_i32_1 = arith.constant 0 : i32
    return %c0_i32, %c0_i32_0 : i32, i32
  }
  func.func @transform_2(%arg0: i32) -> (i32, i32) {
    %c0_i32 = arith.constant 0 : i32
    %c0_i32_0 = arith.constant 0 : i32
    %c0_i32_1 = arith.constant 0 : i32
    return %c0_i32, %c0_i32_0 : i32, i32
  }
  func.func @transform_3(%arg0: i32) -> (i32, i32) {
    %c0_i32 = arith.constant 0 : i32
    %c0_i32_0 = arith.constant 0 : i32
    %c0_i32_1 = arith.constant 0 : i32
    return %c0_i32, %c0_i32_0 : i32, i32
  }
  func.func @transform_4(%arg0: i32) -> (i32, i32, i32) {
    %c0_i32 = arith.constant 0 : i32
    %c0_i32_0 = arith.constant 0 : i32
    %c0_i32_1 = arith.constant 0 : i32
    return %arg0, %c0_i32, %c0_i32_0 : i32, i32, i32
  }
}

</mosaic_0001>

<llo_original>
// kernel: tpu_custom_call.1
$region0: #{tpu_custom_call.1}
  #allocation0 [shape = 'u32[]', space=smem, size = 0x4, offset = 0x4, fixed_abs, tag = 'smem constant byte address 0x4 - core index']
  #allocation1 [shape = 'u32[144,128]{1,0:T(1,128)}', space=vmem, size = 0x12000, scoped, tag = 'internal scratch']
  %s0 = inlined_call_operand.hbm [shape: f32[2,64,384], index: 0, kind: input, shape index: {}]
  %s1 = inlined_call_operand.hbm [shape: bf16[384,1152], index: 1, kind: input, shape index: {}]
  %s2 = inlined_call_operand.hbm [shape: bf16[384,384], index: 2, kind: input, shape index: {}]
  %s3 = inlined_call_operand.vmem [shape: f32[1,384], index: 3, kind: input, shape index: {}]
  %s4 = inlined_call_operand.hbm [shape: f32[2,64,384], index: 4, kind: output, shape index: {}]
  %s5 = sld [smem:[#allocation0]]
  $region61: #{tpu_custom_call.1} parent=0
    _
  %s7 = ssub.s32 1, %s5
  %s8 = scalar_select 0, %s7, %s5
  $region1: #{tpu_custom_call.1} parent=0
    #allocation2 [shape = 'u8[196608]{0}', space=vmem, size = 0x30000, scoped, tag = 'input window, operand 0']
    #allocation3 [shape = 's32[2]{0}', space=sflag, size = 0x8, scoped, tag = 'scoped memory for tpu_custom_call.1']
    #allocation4 [shape = 's32[2]{0}', space=sflag, size = 0x8, scoped, tag = 'scoped memory for tpu_custom_call.1']
    #allocation5 [shape = 'u8[884736]{0}', space=vmem, size = 0xd8000, scoped, tag = 'input window, operand 1, single buffered']
    #allocation6 [shape = 's32[1]{0}', space=sflag, size = 0x4, scoped, tag = 'scoped memory for tpu_custom_call.1']
    #allocation7 [shape = 'u8[294912]{0}', space=vmem, size = 0x48000, scoped, tag = 'input window, operand 2, single buffered']
    #allocation8 [shape = 'u8[196608]{0}', space=vmem, size = 0x30000, scoped, tag = 'output window, operand 0']
    %9 = vsyncpa [#allocation3], 0
    %s10 = scalar_lea.sflag [#allocation3], 1
    %11 = vsyncpa %s10, 0
    %12 = vsyncpa [#allocation6], 0
    %13 = vsyncpa [#allocation4], 0
    %s14 = scalar_lea.sflag [#allocation4], 1
    %15 = vsyncpa %s14, 0
    loop: start=0, step=1, limit=4
    $region2: #{tpu_custom_call.1} parent=1 // loop_pre_header
      _
    $region3: #{tpu_custom_call.1} parent=1 // loop_header
      %s17 = sphi 0, %s21
      %p18 = scmp.ge.s32.totalorder %s17, 4
      %s27 = sphi 0, %s29
      %s30 = sphi 0, %s27
      %s31 = sphi 0, %s30
      %s47 = sphi 0, %s31
      %s51 = sphi 0, %s51
      %s53 = sphi 0, %s51
      %s54 = sphi 0, %s53
      %s68 = sphi 0, %s54
      %s72 = sphi 0, %s72
      %s74 = sphi 0, %s72
      %s75 = sphi 0, %s74
      %s89 = sphi 0, %s75
      %s93 = sphi 0, %s93
      %s95 = sphi 0, %s93
      %s96 = sphi 0, %s95
      %s110 = sphi 0, %s96
      %s116 = sphi 0, %s118
      %s119 = sphi 0, %s116
      %s120 = sphi 0, %s119
      %s136 = sphi 0, %s120
    $region4: #{tpu_custom_call.1} parent=1 // loop_header_branch
      %20 = sbr.rel (%p18) target = $region8
    $region5: #{tpu_custom_call.1} parent=1 // loop_body
      %s22 = ssub.s32 %s17, 1
      %s23 = ssub.s32 %s17, 2
      %s24 = sadd.s32 %s17, 1
      %s25 = ssub.s32 %s17, %s24
      %p26 = scmp.eq.s32.totalorder %s25, 0
      %s28 = sadd.s32 %s27, 1
      %s29 = scalar_select %p26, %s27, %s28
      %p32 = pneg %p26
      %p33 = scmp.eq.s32.totalorder %s17, 1
      %p34 = por %p32, %p33
      %p35 = scmp.ne.s32.totalorder %s27, %s30
      %p36 = scmp.eq.s32.totalorder %s17, 0
      %p37 = por %p35, %p36
      %p38 = scmp.ne.s32.totalorder %s27, %s30
      %p39 = scmp.eq.s32.totalorder %s22, 1
      %p40 = por %p38, %p39
      %p41 = scmp.ne.s32.totalorder %s30, %s31
      %p42 = scmp.eq.s32.totalorder %s22, 0
      %p43 = por %p41, %p42
      %p44 = scmp.ne.s32.totalorder %s30, %s31
      %p45 = scmp.eq.s32.totalorder %s23, 1
      %p46 = por %p44, %p45
      %p48 = scmp.ne.s32.totalorder %s31, %s47
      %p49 = scmp.eq.s32.totalorder %s23, 0
      %p50 = por %p48, %p49
      %s52 = sadd.s32 %s51, 1
      %p55 = scmp.eq.s32.totalorder %s17, 1
      %p56 = scmp.ne.s32.totalorder %s51, %s53
      %p57 = scmp.eq.s32.totalorder %s17, 0
      %p58 = por %p56, %p57
      %p59 = scmp.ne.s32.totalorder %s51, %s53
      %p60 = scmp.eq.s32.totalorder %s22, 1
      %p61 = por %p59, %p60
      %p62 = scmp.ne.s32.totalorder %s53, %s54
      %p63 = scmp.eq.s32.totalorder %s22, 0
      %p64 = por %p62, %p63
      %p65 = scmp.ne.s32.totalorder %s53, %s54
      %p66 = scmp.eq.s32.totalorder %s23, 1
      %p67 = por %p65, %p66
      %p69 = scmp.ne.s32.totalorder %s54, %s68
      %p70 = scmp.eq.s32.totalorder %s23, 0
      %p71 = por %p69, %p70
      %s73 = sadd.s32 %s72, 1
      %p76 = scmp.eq.s32.totalorder %s17, 1
      %p77 = scmp.ne.s32.totalorder %s72, %s74
      %p78 = scmp.eq.s32.totalorder %s17, 0
      %p79 = por %p77, %p78
      %p80 = scmp.ne.s32.totalorder %s72, %s74
      %p81 = scmp.eq.s32.totalorder %s22, 1
      %p82 = por %p80, %p81
      %p83 = scmp.ne.s32.totalorder %s74, %s75
      %p84 = scmp.eq.s32.totalorder %s22, 0
      %p85 = por %p83, %p84
      %p86 = scmp.ne.s32.totalorder %s74, %s75
      %p87 = scmp.eq.s32.totalorder %s23, 1
      %p88 = por %p86, %p87
      %p90 = scmp.ne.s32.totalorder %s75, %s89
      %p91 = scmp.eq.s32.totalorder %s23, 0
      %p92 = por %p90, %p91
      %s94 = sadd.s32 %s93, 1
      %p97 = scmp.eq.s32.totalorder %s17, 1
      %p98 = scmp.ne.s32.totalorder %s93, %s95
      %p99 = scmp.eq.s32.totalorder %s17, 0
      %p100 = por %p98, %p99
      %p101 = scmp.ne.s32.totalorder %s93, %s95
      %p102 = scmp.eq.s32.totalorder %s22, 1
      %p103 = por %p101, %p102
      %p104 = scmp.ne.s32.totalorder %s95, %s96
      %p105 = scmp.eq.s32.totalorder %s22, 0
      %p106 = por %p104, %p105
      %p107 = scmp.ne.s32.totalorder %s95, %s96
      %p108 = scmp.eq.s32.totalorder %s23, 1
      %p109 = por %p107, %p108
      %p111 = scmp.ne.s32.totalorder %s96, %s110
      %p112 = scmp.eq.s32.totalorder %s23, 0
      %p113 = por %p111, %p112
      %s114 = ssub.s32 %s17, %s24
      %p115 = scmp.eq.s32.totalorder %s114, 0
      %s117 = sadd.s32 %s116, 1
      %s118 = scalar_select %p115, %s116, %s117
      %p121 = pneg %p115
      %p122 = scmp.eq.s32.totalorder %s17, 1
      %p123 = por %p121, %p122
      %p124 = scmp.ne.s32.totalorder %s116, %s119
      %p125 = scmp.eq.s32.totalorder %s17, 0
      %p126 = por %p124, %p125
      %p127 = scmp.ne.s32.totalorder %s116, %s119
      %p128 = scmp.eq.s32.totalorder %s22, 1
      %p129 = por %p127, %p128
      %p130 = scmp.ne.s32.totalorder %s119, %s120
      %p131 = scmp.eq.s32.totalorder %s22, 0
      %p132 = por %p130, %p131
      %p133 = scmp.ne.s32.totalorder %s119, %s120
      %p134 = scmp.eq.s32.totalorder %s23, 1
      %p135 = por %p133, %p134
      %p137 = scmp.ne.s32.totalorder %s120, %s136
      %p138 = scmp.eq.s32.totalorder %s23, 0
      %p139 = por %p137, %p138
      %p140 = scmp.le.s32.totalorder 1, %s17
      %p141 = scmp.lt.s32.totalorder %s17, 3
      %p142 = pnand %p140, %p141
      %p143 = pneg %p142
      // Predicated region
      $region9: #{tpu_custom_call.1} parent=5 // pred_check
        _
      $region10: #{tpu_custom_call.1} parent=5 // pred_check_branch
        %145 = sbr.rel (%p142) target = $region12
      $region11: #{tpu_custom_call.1} parent=5 // pred_region
        %s146 = ssub.s32 %s17, 1
        // Predicated region
        $region13: #{tpu_custom_call.1} parent=11 // pred_check
          %p147 = pneg %p64
        $region14: #{tpu_custom_call.1} parent=11 // pred_check_branch
          %149 = sbr.rel (%p147) target = $region16
        $region15: #{tpu_custom_call.1} parent=11 // pred_region
          %s151 = ssub.s32 27648, 27648
          %152 = vsyncadd [#allocation6], %s151
          %s153 = sshll.u32 [#allocation5], 4
          %s154 = int_to_ptr.vmem [resolvable:$true] %s153
          %159 = dma.hbm_to_vmem [thread:$0]  %s1, 27648, %s154, [#allocation6], 576, 576, 36
        $region16: #{tpu_custom_call.1} parent=11 // pred_fallthru
          _
        // Predicated region
        $region17: #{tpu_custom_call.1} parent=11 // pred_check
          %p160 = pneg %p85
        $region18: #{tpu_custom_call.1} parent=11 // pred_check_branch
          %162 = sbr.rel (%p160) target = $region20
        $region19: #{tpu_custom_call.1} parent=11 // pred_region
          %s164 = ssub.s32 9216, 9216
          %165 = vsyncadd [#allocation6], %s164
          %s166 = sshll.u32 [#allocation7], 4
          %s167 = int_to_ptr.vmem [resolvable:$true] %s166
          %172 = dma.hbm_to_vmem [thread:$0]  %s2, 9216, %s167, [#allocation6], 192, 192, 12
        $region20: #{tpu_custom_call.1} parent=11 // pred_fallthru
          _
        // Predicated region
        $region21: #{tpu_custom_call.1} parent=11 // pred_check
          %p173 = pneg %p106
        $region22: #{tpu_custom_call.1} parent=11 // pred_check_branch
          %175 = sbr.rel (%p173) target = $region24
        $region23: #{tpu_custom_call.1} parent=11 // pred_region
          _
        $region24: #{tpu_custom_call.1} parent=11 // pred_fallthru
          _
      $region12: #{tpu_custom_call.1} parent=5 // pred_fallthru
        _
      %p176 = scmp.lt.s32.totalorder %s17, 2
      // Predicated region
      $region25: #{tpu_custom_call.1} parent=5 // pred_check
        %p177 = pneg %p176
      $region26: #{tpu_custom_call.1} parent=5 // pred_check_branch
        %179 = sbr.rel (%p177) target = $region28
      $region27: #{tpu_custom_call.1} parent=5 // pred_region
        // Predicated region
        $region29: #{tpu_custom_call.1} parent=27 // pred_check
          %p180 = pneg %p37
        $region30: #{tpu_custom_call.1} parent=27 // pred_check_branch
          %182 = sbr.rel (%p180) target = $region32
        $region31: #{tpu_custom_call.1} parent=27 // pred_region
          %s183 = sand.u32 %s27, 1
          %s184 = scalar_lea.sflag [#allocation3], %s183
          %s185 = sand.u32 %s27, 1
          %s186 = smul.addr %s185, 192
          %s187 = scalar_lea.vmem [#allocation2], %s186
          %s189 = ssub.s32 3072, 3072
          %190 = vsyncadd %s184, %s189
          %s191 = smul.addr %s17, 24
          %s192 = smul.addr %s191, 128
          %s193 = scalar_lea.hbm %s0, %s192
          %s194 = sshll.u32 %s187, 4
          %s195 = int_to_ptr.vmem [resolvable:$true] %s194
          %200 = dma.hbm_to_vmem [thread:$0]  %s193, 3072, %s195, %s184, 384, 384, 24
        $region32: #{tpu_custom_call.1} parent=27 // pred_fallthru
          _
      $region28: #{tpu_custom_call.1} parent=5 // pred_fallthru
        _
      %p201 = scmp.le.s32.totalorder 1, %s17
      %p202 = scmp.lt.s32.totalorder %s17, 3
      %p203 = pnand %p201, %p202
      %p204 = pneg %p203
      // Predicated region
      $region33: #{tpu_custom_call.1} parent=5 // pred_check
        _
      $region34: #{tpu_custom_call.1} parent=5 // pred_check_branch
        %206 = sbr.rel (%p203) target = $region36
      $region35: #{tpu_custom_call.1} parent=5 // pred_region
        %s207 = ssub.s32 %s17, 1
        %s208 = sand.u32 %s30, 1
        %s209 = scalar_lea.sflag [#allocation3], %s208
        %s210 = sand.u32 %s30, 1
        %s211 = smul.addr %s210, 192
        %s212 = scalar_lea.vmem [#allocation2], %s211
        // Predicated region
        $region37: #{tpu_custom_call.1} parent=35 // pred_check
          %p213 = pneg %p43
        $region38: #{tpu_custom_call.1} parent=35 // pred_check_branch
          %215 = sbr.rel (%p213) target = $region40
        $region39: #{tpu_custom_call.1} parent=35 // pred_region
          %216 = dma.done %s209, 3072
        $region40: #{tpu_custom_call.1} parent=35 // pred_fallthru
          _
        // Predicated region
        $region41: #{tpu_custom_call.1} parent=35 // pred_check
          %p217 = pneg %p64
        $region42: #{tpu_custom_call.1} parent=35 // pred_check_branch
          %219 = sbr.rel (%p217) target = $region44
        $region43: #{tpu_custom_call.1} parent=35 // pred_region
          %220 = dma.done [#allocation6], 27648
        $region44: #{tpu_custom_call.1} parent=35 // pred_fallthru
          _
        // Predicated region
        $region45: #{tpu_custom_call.1} parent=35 // pred_check
          %p221 = pneg %p85
        $region46: #{tpu_custom_call.1} parent=35 // pred_check_branch
          %223 = sbr.rel (%p221) target = $region48
        $region47: #{tpu_custom_call.1} parent=35 // pred_region
          %224 = dma.done [#allocation6], 9216
        $region48: #{tpu_custom_call.1} parent=35 // pred_fallthru
          _
        %s225 = sand.u32 %s30, 1
        %s226 = scalar_lea.sflag [#allocation3], %s225
        %s227 = sand.u32 %s30, 1
        %s228 = smul.addr %s227, 192
        %s229 = scalar_lea.vmem [#allocation2], %s228
        %p230 = pneg %p43
        %p231 = pneg %p40
        %p232 = pneg %p64
        %p233 = pneg %p61
        %p234 = pneg %p85
        %p235 = pneg %p82
        %p236 = pneg %p106
        %p237 = pneg %p103
        %p238 = pneg %p132
        %p239 = pneg %p129
        %s240 = sand.u32 %s119, 1
        %s241 = scalar_lea.sflag [#allocation4], %s240
        %s242 = sand.u32 %s119, 1
        %s243 = smul.addr %s242, 192
        %s244 = scalar_lea.vmem [#allocation8], %s243
        %v246 = vld [vmem:[%s212] sm:$0xff]
        %v247 = vld [vmem:[%s212 + $0x8] sm:$0xff]
        %v248 = vld [vmem:[%s212 + $0x10] sm:$0xff]
        %v249 = vld [vmem:[%s212 + $0x18] sm:$0xff]
        %v250 = vld [vmem:[%s212 + $0x20] sm:$0xff]
        %v251 = vld [vmem:[%s212 + $0x28] sm:$0xff]
        %v252 = vld [vmem:[%s212 + $0x30] sm:$0xff]
        %v253 = vld [vmem:[%s212 + $0x38] sm:$0xff]
        %v254 = vld [vmem:[%s212 + $0x40] sm:$0xff]
        %v255 = vld [vmem:[%s212 + $0x48] sm:$0xff]
        %v256 = vld [vmem:[%s212 + $0x50] sm:$0xff]
        %v257 = vld [vmem:[%s212 + $0x58] sm:$0xff]
        %v258 = vld [vmem:[%s212 + $0x60] sm:$0xff]
        %v259 = vld [vmem:[%s212 + $0x68] sm:$0xff]
        %v260 = vld [vmem:[%s212 + $0x70] sm:$0xff]
        %v261 = vld [vmem:[%s212 + $0x78] sm:$0xff]
        %v262 = vld [vmem:[%s212 + $0x80] sm:$0xff]
        %v263 = vld [vmem:[%s212 + $0x88] sm:$0xff]
        %v264 = vld [vmem:[%s212 + $0x90] sm:$0xff]
        %v265 = vld [vmem:[%s212 + $0x98] sm:$0xff]
        %v266 = vld [vmem:[%s212 + $0xa0] sm:$0xff]
        %v267 = vld [vmem:[%s212 + $0xa8] sm:$0xff]
        %v268 = vld [vmem:[%s212 + $0xb0] sm:$0xff]
        %v269 = vld [vmem:[%s212 + $0xb8] sm:$0xff]
        %v270 = vpack.c.bf16 %v249, %v246
        %v271 = vpack.c.bf16 %v250, %v247
        %v272 = vpack.c.bf16 %v251, %v248
        %v273 = vpack.c.bf16 %v255, %v252
        %v274 = vpack.c.bf16 %v256, %v253
        %v275 = vpack.c.bf16 %v257, %v254
        %v276 = vpack.c.bf16 %v261, %v258
        %v277 = vpack.c.bf16 %v262, %v259
        %v278 = vpack.c.bf16 %v263, %v260
        %v279 = vpack.c.bf16 %v267, %v264
        %v280 = vpack.c.bf16 %v268, %v265
        %v281 = vpack.c.bf16 %v269, %v266
        %v282 = vld [vmem:[#allocation5] sm:$0xff]
        %v283 = vld [vmem:[#allocation5 + $0x8] sm:$0xff]
        %v284 = vld [vmem:[#allocation5 + $0x10] sm:$0xff]
        %v285 = vld [vmem:[#allocation5 + $0x18] sm:$0xff]
        %v286 = vld [vmem:[#allocation5 + $0x20] sm:$0xf]
        %v287 = vld [vmem:[#allocation5 + $0x24] sm:$0xff]
        %v288 = vld [vmem:[#allocation5 + $0x2c] sm:$0xff]
        %v289 = vld [vmem:[#allocation5 + $0x34] sm:$0xff]
        %v290 = vld [vmem:[#allocation5 + $0x3c] sm:$0xff]
        %v291 = vld [vmem:[#allocation5 + $0x44] sm:$0xf]
        %v292 = vld [vmem:[#allocation5 + $0x48] sm:$0xff]
        %v293 = vld [vmem:[#allocation5 + $0x50] sm:$0xff]
        %v294 = vld [vmem:[#allocation5 + $0x58] sm:$0xff]
        %v295 = vld [vmem:[#allocation5 + $0x60] sm:$0xff]
        %v296 = vld [vmem:[#allocation5 + $0x68] sm:$0xf]
        %v297 = vld [vmem:[#allocation5 + $0x6c] sm:$0xff]
        %v298 = vld [vmem:[#allocation5 + $0x74] sm:$0xff]
        %v299 = vld [vmem:[#allocation5 + $0x7c] sm:$0xff]
        %v300 = vld [vmem:[#allocation5 + $0x84] sm:$0xff]
        %v301 = vld [vmem:[#allocation5 + $0x8c] sm:$0xf]
        %v302 = vld [vmem:[#allocation5 + $0x90] sm:$0xff]
        %v303 = vld [vmem:[#allocation5 + $0x98] sm:$0xff]
        %v304 = vld [vmem:[#allocation5 + $0xa0] sm:$0xff]
        %v305 = vld [vmem:[#allocation5 + $0xa8] sm:$0xff]
        %v306 = vld [vmem:[#allocation5 + $0xb0] sm:$0xf]
        %v307 = vld [vmem:[#allocation5 + $0xb4] sm:$0xff]
        %v308 = vld [vmem:[#allocation5 + $0xbc] sm:$0xff]
        %v309 = vld [vmem:[#allocation5 + $0xc4] sm:$0xff]
        %v310 = vld [vmem:[#allocation5 + $0xcc] sm:$0xff]
        %v311 = vld [vmem:[#allocation5 + $0xd4] sm:$0xf]
        %v312 = vld [vmem:[#allocation5 + $0xd8] sm:$0xff]
        %v313 = vld [vmem:[#allocation5 + $0xe0] sm:$0xff]
        %v314 = vld [vmem:[#allocation5 + $0xe8] sm:$0xff]
        %v315 = vld [vmem:[#allocation5 + $0xf0] sm:$0xff]
        %v316 = vld [vmem:[#allocation5 + $0xf8] sm:$0xf]
        %v317 = vld [vmem:[#allocation5 + $0xfc] sm:$0xff]
        %v318 = vld [vmem:[#allocation5 + $0x104] sm:$0xff]
        %v319 = vld [vmem:[#allocation5 + $0x10c] sm:$0xff]
        %v320 = vld [vmem:[#allocation5 + $0x114] sm:$0xff]
        %v321 = vld [vmem:[#allocation5 + $0x11c] sm:$0xf]
        %v322 = vld [vmem:[#allocation5 + $0x120] sm:$0xff]
        %v323 = vld [vmem:[#allocation5 + $0x128] sm:$0xff]
        %v324 = vld [vmem:[#allocation5 + $0x130] sm:$0xff]
        %v325 = vld [vmem:[#allocation5 + $0x138] sm:$0xff]
        %v326 = vld [vmem:[#allocation5 + $0x140] sm:$0xf]
        %v327 = vld [vmem:[#allocation5 + $0x144] sm:$0xff]
        %v328 = vld [vmem:[#allocation5 + $0x14c] sm:$0xff]
        %v329 = vld [vmem:[#allocation5 + $0x154] sm:$0xff]
        %v330 = vld [vmem:[#allocation5 + $0x15c] sm:$0xff]
        %v331 = vld [vmem:[#allocation5 + $0x164] sm:$0xf]
        %v332 = vld [vmem:[#allocation5 + $0x168] sm:$0xff]
        %v333 = vld [vmem:[#allocation5 + $0x170] sm:$0xff]
        %v334 = vld [vmem:[#allocation5 + $0x178] sm:$0xff]
        %v335 = vld [vmem:[#allocation5 + $0x180] sm:$0xff]
        %v336 = vld [vmem:[#allocation5 + $0x188] sm:$0xf]
        %v337 = vld [vmem:[#allocation5 + $0x18c] sm:$0xff]
        %v338 = vld [vmem:[#allocation5 + $0x194] sm:$0xff]
        %v339 = vld [vmem:[#allocation5 + $0x19c] sm:$0xff]
        %v340 = vld [vmem:[#allocation5 + $0x1a4] sm:$0xff]
        %v341 = vld [vmem:[#allocation5 + $0x1ac] sm:$0xf]
        %v342 = vld [vmem:[#allocation5 + $0x1b0] sm:$0xff]
        %v343 = vld [vmem:[#allocation5 + $0x1b8] sm:$0xff]
        %v344 = vld [vmem:[#allocation5 + $0x1c0] sm:$0xff]
        %v345 = vld [vmem:[#allocation5 + $0x1c8] sm:$0xff]
        %v346 = vld [vmem:[#allocation5 + $0x1d0] sm:$0xf]
        %v347 = vld [vmem:[#allocation5 + $0x1d4] sm:$0xff]
        %v348 = vld [vmem:[#allocation5 + $0x1dc] sm:$0xff]
        %v349 = vld [vmem:[#allocation5 + $0x1e4] sm:$0xff]
        %v350 = vld [vmem:[#allocation5 + $0x1ec] sm:$0xff]
        %v351 = vld [vmem:[#allocation5 + $0x1f4] sm:$0xf]
        %v352 = vld [vmem:[#allocation5 + $0x1f8] sm:$0xff]
        %v353 = vld [vmem:[#allocation5 + $0x200] sm:$0xff]
        %v354 = vld [vmem:[#allocation5 + $0x208] sm:$0xff]
        %v355 = vld [vmem:[#allocation5 + $0x210] sm:$0xff]
        %v356 = vld [vmem:[#allocation5 + $0x218] sm:$0xf]
        %v357 = vld [vmem:[#allocation5 + $0x21c] sm:$0xff]
        %v358 = vld [vmem:[#allocation5 + $0x224] sm:$0xff]
        %v359 = vld [vmem:[#allocation5 + $0x22c] sm:$0xff]
        %v360 = vld [vmem:[#allocation5 + $0x234] sm:$0xff]
        %v361 = vld [vmem:[#allocation5 + $0x23c] sm:$0xf]
        %v362 = vld [vmem:[#allocation5 + $0x240] sm:$0xff]
        %v363 = vld [vmem:[#allocation5 + $0x248] sm:$0xff]
        %v364 = vld [vmem:[#allocation5 + $0x250] sm:$0xff]
        %v365 = vld [vmem:[#allocation5 + $0x258] sm:$0xff]
        %v366 = vld [vmem:[#allocation5 + $0x260] sm:$0xf]
        %v367 = vld [vmem:[#allocation5 + $0x264] sm:$0xff]
        %v368 = vld [vmem:[#allocation5 + $0x26c] sm:$0xff]
        %v369 = vld [vmem:[#allocation5 + $0x274] sm:$0xff]
        %v370 = vld [vmem:[#allocation5 + $0x27c] sm:$0xff]
        %v371 = vld [vmem:[#allocation5 + $0x284] sm:$0xf]
        %v372 = vld [vmem:[#allocation5 + $0x288] sm:$0xff]
        %v373 = vld [vmem:[#allocation5 + $0x290] sm:$0xff]
        %v374 = vld [vmem:[#allocation5 + $0x298] sm:$0xff]
        %v375 = vld [vmem:[#allocation5 + $0x2a0] sm:$0xff]
        %v376 = vld [vmem:[#allocation5 + $0x2a8] sm:$0xf]
        %v377 = vld [vmem:[#allocation5 + $0x2ac] sm:$0xff]
        %v378 = vld [vmem:[#allocation5 + $0x2b4] sm:$0xff]
        %v379 = vld [vmem:[#allocation5 + $0x2bc] sm:$0xff]
        %v380 = vld [vmem:[#allocation5 + $0x2c4] sm:$0xff]
        %v381 = vld [vmem:[#allocation5 + $0x2cc] sm:$0xf]
        %v382 = vld [vmem:[#allocation5 + $0x2d0] sm:$0xff]
        %v383 = vld [vmem:[#allocation5 + $0x2d8] sm:$0xff]
        %v384 = vld [vmem:[#allocation5 + $0x2e0] sm:$0xff]
        %v385 = vld [vmem:[#allocation5 + $0x2e8] sm:$0xff]
        %v386 = vld [vmem:[#allocation5 + $0x2f0] sm:$0xf]
        %v387 = vld [vmem:[#allocation5 + $0x2f4] sm:$0xff]
        %v388 = vld [vmem:[#allocation5 + $0x2fc] sm:$0xff]
        %v389 = vld [vmem:[#allocation5 + $0x304] sm:$0xff]
        %v390 = vld [vmem:[#allocation5 + $0x30c] sm:$0xff]
        %v391 = vld [vmem:[#allocation5 + $0x314] sm:$0xf]
        %v392 = vld [vmem:[#allocation5 + $0x318] sm:$0xff]
        %v393 = vld [vmem:[#allocation5 + $0x320] sm:$0xff]
        %v394 = vld [vmem:[#allocation5 + $0x328] sm:$0xff]
        %v395 = vld [vmem:[#allocation5 + $0x330] sm:$0xff]
        %v396 = vld [vmem:[#allocation5 + $0x338] sm:$0xf]
        %v397 = vld [vmem:[#allocation5 + $0x33c] sm:$0xff]
        %v398 = vld [vmem:[#allocation5 + $0x344] sm:$0xff]
        %v399 = vld [vmem:[#allocation5 + $0x34c] sm:$0xff]
        %v400 = vld [vmem:[#allocation5 + $0x354] sm:$0xff]
        %v401 = vld [vmem:[#allocation5 + $0x35c] sm:$0xf]
        %v402 = vld [vmem:[#allocation5 + $0x360] sm:$0xff]
        %v403 = vld [vmem:[#allocation5 + $0x368] sm:$0xff]
        %v404 = vld [vmem:[#allocation5 + $0x370] sm:$0xff]
        %v405 = vld [vmem:[#allocation5 + $0x378] sm:$0xff]
        %v406 = vld [vmem:[#allocation5 + $0x380] sm:$0xf]
        %v407 = vld [vmem:[#allocation5 + $0x384] sm:$0xff]
        %v408 = vld [vmem:[#allocation5 + $0x38c] sm:$0xff]
        %v409 = vld [vmem:[#allocation5 + $0x394] sm:$0xff]
        %v410 = vld [vmem:[#allocation5 + $0x39c] sm:$0xff]
        %v411 = vld [vmem:[#allocation5 + $0x3a4] sm:$0xf]
        %v412 = vld [vmem:[#allocation5 + $0x3a8] sm:$0xff]
        %v413 = vld [vmem:[#allocation5 + $0x3b0] sm:$0xff]
        %v414 = vld [vmem:[#allocation5 + $0x3b8] sm:$0xff]
        %v415 = vld [vmem:[#allocation5 + $0x3c0] sm:$0xff]
        %v416 = vld [vmem:[#allocation5 + $0x3c8] sm:$0xf]
        %v417 = vld [vmem:[#allocation5 + $0x3cc] sm:$0xff]
        %v418 = vld [vmem:[#allocation5 + $0x3d4] sm:$0xff]
        %v419 = vld [vmem:[#allocation5 + $0x3dc] sm:$0xff]
        %v420 = vld [vmem:[#allocation5 + $0x3e4] sm:$0xff]
        %v421 = vld [vmem:[#allocation5 + $0x3ec] sm:$0xf]
        %v422 = vld [vmem:[#allocation5 + $0x3f0] sm:$0xff]
        %v423 = vld [vmem:[#allocation5 + $0x3f8] sm:$0xff]
        %v424 = vld [vmem:[#allocation5 + $0x400] sm:$0xff]
        %v425 = vld [vmem:[#allocation5 + $0x408] sm:$0xff]
        %v426 = vld [vmem:[#allocation5 + $0x410] sm:$0xf]
        %v427 = vld [vmem:[#allocation5 + $0x414] sm:$0xff]
        %v428 = vld [vmem:[#allocation5 + $0x41c] sm:$0xff]
        %v429 = vld [vmem:[#allocation5 + $0x424] sm:$0xff]
        %v430 = vld [vmem:[#allocation5 + $0x42c] sm:$0xff]
        %v431 = vld [vmem:[#allocation5 + $0x434] sm:$0xf]
        %v432 = vld [vmem:[#allocation5 + $0x438] sm:$0xff]
        %v433 = vld [vmem:[#allocation5 + $0x440] sm:$0xff]
        %v434 = vld [vmem:[#allocation5 + $0x448] sm:$0xff]
        %v435 = vld [vmem:[#allocation5 + $0x450] sm:$0xff]
        %v436 = vld [vmem:[#allocation5 + $0x458] sm:$0xf]
        %v437 = vld [vmem:[#allocation5 + $0x45c] sm:$0xff]
        %v438 = vld [vmem:[#allocation5 + $0x464] sm:$0xff]
        %v439 = vld [vmem:[#allocation5 + $0x46c] sm:$0xff]
        %v440 = vld [vmem:[#allocation5 + $0x474] sm:$0xff]
        %v441 = vld [vmem:[#allocation5 + $0x47c] sm:$0xf]
        %v442 = vld [vmem:[#allocation5 + $0x480] sm:$0xff]
        %v443 = vld [vmem:[#allocation5 + $0x488] sm:$0xff]
        %v444 = vld [vmem:[#allocation5 + $0x490] sm:$0xff]
        %v445 = vld [vmem:[#allocation5 + $0x498] sm:$0xff]
        %v446 = vld [vmem:[#allocation5 + $0x4a0] sm:$0xf]
        %v447 = vld [vmem:[#allocation5 + $0x4a4] sm:$0xff]
        %v448 = vld [vmem:[#allocation5 + $0x4ac] sm:$0xff]
        %v449 = vld [vmem:[#allocation5 + $0x4b4] sm:$0xff]
        %v450 = vld [vmem:[#allocation5 + $0x4bc] sm:$0xff]
        %v451 = vld [vmem:[#allocation5 + $0x4c4] sm:$0xf]
        %v452 = vld [vmem:[#allocation5 + $0x4c8] sm:$0xff]
        %v453 = vld [vmem:[#allocation5 + $0x4d0] sm:$0xff]
        %v454 = vld [vmem:[#allocation5 + $0x4d8] sm:$0xff]
        %v455 = vld [vmem:[#allocation5 + $0x4e0] sm:$0xff]
        %v456 = vld [vmem:[#allocation5 + $0x4e8] sm:$0xf]
        %v457 = vld [vmem:[#allocation5 + $0x4ec] sm:$0xff]
        %v458 = vld [vmem:[#allocation5 + $0x4f4] sm:$0xff]
        %v459 = vld [vmem:[#allocation5 + $0x4fc] sm:$0xff]
        %v460 = vld [vmem:[#allocation5 + $0x504] sm:$0xff]
        %v461 = vld [vmem:[#allocation5 + $0x50c] sm:$0xf]
        %v462 = vld [vmem:[#allocation5 + $0x510] sm:$0xff]
        %v463 = vld [vmem:[#allocation5 + $0x518] sm:$0xff]
        %v464 = vld [vmem:[#allocation5 + $0x520] sm:$0xff]
        %v465 = vld [vmem:[#allocation5 + $0x528] sm:$0xff]
        %v466 = vld [vmem:[#allocation5 + $0x530] sm:$0xf]
        %v467 = vld [vmem:[#allocation5 + $0x534] sm:$0xff]
        %v468 = vld [vmem:[#allocation5 + $0x53c] sm:$0xff]
        %v469 = vld [vmem:[#allocation5 + $0x544] sm:$0xff]
        %v470 = vld [vmem:[#allocation5 + $0x54c] sm:$0xff]
        %v471 = vld [vmem:[#allocation5 + $0x554] sm:$0xf]
        %v472 = vld [vmem:[#allocation5 + $0x558] sm:$0xff]
        %v473 = vld [vmem:[#allocation5 + $0x560] sm:$0xff]
        %v474 = vld [vmem:[#allocation5 + $0x568] sm:$0xff]
        %v475 = vld [vmem:[#allocation5 + $0x570] sm:$0xff]
        %v476 = vld [vmem:[#allocation5 + $0x578] sm:$0xf]
        %v477 = vld [vmem:[#allocation5 + $0x57c] sm:$0xff]
        %v478 = vld [vmem:[#allocation5 + $0x584] sm:$0xff]
        %v479 = vld [vmem:[#allocation5 + $0x58c] sm:$0xff]
        %v480 = vld [vmem:[#allocation5 + $0x594] sm:$0xff]
        %v481 = vld [vmem:[#allocation5 + $0x59c] sm:$0xf]
        %v482 = vld [vmem:[#allocation5 + $0x5a0] sm:$0xff]
        %v483 = vld [vmem:[#allocation5 + $0x5a8] sm:$0xff]
        %v484 = vld [vmem:[#allocation5 + $0x5b0] sm:$0xff]
        %v485 = vld [vmem:[#allocation5 + $0x5b8] sm:$0xff]
        %v486 = vld [vmem:[#allocation5 + $0x5c0] sm:$0xf]
        %v487 = vld [vmem:[#allocation5 + $0x5c4] sm:$0xff]
        %v488 = vld [vmem:[#allocation5 + $0x5cc] sm:$0xff]
        %v489 = vld [vmem:[#allocation5 + $0x5d4] sm:$0xff]
        %v490 = vld [vmem:[#allocation5 + $0x5dc] sm:$0xff]
        %v491 = vld [vmem:[#allocation5 + $0x5e4] sm:$0xf]
        %v492 = vld [vmem:[#allocation5 + $0x5e8] sm:$0xff]
        %v493 = vld [vmem:[#allocation5 + $0x5f0] sm:$0xff]
        %v494 = vld [vmem:[#allocation5 + $0x5f8] sm:$0xff]
        %v495 = vld [vmem:[#allocation5 + $0x600] sm:$0xff]
        %v496 = vld [vmem:[#allocation5 + $0x608] sm:$0xf]
        %v497 = vld [vmem:[#allocation5 + $0x60c] sm:$0xff]
        %v498 = vld [vmem:[#allocation5 + $0x614] sm:$0xff]
        %v499 = vld [vmem:[#allocation5 + $0x61c] sm:$0xff]
        %v500 = vld [vmem:[#allocation5 + $0x624] sm:$0xff]
        %v501 = vld [vmem:[#allocation5 + $0x62c] sm:$0xf]
        %v502 = vld [vmem:[#allocation5 + $0x630] sm:$0xff]
        %v503 = vld [vmem:[#allocation5 + $0x638] sm:$0xff]
        %v504 = vld [vmem:[#allocation5 + $0x640] sm:$0xff]
        %v505 = vld [vmem:[#allocation5 + $0x648] sm:$0xff]
        %v506 = vld [vmem:[#allocation5 + $0x650] sm:$0xf]
        %v507 = vld [vmem:[#allocation5 + $0x654] sm:$0xff]
        %v508 = vld [vmem:[#allocation5 + $0x65c] sm:$0xff]
        %v509 = vld [vmem:[#allocation5 + $0x664] sm:$0xff]
        %v510 = vld [vmem:[#allocation5 + $0x66c] sm:$0xff]
        %v511 = vld [vmem:[#allocation5 + $0x674] sm:$0xf]
        %v512 = vld [vmem:[#allocation5 + $0x678] sm:$0xff]
        %v513 = vld [vmem:[#allocation5 + $0x680] sm:$0xff]
        %v514 = vld [vmem:[#allocation5 + $0x688] sm:$0xff]
        %v515 = vld [vmem:[#allocation5 + $0x690] sm:$0xff]
        %v516 = vld [vmem:[#allocation5 + $0x698] sm:$0xf]
        %v517 = vld [vmem:[#allocation5 + $0x69c] sm:$0xff]
        %v518 = vld [vmem:[#allocation5 + $0x6a4] sm:$0xff]
        %v519 = vld [vmem:[#allocation5 + $0x6ac] sm:$0xff]
        %v520 = vld [vmem:[#allocation5 + $0x6b4] sm:$0xff]
        %v521 = vld [vmem:[#allocation5 + $0x6bc] sm:$0xf]
        %v762 = vunpack.c.l.b16 %v282
        %v763 = vunpack.c.h.b16 %v282
        %v764 = vunpack.c.l.b16 %v283
        %v765 = vunpack.c.h.b16 %v283
        %v766 = vunpack.c.l.b16 %v284
        %v767 = vunpack.c.h.b16 %v284
        %v768 = vunpack.c.l.b16 %v285
        %v769 = vunpack.c.h.b16 %v285
        %v770 = vunpack.c.l.b16 %v286
        %v771 = vunpack.c.l.b16 %v287
        %v772 = vunpack.c.h.b16 %v287
        %v773 = vunpack.c.l.b16 %v288
        %v774 = vunpack.c.h.b16 %v288
        %v775 = vunpack.c.l.b16 %v289
        %v776 = vunpack.c.h.b16 %v289
        %v777 = vunpack.c.l.b16 %v290
        %v778 = vunpack.c.h.b16 %v290
        %v779 = vunpack.c.l.b16 %v291
        %v780 = vunpack.c.l.b16 %v292
        %v781 = vunpack.c.h.b16 %v292
        %v782 = vunpack.c.l.b16 %v293
        %v783 = vunpack.c.h.b16 %v293
        %v784 = vunpack.c.l.b16 %v294
        %v785 = vunpack.c.h.b16 %v294
        %v786 = vunpack.c.l.b16 %v295
        %v787 = vunpack.c.h.b16 %v295
        %v788 = vunpack.c.l.b16 %v296
        %v789 = vunpack.c.l.b16 %v297
        %v790 = vunpack.c.h.b16 %v297
        %v791 = vunpack.c.l.b16 %v298
        %v792 = vunpack.c.h.b16 %v298
        %v793 = vunpack.c.l.b16 %v299
        %v794 = vunpack.c.h.b16 %v299
        %v795 = vunpack.c.l.b16 %v300
        %v796 = vunpack.c.h.b16 %v300
        %v797 = vunpack.c.l.b16 %v301
        %v798 = vunpack.c.l.b16 %v302
        %v799 = vunpack.c.h.b16 %v302
        %v800 = vunpack.c.l.b16 %v303
        %v801 = vunpack.c.h.b16 %v303
        %v802 = vunpack.c.l.b16 %v304
        %v803 = vunpack.c.h.b16 %v304
        %v804 = vunpack.c.l.b16 %v305
        %v805 = vunpack.c.h.b16 %v305
        %v806 = vunpack.c.l.b16 %v306
        %v807 = vunpack.c.l.b16 %v307
        %v808 = vunpack.c.h.b16 %v307
        %v809 = vunpack.c.l.b16 %v308
        %v810 = vunpack.c.h.b16 %v308
        %v811 = vunpack.c.l.b16 %v309
        %v812 = vunpack.c.h.b16 %v309
        %v813 = vunpack.c.l.b16 %v310
        %v814 = vunpack.c.h.b16 %v310
        %v815 = vunpack.c.l.b16 %v311
        %v816 = vunpack.c.l.b16 %v312
        %v817 = vunpack.c.h.b16 %v312
        %v818 = vunpack.c.l.b16 %v313
        %v819 = vunpack.c.h.b16 %v313
        %v820 = vunpack.c.l.b16 %v314
        %v821 = vunpack.c.h.b16 %v314
        %v822 = vunpack.c.l.b16 %v315
        %v823 = vunpack.c.h.b16 %v315
        %v824 = vunpack.c.l.b16 %v316
        %v825 = vunpack.c.l.b16 %v317
        %v826 = vunpack.c.h.b16 %v317
        %v827 = vunpack.c.l.b16 %v318
        %v828 = vunpack.c.h.b16 %v318
        %v829 = vunpack.c.l.b16 %v319
        %v830 = vunpack.c.h.b16 %v319
        %v831 = vunpack.c.l.b16 %v320
        %v832 = vunpack.c.h.b16 %v320
        %v833 = vunpack.c.l.b16 %v321
        %v834 = vunpack.c.l.b16 %v322
        %v835 = vunpack.c.h.b16 %v322
        %v836 = vunpack.c.l.b16 %v323
        %v837 = vunpack.c.h.b16 %v323
        %v838 = vunpack.c.l.b16 %v324
        %v839 = vunpack.c.h.b16 %v324
        %v840 = vunpack.c.l.b16 %v325
        %v841 = vunpack.c.h.b16 %v325
        %v842 = vunpack.c.l.b16 %v326
        %v843 = vunpack.c.l.b16 %v327
        %v844 = vunpack.c.h.b16 %v327
        %v845 = vunpack.c.l.b16 %v328
        %v846 = vunpack.c.h.b16 %v328
        %v847 = vunpack.c.l.b16 %v329
        %v848 = vunpack.c.h.b16 %v329
        %v849 = vunpack.c.l.b16 %v330
        %v850 = vunpack.c.h.b16 %v330
        %v851 = vunpack.c.l.b16 %v331
        %v852 = vunpack.c.l.b16 %v332
        %v853 = vunpack.c.h.b16 %v332
        %v854 = vunpack.c.l.b16 %v333
        %v855 = vunpack.c.h.b16 %v333
        %v856 = vunpack.c.l.b16 %v334
        %v857 = vunpack.c.h.b16 %v334
        %v858 = vunpack.c.l.b16 %v335
        %v859 = vunpack.c.h.b16 %v335
        %v860 = vunpack.c.l.b16 %v336
        %v861 = vunpack.c.l.b16 %v337
        %v862 = vunpack.c.h.b16 %v337
        %v863 = vunpack.c.l.b16 %v338
        %v864 = vunpack.c.h.b16 %v338
        %v865 = vunpack.c.l.b16 %v339
        %v866 = vunpack.c.h.b16 %v339
        %v867 = vunpack.c.l.b16 %v340
        %v868 = vunpack.c.h.b16 %v340
        %v869 = vunpack.c.l.b16 %v341
        %v870 = vunpack.c.l.b16 %v342
        %v871 = vunpack.c.h.b16 %v342
        %v872 = vunpack.c.l.b16 %v343
        %v873 = vunpack.c.h.b16 %v343
        %v874 = vunpack.c.l.b16 %v344
        %v875 = vunpack.c.h.b16 %v344
        %v876 = vunpack.c.l.b16 %v345
        %v877 = vunpack.c.h.b16 %v345
        %v878 = vunpack.c.l.b16 %v346
        %v879 = vunpack.c.l.b16 %v347
        %v880 = vunpack.c.h.b16 %v347
        %v881 = vunpack.c.l.b16 %v348
        %v882 = vunpack.c.h.b16 %v348
        %v883 = vunpack.c.l.b16 %v349
        %v884 = vunpack.c.h.b16 %v349
        %v885 = vunpack.c.l.b16 %v350
        %v886 = vunpack.c.h.b16 %v350
        %v887 = vunpack.c.l.b16 %v351
        %v888 = vunpack.c.l.b16 %v352
        %v889 = vunpack.c.h.b16 %v352
        %v890 = vunpack.c.l.b16 %v353
        %v891 = vunpack.c.h.b16 %v353
        %v892 = vunpack.c.l.b16 %v354
        %v893 = vunpack.c.h.b16 %v354
        %v894 = vunpack.c.l.b16 %v355
        %v895 = vunpack.c.h.b16 %v355
        %v896 = vunpack.c.l.b16 %v356
        %v897 = vunpack.c.l.b16 %v357
        %v898 = vunpack.c.h.b16 %v357
        %v899 = vunpack.c.l.b16 %v358
        %v900 = vunpack.c.h.b16 %v358
        %v901 = vunpack.c.l.b16 %v359
        %v902 = vunpack.c.h.b16 %v359
        %v903 = vunpack.c.l.b16 %v360
        %v904 = vunpack.c.h.b16 %v360
        %v905 = vunpack.c.l.b16 %v361
        %v906 = vunpack.c.l.b16 %v362
        %v907 = vunpack.c.h.b16 %v362
        %v908 = vunpack.c.l.b16 %v363
        %v909 = vunpack.c.h.b16 %v363
        %v910 = vunpack.c.l.b16 %v364
        %v911 = vunpack.c.h.b16 %v364
        %v912 = vunpack.c.l.b16 %v365
        %v913 = vunpack.c.h.b16 %v365
        %v914 = vunpack.c.l.b16 %v366
        %v915 = vunpack.c.l.b16 %v367
        %v916 = vunpack.c.h.b16 %v367
        %v917 = vunpack.c.l.b16 %v368
        %v918 = vunpack.c.h.b16 %v368
        %v919 = vunpack.c.l.b16 %v369
        %v920 = vunpack.c.h.b16 %v369
        %v921 = vunpack.c.l.b16 %v370
        %v922 = vunpack.c.h.b16 %v370
        %v923 = vunpack.c.l.b16 %v371
        %v924 = vunpack.c.l.b16 %v372
        %v925 = vunpack.c.h.b16 %v372
        %v926 = vunpack.c.l.b16 %v373
        %v927 = vunpack.c.h.b16 %v373
        %v928 = vunpack.c.l.b16 %v374
        %v929 = vunpack.c.h.b16 %v374
        %v930 = vunpack.c.l.b16 %v375
        %v931 = vunpack.c.h.b16 %v375
        %v932 = vunpack.c.l.b16 %v376
        %v933 = vunpack.c.l.b16 %v377
        %v934 = vunpack.c.h.b16 %v377
        %v935 = vunpack.c.l.b16 %v378
        %v936 = vunpack.c.h.b16 %v378
        %v937 = vunpack.c.l.b16 %v379
        %v938 = vunpack.c.h.b16 %v379
        %v939 = vunpack.c.l.b16 %v380
        %v940 = vunpack.c.h.b16 %v380
        %v941 = vunpack.c.l.b16 %v381
        %v942 = vunpack.c.l.b16 %v382
        %v943 = vunpack.c.h.b16 %v382
        %v944 = vunpack.c.l.b16 %v383
        %v945 = vunpack.c.h.b16 %v383
        %v946 = vunpack.c.l.b16 %v384
        %v947 = vunpack.c.h.b16 %v384
        %v948 = vunpack.c.l.b16 %v385
        %v949 = vunpack.c.h.b16 %v385
        %v950 = vunpack.c.l.b16 %v386
        %v951 = vunpack.c.l.b16 %v387
        %v952 = vunpack.c.h.b16 %v387
        %v953 = vunpack.c.l.b16 %v388
        %v954 = vunpack.c.h.b16 %v388
        %v955 = vunpack.c.l.b16 %v389
        %v956 = vunpack.c.h.b16 %v389
        %v957 = vunpack.c.l.b16 %v390
        %v958 = vunpack.c.h.b16 %v390
        %v959 = vunpack.c.l.b16 %v391
        %v960 = vunpack.c.l.b16 %v392
        %v961 = vunpack.c.h.b16 %v392
        %v962 = vunpack.c.l.b16 %v393
        %v963 = vunpack.c.h.b16 %v393
        %v964 = vunpack.c.l.b16 %v394
        %v965 = vunpack.c.h.b16 %v394
        %v966 = vunpack.c.l.b16 %v395
        %v967 = vunpack.c.h.b16 %v395
        %v968 = vunpack.c.l.b16 %v396
        %v969 = vunpack.c.l.b16 %v397
        %v970 = vunpack.c.h.b16 %v397
        %v971 = vunpack.c.l.b16 %v398
        %v972 = vunpack.c.h.b16 %v398
        %v973 = vunpack.c.l.b16 %v399
        %v974 = vunpack.c.h.b16 %v399
        %v975 = vunpack.c.l.b16 %v400
        %v976 = vunpack.c.h.b16 %v400
        %v977 = vunpack.c.l.b16 %v401
        %v978 = vunpack.c.l.b16 %v402
        %v979 = vunpack.c.h.b16 %v402
        %v980 = vunpack.c.l.b16 %v403
        %v981 = vunpack.c.h.b16 %v403
        %v982 = vunpack.c.l.b16 %v404
        %v983 = vunpack.c.h.b16 %v404
        %v984 = vunpack.c.l.b16 %v405
        %v985 = vunpack.c.h.b16 %v405
        %v986 = vunpack.c.l.b16 %v406
        %v987 = vunpack.c.l.b16 %v407
        %v988 = vunpack.c.h.b16 %v407
        %v989 = vunpack.c.l.b16 %v408
        %v990 = vunpack.c.h.b16 %v408
        %v991 = vunpack.c.l.b16 %v409
        %v992 = vunpack.c.h.b16 %v409
        %v993 = vunpack.c.l.b16 %v410
        %v994 = vunpack.c.h.b16 %v410
        %v995 = vunpack.c.l.b16 %v411
        %v996 = vunpack.c.l.b16 %v412
        %v997 = vunpack.c.h.b16 %v412
        %v998 = vunpack.c.l.b16 %v413
        %v999 = vunpack.c.h.b16 %v413
        %v1000 = vunpack.c.l.b16 %v414
        %v1001 = vunpack.c.h.b16 %v414
        %v1002 = vunpack.c.l.b16 %v415
        %v1003 = vunpack.c.h.b16 %v415
        %v1004 = vunpack.c.l.b16 %v416
        %v1005 = vunpack.c.l.b16 %v417
        %v1006 = vunpack.c.h.b16 %v417
        %v1007 = vunpack.c.l.b16 %v418
        %v1008 = vunpack.c.h.b16 %v418
        %v1009 = vunpack.c.l.b16 %v419
        %v1010 = vunpack.c.h.b16 %v419
        %v1011 = vunpack.c.l.b16 %v420
        %v1012 = vunpack.c.h.b16 %v420
        %v1013 = vunpack.c.l.b16 %v421
        %v1014 = vunpack.c.l.b16 %v422
        %v1015 = vunpack.c.h.b16 %v422
        %v1016 = vunpack.c.l.b16 %v423
        %v1017 = vunpack.c.h.b16 %v423
        %v1018 = vunpack.c.l.b16 %v424
        %v1019 = vunpack.c.h.b16 %v424
        %v1020 = vunpack.c.l.b16 %v425
        %v1021 = vunpack.c.h.b16 %v425
        %v1022 = vunpack.c.l.b16 %v426
        %v1023 = vunpack.c.l.b16 %v427
        %v1024 = vunpack.c.h.b16 %v427
        %v1025 = vunpack.c.l.b16 %v428
        %v1026 = vunpack.c.h.b16 %v428
        %v1027 = vunpack.c.l.b16 %v429
        %v1028 = vunpack.c.h.b16 %v429
        %v1029 = vunpack.c.l.b16 %v430
        %v1030 = vunpack.c.h.b16 %v430
        %v1031 = vunpack.c.l.b16 %v431
        %v1032 = vunpack.c.l.b16 %v432
        %v1033 = vunpack.c.h.b16 %v432
        %v1034 = vunpack.c.l.b16 %v433
        %v1035 = vunpack.c.h.b16 %v433
        %v1036 = vunpack.c.l.b16 %v434
        %v1037 = vunpack.c.h.b16 %v434
        %v1038 = vunpack.c.l.b16 %v435
        %v1039 = vunpack.c.h.b16 %v435
        %v1040 = vunpack.c.l.b16 %v436
        %v1041 = vunpack.c.l.b16 %v437
        %v1042 = vunpack.c.h.b16 %v437
        %v1043 = vunpack.c.l.b16 %v438
        %v1044 = vunpack.c.h.b16 %v438
        %v1045 = vunpack.c.l.b16 %v439
        %v1046 = vunpack.c.h.b16 %v439
        %v1047 = vunpack.c.l.b16 %v440
        %v1048 = vunpack.c.h.b16 %v440
        %v1049 = vunpack.c.l.b16 %v441
        %v1050 = vunpack.c.l.b16 %v442
        %v1051 = vunpack.c.h.b16 %v442
        %v1052 = vunpack.c.l.b16 %v443
        %v1053 = vunpack.c.h.b16 %v443
        %v1054 = vunpack.c.l.b16 %v444
        %v1055 = vunpack.c.h.b16 %v444
        %v1056 = vunpack.c.l.b16 %v445
        %v1057 = vunpack.c.h.b16 %v445
        %v1058 = vunpack.c.l.b16 %v446
        %v1059 = vunpack.c.l.b16 %v447
        %v1060 = vunpack.c.h.b16 %v447
        %v1061 = vunpack.c.l.b16 %v448
        %v1062 = vunpack.c.h.b16 %v448
        %v1063 = vunpack.c.l.b16 %v449
        %v1064 = vunpack.c.h.b16 %v449
        %v1065 = vunpack.c.l.b16 %v450
        %v1066 = vunpack.c.h.b16 %v450
        %v1067 = vunpack.c.l.b16 %v451
        %v1068 = vunpack.c.l.b16 %v452
        %v1069 = vunpack.c.h.b16 %v452
        %v1070 = vunpack.c.l.b16 %v453
        %v1071 = vunpack.c.h.b16 %v453
        %v1072 = vunpack.c.l.b16 %v454
        %v1073 = vunpack.c.h.b16 %v454
        %v1074 = vunpack.c.l.b16 %v455
        %v1075 = vunpack.c.h.b16 %v455
        %v1076 = vunpack.c.l.b16 %v456
        %v1077 = vunpack.c.l.b16 %v457
        %v1078 = vunpack.c.h.b16 %v457
        %v1079 = vunpack.c.l.b16 %v458
        %v1080 = vunpack.c.h.b16 %v458
        %v1081 = vunpack.c.l.b16 %v459
        %v1082 = vunpack.c.h.b16 %v459
        %v1083 = vunpack.c.l.b16 %v460
        %v1084 = vunpack.c.h.b16 %v460
        %v1085 = vunpack.c.l.b16 %v461
        %v1086 = vunpack.c.l.b16 %v462
        %v1087 = vunpack.c.h.b16 %v462
        %v1088 = vunpack.c.l.b16 %v463
        %v1089 = vunpack.c.h.b16 %v463
        %v1090 = vunpack.c.l.b16 %v464
        %v1091 = vunpack.c.h.b16 %v464
        %v1092 = vunpack.c.l.b16 %v465
        %v1093 = vunpack.c.h.b16 %v465
        %v1094 = vunpack.c.l.b16 %v466
        %v1095 = vunpack.c.l.b16 %v467
        %v1096 = vunpack.c.h.b16 %v467
        %v1097 = vunpack.c.l.b16 %v468
        %v1098 = vunpack.c.h.b16 %v468
        %v1099 = vunpack.c.l.b16 %v469
        %v1100 = vunpack.c.h.b16 %v469
        %v1101 = vunpack.c.l.b16 %v470
        %v1102 = vunpack.c.h.b16 %v470
        %v1103 = vunpack.c.l.b16 %v471
        %v1104 = vunpack.c.l.b16 %v472
        %v1105 = vunpack.c.h.b16 %v472
        %v1106 = vunpack.c.l.b16 %v473
        %v1107 = vunpack.c.h.b16 %v473
        %v1108 = vunpack.c.l.b16 %v474
        %v1109 = vunpack.c.h.b16 %v474
        %v1110 = vunpack.c.l.b16 %v475
        %v1111 = vunpack.c.h.b16 %v475
        %v1112 = vunpack.c.l.b16 %v476
        %v1113 = vunpack.c.l.b16 %v477
        %v1114 = vunpack.c.h.b16 %v477
        %v1115 = vunpack.c.l.b16 %v478
        %v1116 = vunpack.c.h.b16 %v478
        %v1117 = vunpack.c.l.b16 %v479
        %v1118 = vunpack.c.h.b16 %v479
        %v1119 = vunpack.c.l.b16 %v480
        %v1120 = vunpack.c.h.b16 %v480
        %v1121 = vunpack.c.l.b16 %v481
        %v1122 = vunpack.c.l.b16 %v482
        %v1123 = vunpack.c.h.b16 %v482
        %v1124 = vunpack.c.l.b16 %v483
        %v1125 = vunpack.c.h.b16 %v483
        %v1126 = vunpack.c.l.b16 %v484
        %v1127 = vunpack.c.h.b16 %v484
        %v1128 = vunpack.c.l.b16 %v485
        %v1129 = vunpack.c.h.b16 %v485
        %v1130 = vunpack.c.l.b16 %v486
        %v1131 = vunpack.c.l.b16 %v487
        %v1132 = vunpack.c.h.b16 %v487
        %v1133 = vunpack.c.l.b16 %v488
        %v1134 = vunpack.c.h.b16 %v488
        %v1135 = vunpack.c.l.b16 %v489
        %v1136 = vunpack.c.h.b16 %v489
        %v1137 = vunpack.c.l.b16 %v490
        %v1138 = vunpack.c.h.b16 %v490
        %v1139 = vunpack.c.l.b16 %v491
        %v1140 = vunpack.c.l.b16 %v492
        %v1141 = vunpack.c.h.b16 %v492
        %v1142 = vunpack.c.l.b16 %v493
        %v1143 = vunpack.c.h.b16 %v493
        %v1144 = vunpack.c.l.b16 %v494
        %v1145 = vunpack.c.h.b16 %v494
        %v1146 = vunpack.c.l.b16 %v495
        %v1147 = vunpack.c.h.b16 %v495
        %v1148 = vunpack.c.l.b16 %v496
        %v1149 = vunpack.c.l.b16 %v497
        %v1150 = vunpack.c.h.b16 %v497
        %v1151 = vunpack.c.l.b16 %v498
        %v1152 = vunpack.c.h.b16 %v498
        %v1153 = vunpack.c.l.b16 %v499
        %v1154 = vunpack.c.h.b16 %v499
        %v1155 = vunpack.c.l.b16 %v500
        %v1156 = vunpack.c.h.b16 %v500
        %v1157 = vunpack.c.l.b16 %v501
        %v1158 = vunpack.c.l.b16 %v502
        %v1159 = vunpack.c.h.b16 %v502
        %v1160 = vunpack.c.l.b16 %v503
        %v1161 = vunpack.c.h.b16 %v503
        %v1162 = vunpack.c.l.b16 %v504
        %v1163 = vunpack.c.h.b16 %v504
        %v1164 = vunpack.c.l.b16 %v505
        %v1165 = vunpack.c.h.b16 %v505
        %v1166 = vunpack.c.l.b16 %v506
        %v1167 = vunpack.c.l.b16 %v507
        %v1168 = vunpack.c.h.b16 %v507
        %v1169 = vunpack.c.l.b16 %v508
        %v1170 = vunpack.c.h.b16 %v508
        %v1171 = vunpack.c.l.b16 %v509
        %v1172 = vunpack.c.h.b16 %v509
        %v1173 = vunpack.c.l.b16 %v510
        %v1174 = vunpack.c.h.b16 %v510
        %v1175 = vunpack.c.l.b16 %v511
        %v1176 = vunpack.c.l.b16 %v512
        %v1177 = vunpack.c.h.b16 %v512
        %v1178 = vunpack.c.l.b16 %v513
        %v1179 = vunpack.c.h.b16 %v513
        %v1180 = vunpack.c.l.b16 %v514
        %v1181 = vunpack.c.h.b16 %v514
        %v1182 = vunpack.c.l.b16 %v515
        %v1183 = vunpack.c.h.b16 %v515
        %v1184 = vunpack.c.l.b16 %v516
        %v1185 = vunpack.c.l.b16 %v517
        %v1186 = vunpack.c.h.b16 %v517
        %v1187 = vunpack.c.l.b16 %v518
        %v1188 = vunpack.c.h.b16 %v518
        %v1189 = vunpack.c.l.b16 %v519
        %v1190 = vunpack.c.h.b16 %v519
        %v1191 = vunpack.c.l.b16 %v520
        %v1192 = vunpack.c.h.b16 %v520
        %v1193 = vunpack.c.l.b16 %v521
        %v1194 = vpack.c.b16 %v771, %v762
        %v1195 = vpack.c.b16 %v772, %v763
        %v1196 = vpack.c.b16 %v773, %v764
        %v1197 = vpack.c.b16 %v774, %v765
        %v1198 = vpack.c.b16 %v775, %v766
        %v1199 = vpack.c.b16 %v776, %v767
        %v1200 = vpack.c.b16 %v777, %v768
        %v1201 = vpack.c.b16 %v778, %v769
        %v1202 = vpack.c.b16 %v779, %v770
        %v1203 = vpack.c.b16 %v789, %v780
        %v1204 = vpack.c.b16 %v790, %v781
        %v1205 = vpack.c.b16 %v791, %v782
        %v1206 = vpack.c.b16 %v792, %v783
        %v1207 = vpack.c.b16 %v793, %v784
        %v1208 = vpack.c.b16 %v794, %v785
        %v1209 = vpack.c.b16 %v795, %v786
        %v1210 = vpack.c.b16 %v796, %v787
        %v1211 = vpack.c.b16 %v797, %v788
        %v1212 = vpack.c.b16 %v807, %v798
        %v1213 = vpack.c.b16 %v808, %v799
        %v1214 = vpack.c.b16 %v809, %v800
        %v1215 = vpack.c.b16 %v810, %v801
        %v1216 = vpack.c.b16 %v811, %v802
        %v1217 = vpack.c.b16 %v812, %v803
        %v1218 = vpack.c.b16 %v813, %v804
        %v1219 = vpack.c.b16 %v814, %v805
        %v1220 = vpack.c.b16 %v815, %v806
        %v1221 = vpack.c.b16 %v825, %v816
        %v1222 = vpack.c.b16 %v826, %v817
        %v1223 = vpack.c.b16 %v827, %v818
        %v1224 = vpack.c.b16 %v828, %v819
        %v1225 = vpack.c.b16 %v829, %v820
        %v1226 = vpack.c.b16 %v830, %v821
        %v1227 = vpack.c.b16 %v831, %v822
        %v1228 = vpack.c.b16 %v832, %v823
        %v1229 = vpack.c.b16 %v833, %v824
        %v1230 = vpack.c.b16 %v843, %v834
        %v1231 = vpack.c.b16 %v844, %v835
        %v1232 = vpack.c.b16 %v845, %v836
        %v1233 = vpack.c.b16 %v846, %v837
        %v1234 = vpack.c.b16 %v847, %v838
        %v1235 = vpack.c.b16 %v848, %v839
        %v1236 = vpack.c.b16 %v849, %v840
        %v1237 = vpack.c.b16 %v850, %v841
        %v1238 = vpack.c.b16 %v851, %v842
        %v1239 = vpack.c.b16 %v861, %v852
        %v1240 = vpack.c.b16 %v862, %v853
        %v1241 = vpack.c.b16 %v863, %v854
        %v1242 = vpack.c.b16 %v864, %v855
        %v1243 = vpack.c.b16 %v865, %v856
        %v1244 = vpack.c.b16 %v866, %v857
        %v1245 = vpack.c.b16 %v867, %v858
        %v1246 = vpack.c.b16 %v868, %v859
        %v1247 = vpack.c.b16 %v869, %v860
        %v1248 = vpack.c.b16 %v879, %v870
        %v1249 = vpack.c.b16 %v880, %v871
        %v1250 = vpack.c.b16 %v881, %v872
        %v1251 = vpack.c.b16 %v882, %v873
        %v1252 = vpack.c.b16 %v883, %v874
        %v1253 = vpack.c.b16 %v884, %v875
        %v1254 = vpack.c.b16 %v885, %v876
        %v1255 = vpack.c.b16 %v886, %v877
        %v1256 = vpack.c.b16 %v887, %v878
        %v1257 = vpack.c.b16 %v897, %v888
        %v1258 = vpack.c.b16 %v898, %v889
        %v1259 = vpack.c.b16 %v899, %v890
        %v1260 = vpack.c.b16 %v900, %v891
        %v1261 = vpack.c.b16 %v901, %v892
        %v1262 = vpack.c.b16 %v902, %v893
        %v1263 = vpack.c.b16 %v903, %v894
        %v1264 = vpack.c.b16 %v904, %v895
        %v1265 = vpack.c.b16 %v905, %v896
        %v1266 = vpack.c.b16 %v915, %v906
        %v1267 = vpack.c.b16 %v916, %v907
        %v1268 = vpack.c.b16 %v917, %v908
        %v1269 = vpack.c.b16 %v918, %v909
        %v1270 = vpack.c.b16 %v919, %v910
        %v1271 = vpack.c.b16 %v920, %v911
        %v1272 = vpack.c.b16 %v921, %v912
        %v1273 = vpack.c.b16 %v922, %v913
        %v1274 = vpack.c.b16 %v923, %v914
        %v1275 = vpack.c.b16 %v933, %v924
        %v1276 = vpack.c.b16 %v934, %v925
        %v1277 = vpack.c.b16 %v935, %v926
        %v1278 = vpack.c.b16 %v936, %v927
        %v1279 = vpack.c.b16 %v937, %v928
        %v1280 = vpack.c.b16 %v938, %v929
        %v1281 = vpack.c.b16 %v939, %v930
        %v1282 = vpack.c.b16 %v940, %v931
        %v1283 = vpack.c.b16 %v941, %v932
        %v1284 = vpack.c.b16 %v951, %v942
        %v1285 = vpack.c.b16 %v952, %v943
        %v1286 = vpack.c.b16 %v953, %v944
        %v1287 = vpack.c.b16 %v954, %v945
        %v1288 = vpack.c.b16 %v955, %v946
        %v1289 = vpack.c.b16 %v956, %v947
        %v1290 = vpack.c.b16 %v957, %v948
        %v1291 = vpack.c.b16 %v958, %v949
        %v1292 = vpack.c.b16 %v959, %v950
        %v1293 = vpack.c.b16 %v969, %v960
        %v1294 = vpack.c.b16 %v970, %v961
        %v1295 = vpack.c.b16 %v971, %v962
        %v1296 = vpack.c.b16 %v972, %v963
        %v1297 = vpack.c.b16 %v973, %v964
        %v1298 = vpack.c.b16 %v974, %v965
        %v1299 = vpack.c.b16 %v975, %v966
        %v1300 = vpack.c.b16 %v976, %v967
        %v1301 = vpack.c.b16 %v977, %v968
        %v1302 = vpack.c.b16 %v987, %v978
        %v1303 = vpack.c.b16 %v988, %v979
        %v1304 = vpack.c.b16 %v989, %v980
        %v1305 = vpack.c.b16 %v990, %v981
        %v1306 = vpack.c.b16 %v991, %v982
        %v1307 = vpack.c.b16 %v992, %v983
        %v1308 = vpack.c.b16 %v993, %v984
        %v1309 = vpack.c.b16 %v994, %v985
        %v1310 = vpack.c.b16 %v995, %v986
        %v1311 = vpack.c.b16 %v1005, %v996
        %v1312 = vpack.c.b16 %v1006, %v997
        %v1313 = vpack.c.b16 %v1007, %v998
        %v1314 = vpack.c.b16 %v1008, %v999
        %v1315 = vpack.c.b16 %v1009, %v1000
        %v1316 = vpack.c.b16 %v1010, %v1001
        %v1317 = vpack.c.b16 %v1011, %v1002
        %v1318 = vpack.c.b16 %v1012, %v1003
        %v1319 = vpack.c.b16 %v1013, %v1004
        %v1320 = vpack.c.b16 %v1023, %v1014
        %v1321 = vpack.c.b16 %v1024, %v1015
        %v1322 = vpack.c.b16 %v1025, %v1016
        %v1323 = vpack.c.b16 %v1026, %v1017
        %v1324 = vpack.c.b16 %v1027, %v1018
        %v1325 = vpack.c.b16 %v1028, %v1019
        %v1326 = vpack.c.b16 %v1029, %v1020
        %v1327 = vpack.c.b16 %v1030, %v1021
        %v1328 = vpack.c.b16 %v1031, %v1022
        %v1329 = vpack.c.b16 %v1041, %v1032
        %v1330 = vpack.c.b16 %v1042, %v1033
        %v1331 = vpack.c.b16 %v1043, %v1034
        %v1332 = vpack.c.b16 %v1044, %v1035
        %v1333 = vpack.c.b16 %v1045, %v1036
        %v1334 = vpack.c.b16 %v1046, %v1037
        %v1335 = vpack.c.b16 %v1047, %v1038
        %v1336 = vpack.c.b16 %v1048, %v1039
        %v1337 = vpack.c.b16 %v1049, %v1040
        %v1338 = vpack.c.b16 %v1059, %v1050
        %v1339 = vpack.c.b16 %v1060, %v1051
        %v1340 = vpack.c.b16 %v1061, %v1052
        %v1341 = vpack.c.b16 %v1062, %v1053
        %v1342 = vpack.c.b16 %v1063, %v1054
        %v1343 = vpack.c.b16 %v1064, %v1055
        %v1344 = vpack.c.b16 %v1065, %v1056
        %v1345 = vpack.c.b16 %v1066, %v1057
        %v1346 = vpack.c.b16 %v1067, %v1058
        %v1347 = vpack.c.b16 %v1077, %v1068
        %v1348 = vpack.c.b16 %v1078, %v1069
        %v1349 = vpack.c.b16 %v1079, %v1070
        %v1350 = vpack.c.b16 %v1080, %v1071
        %v1351 = vpack.c.b16 %v1081, %v1072
        %v1352 = vpack.c.b16 %v1082, %v1073
        %v1353 = vpack.c.b16 %v1083, %v1074
        %v1354 = vpack.c.b16 %v1084, %v1075
        %v1355 = vpack.c.b16 %v1085, %v1076
        %v1356 = vpack.c.b16 %v1095, %v1086
        %v1357 = vpack.c.b16 %v1096, %v1087
        %v1358 = vpack.c.b16 %v1097, %v1088
        %v1359 = vpack.c.b16 %v1098, %v1089
        %v1360 = vpack.c.b16 %v1099, %v1090
        %v1361 = vpack.c.b16 %v1100, %v1091
        %v1362 = vpack.c.b16 %v1101, %v1092
        %v1363 = vpack.c.b16 %v1102, %v1093
        %v1364 = vpack.c.b16 %v1103, %v1094
        %v1365 = vpack.c.b16 %v1113, %v1104
        %v1366 = vpack.c.b16 %v1114, %v1105
        %v1367 = vpack.c.b16 %v1115, %v1106
        %v1368 = vpack.c.b16 %v1116, %v1107
        %v1369 = vpack.c.b16 %v1117, %v1108
        %v1370 = vpack.c.b16 %v1118, %v1109
        %v1371 = vpack.c.b16 %v1119, %v1110
        %v1372 = vpack.c.b16 %v1120, %v1111
        %v1373 = vpack.c.b16 %v1121, %v1112
        %v1374 = vpack.c.b16 %v1131, %v1122
        %v1375 = vpack.c.b16 %v1132, %v1123
        %v1376 = vpack.c.b16 %v1133, %v1124
        %v1377 = vpack.c.b16 %v1134, %v1125
        %v1378 = vpack.c.b16 %v1135, %v1126
        %v1379 = vpack.c.b16 %v1136, %v1127
        %v1380 = vpack.c.b16 %v1137, %v1128
        %v1381 = vpack.c.b16 %v1138, %v1129
        %v1382 = vpack.c.b16 %v1139, %v1130
        %v1383 = vpack.c.b16 %v1149, %v1140
        %v1384 = vpack.c.b16 %v1150, %v1141
        %v1385 = vpack.c.b16 %v1151, %v1142
        %v1386 = vpack.c.b16 %v1152, %v1143
        %v1387 = vpack.c.b16 %v1153, %v1144
        %v1388 = vpack.c.b16 %v1154, %v1145
        %v1389 = vpack.c.b16 %v1155, %v1146
        %v1390 = vpack.c.b16 %v1156, %v1147
        %v1391 = vpack.c.b16 %v1157, %v1148
        %v1392 = vpack.c.b16 %v1167, %v1158
        %v1393 = vpack.c.b16 %v1168, %v1159
        %v1394 = vpack.c.b16 %v1169, %v1160
        %v1395 = vpack.c.b16 %v1170, %v1161
        %v1396 = vpack.c.b16 %v1171, %v1162
        %v1397 = vpack.c.b16 %v1172, %v1163
        %v1398 = vpack.c.b16 %v1173, %v1164
        %v1399 = vpack.c.b16 %v1174, %v1165
        %v1400 = vpack.c.b16 %v1175, %v1166
        %v1401 = vpack.c.b16 %v1185, %v1176
        %v1402 = vpack.c.b16 %v1186, %v1177
        %v1403 = vpack.c.b16 %v1187, %v1178
        %v1404 = vpack.c.b16 %v1188, %v1179
        %v1405 = vpack.c.b16 %v1189, %v1180
        %v1406 = vpack.c.b16 %v1190, %v1181
        %v1407 = vpack.c.b16 %v1191, %v1182
        %v1408 = vpack.c.b16 %v1192, %v1183
        %v1409 = vpack.c.b16 %v1193, %v1184
        %1626 = vmatprep.subr.bf16.mxu0 %v1195
        %1627 = vmatpush1.bf16.msra.mxu0 %v1194
        %1628 = vmatprep.subr.bf16.mxu0 %v1204
        %1629 = vmatpush1.bf16.msra.mxu0 %v1203
        %1630 = vmatprep.subr.bf16.mxu0 %v1213
        %1631 = vmatpush1.bf16.msra.mxu0 %v1212
        %1632 = vmatprep.subr.bf16.mxu0 %v1222
        %1633 = vmatpush1.bf16.msra.mxu0 %v1221
        %1634 = vmatprep.subr.bf16.mxu0 %v1231
        %1635 = vmatpush1.bf16.msra.mxu0 %v1230
        %1636 = vmatprep.subr.bf16.mxu0 %v1240
        %1637 = vmatpush1.bf16.msra.mxu0 %v1239
        %1638 = vmatprep.subr.bf16.mxu0 %v1249
        %1639 = vmatpush1.bf16.msra.mxu0 %v1248
        %1640 = vmatprep.subr.bf16.mxu0 %v1258
        %1641 = vmatpush1.bf16.msra.mxu0 %v1257
        %1642 = vmatprep.subr.bf16.mxu0 %v1267
        %1643 = vmatpush1.bf16.msra.mxu0 %v1266
        %1644 = vmatprep.subr.bf16.mxu0 %v1276
        %1645 = vmatpush1.bf16.msra.mxu0 %v1275
        %1646 = vmatprep.subr.bf16.mxu0 %v1285
        %1647 = vmatpush1.bf16.msra.mxu0 %v1284
        %1648 = vmatprep.subr.bf16.mxu0 %v1294
        %1649 = vmatpush1.bf16.msra.mxu0 %v1293
        %1650 = vmatprep.subr.bf16.mxu0 %v1303
        %1651 = vmatpush1.bf16.msra.mxu0 %v1302
        %1652 = vmatprep.subr.bf16.mxu0 %v1312
        %1653 = vmatpush1.bf16.msra.mxu0 %v1311
        %1654 = vmatprep.subr.bf16.mxu0 %v1321
        %1655 = vmatpush1.bf16.msra.mxu0 %v1320
        %1656 = vmatprep.subr.bf16.mxu0 %v1330
        %1657 = vmatpush1.bf16.msra.mxu0 %v1329
        %1658 = vmatprep.mubr.bf16.mxu0 %v271
        %1659 = vmatmul.mubr.bf16.gmra.mrb[0].mxu0 %v270
        %v1660 = vpop.f32.mrb[0].mxu0
        %v1661 = vadd.f32 0.0, %v1660
        %v1662 = vpop.f32.mrb[0].mxu0
        %v1663 = vadd.f32 0.0, %v1662
        %v1664 = vpop.f32.mrb[0].mxu0
        %v1665 = vadd.f32 0.0, %v1664
        %v1666 = vpop.f32.mrb[0].mxu0
        %v1667 = vadd.f32 0.0, %v1666
        %1668 = vmatprep.mubr.bf16.mxu0 %v274
        %1669 = vmatmul.mubr.bf16.gmra.mrb[0].mxu0 %v273
        %v1670 = vpop.f32.mrb[0].mxu0
        %v1671 = vadd.f32 0.0, %v1670
        %v1672 = vpop.f32.mrb[0].mxu0
        %v1673 = vadd.f32 0.0, %v1672
        %v1674 = vpop.f32.mrb[0].mxu0
        %v1675 = vadd.f32 0.0, %v1674
        %v1676 = vpop.f32.mrb[0].mxu0
        %v1677 = vadd.f32 0.0, %v1676
        %1678 = vmatprep.mubr.bf16.mxu0 %v277
        %1679 = vmatmul.mubr.bf16.gmra.mrb[0].mxu0 %v276
        %v1680 = vpop.f32.mrb[0].mxu0
        %v1681 = vadd.f32 0.0, %v1680
        %v1682 = vpop.f32.mrb[0].mxu0
        %v1683 = vadd.f32 0.0, %v1682
        %v1684 = vpop.f32.mrb[0].mxu0
        %v1685 = vadd.f32 0.0, %v1684
        %v1686 = vpop.f32.mrb[0].mxu0
        %v1687 = vadd.f32 0.0, %v1686
        %1688 = vmatprep.mubr.bf16.mxu0 %v280
        %1689 = vmatmul.mubr.bf16.gmra.mrb[0].mxu0 %v279
        %v1690 = vpop.f32.mrb[0].mxu0
        %v1691 = vadd.f32 0.0, %v1690
        %v1692 = vpop.f32.mrb[0].mxu0
        %v1693 = vadd.f32 0.0, %v1692
        %v1694 = vpop.f32.mrb[0].mxu0
        %v1695 = vadd.f32 0.0, %v1694
        %v1696 = vpop.f32.mrb[0].mxu0
        %v1697 = vadd.f32 0.0, %v1696
        %1698 = vdwg.mxu0
        %1699 = vmatprep.subr.bf16.mxu0 %v1339
        %1700 = vmatpush1.bf16.msra.mxu0 %v1338
        %1701 = vmatprep.subr.bf16.mxu0 %v1348
        %1702 = vmatpush1.bf16.msra.mxu0 %v1347
        %1703 = vmatprep.subr.bf16.mxu0 %v1357
        %1704 = vmatpush1.bf16.msra.mxu0 %v1356
        %1705 = vmatprep.subr.bf16.mxu0 %v1366
        %1706 = vmatpush1.bf16.msra.mxu0 %v1365
        %1707 = vmatprep.subr.bf16.mxu0 %v1375
        %1708 = vmatpush1.bf16.msra.mxu0 %v1374
        %1709 = vmatprep.subr.bf16.mxu0 %v1384
        %1710 = vmatpush1.bf16.msra.mxu0 %v1383
        %1711 = vmatprep.subr.bf16.mxu0 %v1393
        %1712 = vmatpush1.bf16.msra.mxu0 %v1392
        %1713 = vmatprep.subr.bf16.mxu0 %v1402
        %1714 = vmatpush1.bf16.msra.mxu0 %v1401
        %1715 = vmatprep.subr.bf16.mxu0 0
        %1716 = vmatpush1.bf16.msra.mxu0 0
        %1717 = vmatprep.subr.bf16.mxu0 0
        %1718 = vmatpush1.bf16.msra.mxu0 0
        %1719 = vmatprep.subr.bf16.mxu0 0
        %1720 = vmatpush1.bf16.msra.mxu0 0
        %1721 = vmatprep.subr.bf16.mxu0 0
        %1722 = vmatpush1.bf16.msra.mxu0 0
        %1723 = vmatprep.subr.bf16.mxu0 0
        %1724 = vmatpush1.bf16.msra.mxu0 0
        %1725 = vmatprep.subr.bf16.mxu0 0
        %1726 = vmatpush1.bf16.msra.mxu0 0
        %1727 = vmatprep.subr.bf16.mxu0 0
        %1728 = vmatpush1.bf16.msra.mxu0 0
        %1729 = vmatprep.subr.bf16.mxu0 0
        %1730 = vmatpush1.bf16.msra.mxu0 0
        %1731 = vmatprep.mubr.bf16.mxu0 0
        %1732 = vmatmul.mubr.bf16.gmra.mrb[0].mxu0 %v272
        %v1733 = vpop.f32.mrb[0].mxu0
        %v1734 = vadd.f32 %v1661, %v1733
        %v1735 = vpop.f32.mrb[0].mxu0
        %v1736 = vadd.f32 %v1663, %v1735
        %v1737 = vpop.f32.mrb[0].mxu0
        %v1738 = vadd.f32 %v1665, %v1737
        %v1739 = vpop.f32.mrb[0].mxu0
        %v1740 = vadd.f32 %v1667, %v1739
        %1741 = vmatprep.mubr.bf16.mxu0 0
        %1742 = vmatmul.mubr.bf16.gmra.mrb[0].mxu0 %v275
        %v1743 = vpop.f32.mrb[0].mxu0
        %v1744 = vadd.f32 %v1671, %v1743
        %v1745 = vpop.f32.mrb[0].mxu0
        %v1746 = vadd.f32 %v1673, %v1745
        %v1747 = vpop.f32.mrb[0].mxu0
        %v1748 = vadd.f32 %v1675, %v1747
        %v1749 = vpop.f32.mrb[0].mxu0
        %v1750 = vadd.f32 %v1677, %v1749
        %1751 = vmatprep.mubr.bf16.mxu0 0
        %1752 = vmatmul.mubr.bf16.gmra.mrb[0].mxu0 %v278
        %v1753 = vpop.f32.mrb[0].mxu0
        %v1754 = vadd.f32 %v1681, %v1753
        %v1755 = vpop.f32.mrb[0].mxu0
        %v1756 = vadd.f32 %v1683, %v1755
        %v1757 = vpop.f32.mrb[0].mxu0
        %v1758 = vadd.f32 %v1685, %v1757
        %v1759 = vpop.f32.mrb[0].mxu0
        %v1760 = vadd.f32 %v1687, %v1759
        %1761 = vmatprep.mubr.bf16.mxu0 0
        %1762 = vmatmul.mubr.bf16.gmra.mrb[0].mxu0 %v281
        %v1763 = vpop.f32.mrb[0].mxu0
        %v1764 = vadd.f32 %v1691, %v1763
        %v1765 = vpop.f32.mrb[0].mxu0
        %v1766 = vadd.f32 %v1693, %v1765
        %v1767 = vpop.f32.mrb[0].mxu0
        %v1768 = vadd.f32 %v1695, %v1767
        %v1769 = vpop.f32.mrb[0].mxu0
        %v1770 = vadd.f32 %v1697, %v1769
        %1771 = vdwg.mxu0
        %1772 = vmatprep.subr.bf16.mxu0 %v1197
        %1773 = vmatpush1.bf16.msra.mxu0 %v1196
        %1774 = vmatprep.subr.bf16.mxu0 %v1206
        %1775 = vmatpush1.bf16.msra.mxu0 %v1205
        %1776 = vmatprep.subr.bf16.mxu0 %v1215
        %1777 = vmatpush1.bf16.msra.mxu0 %v1214
        %1778 = vmatprep.subr.bf16.mxu0 %v1224
        %1779 = vmatpush1.bf16.msra.mxu0 %v1223
        %1780 = vmatprep.subr.bf16.mxu0 %v1233
        %1781 = vmatpush1.bf16.msra.mxu0 %v1232
        %1782 = vmatprep.subr.bf16.mxu0 %v1242
        %1783 = vmatpush1.bf16.msra.mxu0 %v1241
        %1784 = vmatprep.subr.bf16.mxu0 %v1251
        %1785 = vmatpush1.bf16.msra.mxu0 %v1250
        %1786 = vmatprep.subr.bf16.mxu0 %v1260
        %1787 = vmatpush1.bf16.msra.mxu0 %v1259
        %1788 = vmatprep.subr.bf16.mxu0 %v1269
        %1789 = vmatpush1.bf16.msra.mxu0 %v1268
        %1790 = vmatprep.subr.bf16.mxu0 %v1278
        %1791 = vmatpush1.bf16.msra.mxu0 %v1277
        %1792 = vmatprep.subr.bf16.mxu0 %v1287
        %1793 = vmatpush1.bf16.msra.mxu0 %v1286
        %1794 = vmatprep.subr.bf16.mxu0 %v1296
        %1795 = vmatpush1.bf16.msra.mxu0 %v1295
        %1796 = vmatprep.subr.bf16.mxu0 %v1305
        %1797 = vmatpush1.bf16.msra.mxu0 %v1304
        %1798 = vmatprep.subr.bf16.mxu0 %v1314
        %1799 = vmatpush1.bf16.msra.mxu0 %v1313
        %1800 = vmatprep.subr.bf16.mxu0 %v1323
        %1801 = vmatpush1.bf16.msra.mxu0 %v1322
        %1802 = vmatprep.subr.bf16.mxu0 %v1332
        %1803 = vmatpush1.bf16.msra.mxu0 %v1331
        %1804 = vmatprep.mubr.bf16.mxu0 %v271
        %1805 = vmatmul.mubr.bf16.gmra.mrb[0].mxu0 %v270
        %v1806 = vpop.f32.mrb[0].mxu0
        %v1807 = vadd.f32 0.0, %v1806
        %v1808 = vpop.f32.mrb[0].mxu0
        %v1809 = vadd.f32 0.0, %v1808
        %v1810 = vpop.f32.mrb[0].mxu0
        %v1811 = vadd.f32 0.0, %v1810
        %v1812 = vpop.f32.mrb[0].mxu0
        %v1813 = vadd.f32 0.0, %v1812
        %1814 = vmatprep.mubr.bf16.mxu0 %v274
        %1815 = vmatmul.mubr.bf16.gmra.mrb[0].mxu0 %v273
        %v1816 = vpop.f32.mrb[0].mxu0
        %v1817 = vadd.f32 0.0, %v1816
        %v1818 = vpop.f32.mrb[0].mxu0
        %v1819 = vadd.f32 0.0, %v1818
        %v1820 = vpop.f32.mrb[0].mxu0
        %v1821 = vadd.f32 0.0, %v1820
        %v1822 = vpop.f32.mrb[0].mxu0
        %v1823 = vadd.f32 0.0, %v1822
        %1824 = vmatprep.mubr.bf16.mxu0 %v277
        %1825 = vmatmul.mubr.bf16.gmra.mrb[0].mxu0 %v276
        %v1826 = vpop.f32.mrb[0].mxu0
        %v1827 = vadd.f32 0.0, %v1826
        %v1828 = vpop.f32.mrb[0].mxu0
        %v1829 = vadd.f32 0.0, %v1828
        %v1830 = vpop.f32.mrb[0].mxu0
        %v1831 = vadd.f32 0.0, %v1830
        %v1832 = vpop.f32.mrb[0].mxu0
        %v1833 = vadd.f32 0.0, %v1832
        %1834 = vmatprep.mubr.bf16.mxu0 %v280
        %1835 = vmatmul.mubr.bf16.gmra.mrb[0].mxu0 %v279
        %v1836 = vpop.f32.mrb[0].mxu0
        %v1837 = vadd.f32 0.0, %v1836
        %v1838 = vpop.f32.mrb[0].mxu0
        %v1839 = vadd.f32 0.0, %v1838
        %v1840 = vpop.f32.mrb[0].mxu0
        %v1841 = vadd.f32 0.0, %v1840
        %v1842 = vpop.f32.mrb[0].mxu0
        %v1843 = vadd.f32 0.0, %v1842
        %1844 = vdwg.mxu0
        %1845 = vmatprep.subr.bf16.mxu0 %v1341
        %1846 = vmatpush1.bf16.msra.mxu0 %v1340
        %1847 = vmatprep.subr.bf16.mxu0 %v1350
        %1848 = vmatpush1.bf16.msra.mxu0 %v1349
        %1849 = vmatprep.subr.bf16.mxu0 %v1359
        %1850 = vmatpush1.bf16.msra.mxu0 %v1358
        %1851 = vmatprep.subr.bf16.mxu0 %v1368
        %1852 = vmatpush1.bf16.msra.mxu0 %v1367
        %1853 = vmatprep.subr.bf16.mxu0 %v1377
        %1854 = vmatpush1.bf16.msra.mxu0 %v1376
        %1855 = vmatprep.subr.bf16.mxu0 %v1386
        %1856 = vmatpush1.bf16.msra.mxu0 %v1385
        %1857 = vmatprep.subr.bf16.mxu0 %v1395
        %1858 = vmatpush1.bf16.msra.mxu0 %v1394
        %1859 = vmatprep.subr.bf16.mxu0 %v1404
        %1860 = vmatpush1.bf16.msra.mxu0 %v1403
        %1861 = vmatprep.subr.bf16.mxu0 0
        %1862 = vmatpush1.bf16.msra.mxu0 0
        %1863 = vmatprep.subr.bf16.mxu0 0
        %1864 = vmatpush1.bf16.msra.mxu0 0
        %1865 = vmatprep.subr.bf16.mxu0 0
        %1866 = vmatpush1.bf16.msra.mxu0 0
        %1867 = vmatprep.subr.bf16.mxu0 0
        %1868 = vmatpush1.bf16.msra.mxu0 0
        %1869 = vmatprep.subr.bf16.mxu0 0
        %1870 = vmatpush1.bf16.msra.mxu0 0
        %1871 = vmatprep.subr.bf16.mxu0 0
        %1872 = vmatpush1.bf16.msra.mxu0 0
        %1873 = vmatprep.subr.bf16.mxu0 0
        %1874 = vmatpush1.bf16.msra.mxu0 0
        %1875 = vmatprep.subr.bf16.mxu0 0
        %1876 = vmatpush1.bf16.msra.mxu0 0
        %1877 = vmatprep.mubr.bf16.mxu0 0
        %1878 = vmatmul.mubr.bf16.gmra.mrb[0].mxu0 %v272
        %v1879 = vpop.f32.mrb[0].mxu0
        %v1880 = vadd.f32 %v1807, %v1879
        %v1881 = vpop.f32.mrb[0].mxu0
        %v1882 = vadd.f32 %v1809, %v1881
        %v1883 = vpop.f32.mrb[0].mxu0
        %v1884 = vadd.f32 %v1811, %v1883
        %v1885 = vpop.f32.mrb[0].mxu0
        %v1886 = vadd.f32 %v1813, %v1885
        %1887 = vmatprep.mubr.bf16.mxu0 0
        %1888 = vmatmul.mubr.bf16.gmra.mrb[0].mxu0 %v275
        %v1889 = vpop.f32.mrb[0].mxu0
        %v1890 = vadd.f32 %v1817, %v1889
        %v1891 = vpop.f32.mrb[0].mxu0
        %v1892 = vadd.f32 %v1819, %v1891
        %v1893 = vpop.f32.mrb[0].mxu0
        %v1894 = vadd.f32 %v1821, %v1893
        %v1895 = vpop.f32.mrb[0].mxu0
        %v1896 = vadd.f32 %v1823, %v1895
        %1897 = vmatprep.mubr.bf16.mxu0 0
        %1898 = vmatmul.mubr.bf16.gmra.mrb[0].mxu0 %v278
        %v1899 = vpop.f32.mrb[0].mxu0
        %v1900 = vadd.f32 %v1827, %v1899
        %v1901 = vpop.f32.mrb[0].mxu0
        %v1902 = vadd.f32 %v1829, %v1901
        %v1903 = vpop.f32.mrb[0].mxu0
        %v1904 = vadd.f32 %v1831, %v1903
        %v1905 = vpop.f32.mrb[0].mxu0
        %v1906 = vadd.f32 %v1833, %v1905
        %1907 = vmatprep.mubr.bf16.mxu0 0
        %1908 = vmatmul.mubr.bf16.gmra.mrb[0].mxu0 %v281
        %v1909 = vpop.f32.mrb[0].mxu0
        %v1910 = vadd.f32 %v1837, %v1909
        %v1911 = vpop.f32.mrb[0].mxu0
        %v1912 = vadd.f32 %v1839, %v1911
        %v1913 = vpop.f32.mrb[0].mxu0
        %v1914 = vadd.f32 %v1841, %v1913
        %v1915 = vpop.f32.mrb[0].mxu0
        %v1916 = vadd.f32 %v1843, %v1915
        %1917 = vdwg.mxu0
        %1918 = vmatprep.subr.bf16.mxu0 %v1199
        %1919 = vmatpush1.bf16.msra.mxu0 %v1198
        %1920 = vmatprep.subr.bf16.mxu0 %v1208
        %1921 = vmatpush1.bf16.msra.mxu0 %v1207
        %1922 = vmatprep.subr.bf16.mxu0 %v1217
        %1923 = vmatpush1.bf16.msra.mxu0 %v1216
        %1924 = vmatprep.subr.bf16.mxu0 %v1226
        %1925 = vmatpush1.bf16.msra.mxu0 %v1225
        %1926 = vmatprep.subr.bf16.mxu0 %v1235
        %1927 = vmatpush1.bf16.msra.mxu0 %v1234
        %1928 = vmatprep.subr.bf16.mxu0 %v1244
        %1929 = vmatpush1.bf16.msra.mxu0 %v1243
        %1930 = vmatprep.subr.bf16.mxu0 %v1253
        %1931 = vmatpush1.bf16.msra.mxu0 %v1252
        %1932 = vmatprep.subr.bf16.mxu0 %v1262
        %1933 = vmatpush1.bf16.msra.mxu0 %v1261
        %1934 = vmatprep.subr.bf16.mxu0 %v1271
        %1935 = vmatpush1.bf16.msra.mxu0 %v1270
        %1936 = vmatprep.subr.bf16.mxu0 %v1280
        %1937 = vmatpush1.bf16.msra.mxu0 %v1279
        %1938 = vmatprep.subr.bf16.mxu0 %v1289
        %1939 = vmatpush1.bf16.msra.mxu0 %v1288
        %1940 = vmatprep.subr.bf16.mxu0 %v1298
        %1941 = vmatpush1.bf16.msra.mxu0 %v1297
        %1942 = vmatprep.subr.bf16.mxu0 %v1307
        %1943 = vmatpush1.bf16.msra.mxu0 %v1306
        %1944 = vmatprep.subr.bf16.mxu0 %v1316
        %1945 = vmatpush1.bf16.msra.mxu0 %v1315
        %1946 = vmatprep.subr.bf16.mxu0 %v1325
        %1947 = vmatpush1.bf16.msra.mxu0 %v1324
        %1948 = vmatprep.subr.bf16.mxu0 %v1334
        %1949 = vmatpush1.bf16.msra.mxu0 %v1333
        %1950 = vmatprep.mubr.bf16.mxu0 %v271
        %1951 = vmatmul.mubr.bf16.gmra.mrb[0].mxu0 %v270
        %v1952 = vpop.f32.mrb[0].mxu0
        %v1953 = vadd.f32 0.0, %v1952
        %v1954 = vpop.f32.mrb[0].mxu0
        %v1955 = vadd.f32 0.0, %v1954
        %v1956 = vpop.f32.mrb[0].mxu0
        %v1957 = vadd.f32 0.0, %v1956
        %v1958 = vpop.f32.mrb[0].mxu0
        %v1959 = vadd.f32 0.0, %v1958
        %1960 = vmatprep.mubr.bf16.mxu0 %v274
        %1961 = vmatmul.mubr.bf16.gmra.mrb[0].mxu0 %v273
        %v1962 = vpop.f32.mrb[0].mxu0
        %v1963 = vadd.f32 0.0, %v1962
        %v1964 = vpop.f32.mrb[0].mxu0
        %v1965 = vadd.f32 0.0, %v1964
        %v1966 = vpop.f32.mrb[0].mxu0
        %v1967 = vadd.f32 0.0, %v1966
        %v1968 = vpop.f32.mrb[0].mxu0
        %v1969 = vadd.f32 0.0, %v1968
        %1970 = vmatprep.mubr.bf16.mxu0 %v277
        %1971 = vmatmul.mubr.bf16.gmra.mrb[0].mxu0 %v276
        %v1972 = vpop.f32.mrb[0].mxu0
        %v1973 = vadd.f32 0.0, %v1972
        %v1974 = vpop.f32.mrb[0].mxu0
        %v1975 = vadd.f32 0.0, %v1974
        %v1976 = vpop.f32.mrb[0].mxu0
        %v1977 = vadd.f32 0.0, %v1976
        %v1978 = vpop.f32.mrb[0].mxu0
        %v1979 = vadd.f32 0.0, %v1978
        %1980 = vmatprep.mubr.bf16.mxu0 %v280
        %1981 = vmatmul.mubr.bf16.gmra.mrb[0].mxu0 %v279
        %v1982 = vpop.f32.mrb[0].mxu0
        %v1983 = vadd.f32 0.0, %v1982
        %v1984 = vpop.f32.mrb[0].mxu0
        %v1985 = vadd.f32 0.0, %v1984
        %v1986 = vpop.f32.mrb[0].mxu0
        %v1987 = vadd.f32 0.0, %v1986
        %v1988 = vpop.f32.mrb[0].mxu0
        %v1989 = vadd.f32 0.0, %v1988
        %1990 = vdwg.mxu0
        %1991 = vmatprep.subr.bf16.mxu0 %v1343
        %1992 = vmatpush1.bf16.msra.mxu0 %v1342
        %1993 = vmatprep.subr.bf16.mxu0 %v1352
        %1994 = vmatpush1.bf16.msra.mxu0 %v1351
        %1995 = vmatprep.subr.bf16.mxu0 %v1361
        %1996 = vmatpush1.bf16.msra.mxu0 %v1360
        %1997 = vmatprep.subr.bf16.mxu0 %v1370
        %1998 = vmatpush1.bf16.msra.mxu0 %v1369
        %1999 = vmatprep.subr.bf16.mxu0 %v1379
        %2000 = vmatpush1.bf16.msra.mxu0 %v1378
        %2001 = vmatprep.subr.bf16.mxu0 %v1388
        %2002 = vmatpush1.bf16.msra.mxu0 %v1387
        %2003 = vmatprep.subr.bf16.mxu0 %v1397
        %2004 = vmatpush1.bf16.msra.mxu0 %v1396
        %2005 = vmatprep.subr.bf16.mxu0 %v1406
        %2006 = vmatpush1.bf16.msra.mxu0 %v1405
        %2007 = vmatprep.subr.bf16.mxu0 0
        %2008 = vmatpush1.bf16.msra.mxu0 0
        %2009 = vmatprep.subr.bf16.mxu0 0
        %2010 = vmatpush1.bf16.msra.mxu0 0
        %2011 = vmatprep.subr.bf16.mxu0 0
        %2012 = vmatpush1.bf16.msra.mxu0 0
        %2013 = vmatprep.subr.bf16.mxu0 0
        %2014 = vmatpush1.bf16.msra.mxu0 0
        %2015 = vmatprep.subr.bf16.mxu0 0
        %2016 = vmatpush1.bf16.msra.mxu0 0
        %2017 = vmatprep.subr.bf16.mxu0 0
        %2018 = vmatpush1.bf16.msra.mxu0 0
        %2019 = vmatprep.subr.bf16.mxu0 0
        %2020 = vmatpush1.bf16.msra.mxu0 0
        %2021 = vmatprep.subr.bf16.mxu0 0
        %2022 = vmatpush1.bf16.msra.mxu0 0
        %2023 = vmatprep.mubr.bf16.mxu0 0
        %2024 = vmatmul.mubr.bf16.gmra.mrb[0].mxu0 %v272
        %v2025 = vpop.f32.mrb[0].mxu0
        %v2026 = vadd.f32 %v1953, %v2025
        %v2027 = vpop.f32.mrb[0].mxu0
        %v2028 = vadd.f32 %v1955, %v2027
        %v2029 = vpop.f32.mrb[0].mxu0
        %v2030 = vadd.f32 %v1957, %v2029
        %v2031 = vpop.f32.mrb[0].mxu0
        %v2032 = vadd.f32 %v1959, %v2031
        %2033 = vmatprep.mubr.bf16.mxu0 0
        %2034 = vmatmul.mubr.bf16.gmra.mrb[0].mxu0 %v275
        %v2035 = vpop.f32.mrb[0].mxu0
        %v2036 = vadd.f32 %v1963, %v2035
        %v2037 = vpop.f32.mrb[0].mxu0
        %v2038 = vadd.f32 %v1965, %v2037
        %v2039 = vpop.f32.mrb[0].mxu0
        %v2040 = vadd.f32 %v1967, %v2039
        %v2041 = vpop.f32.mrb[0].mxu0
        %v2042 = vadd.f32 %v1969, %v2041
        %2043 = vmatprep.mubr.bf16.mxu0 0
        %2044 = vmatmul.mubr.bf16.gmra.mrb[0].mxu0 %v278
        %v2045 = vpop.f32.mrb[0].mxu0
        %v2046 = vadd.f32 %v1973, %v2045
        %v2047 = vpop.f32.mrb[0].mxu0
        %v2048 = vadd.f32 %v1975, %v2047
        %v2049 = vpop.f32.mrb[0].mxu0
        %v2050 = vadd.f32 %v1977, %v2049
        %v2051 = vpop.f32.mrb[0].mxu0
        %v2052 = vadd.f32 %v1979, %v2051
        %2053 = vmatprep.mubr.bf16.mxu0 0
        %2054 = vmatmul.mubr.bf16.gmra.mrb[0].mxu0 %v281
        %v2055 = vpop.f32.mrb[0].mxu0
        %v2056 = vadd.f32 %v1983, %v2055
        %v2057 = vpop.f32.mrb[0].mxu0
        %v2058 = vadd.f32 %v1985, %v2057
        %v2059 = vpop.f32.mrb[0].mxu0
        %v2060 = vadd.f32 %v1987, %v2059
        %v2061 = vpop.f32.mrb[0].mxu0
        %v2062 = vadd.f32 %v1989, %v2061
        %2063 = vdwg.mxu0
        %2064 = vmatprep.subr.bf16.mxu0 %v1201
        %2065 = vmatpush1.bf16.msra.mxu0 %v1200
        %2066 = vmatprep.subr.bf16.mxu0 %v1210
        %2067 = vmatpush1.bf16.msra.mxu0 %v1209
        %2068 = vmatprep.subr.bf16.mxu0 %v1219
        %2069 = vmatpush1.bf16.msra.mxu0 %v1218
        %2070 = vmatprep.subr.bf16.mxu0 %v1228
        %2071 = vmatpush1.bf16.msra.mxu0 %v1227
        %2072 = vmatprep.subr.bf16.mxu0 %v1237
        %2073 = vmatpush1.bf16.msra.mxu0 %v1236
        %2074 = vmatprep.subr.bf16.mxu0 %v1246
        %2075 = vmatpush1.bf16.msra.mxu0 %v1245
        %2076 = vmatprep.subr.bf16.mxu0 %v1255
        %2077 = vmatpush1.bf16.msra.mxu0 %v1254
        %2078 = vmatprep.subr.bf16.mxu0 %v1264
        %2079 = vmatpush1.bf16.msra.mxu0 %v1263
        %2080 = vmatprep.subr.bf16.mxu0 %v1273
        %2081 = vmatpush1.bf16.msra.mxu0 %v1272
        %2082 = vmatprep.subr.bf16.mxu0 %v1282
        %2083 = vmatpush1.bf16.msra.mxu0 %v1281
        %2084 = vmatprep.subr.bf16.mxu0 %v1291
        %2085 = vmatpush1.bf16.msra.mxu0 %v1290
        %2086 = vmatprep.subr.bf16.mxu0 %v1300
        %2087 = vmatpush1.bf16.msra.mxu0 %v1299
        %2088 = vmatprep.subr.bf16.mxu0 %v1309
        %2089 = vmatpush1.bf16.msra.mxu0 %v1308
        %2090 = vmatprep.subr.bf16.mxu0 %v1318
        %2091 = vmatpush1.bf16.msra.mxu0 %v1317
        %2092 = vmatprep.subr.bf16.mxu0 %v1327
        %2093 = vmatpush1.bf16.msra.mxu0 %v1326
        %2094 = vmatprep.subr.bf16.mxu0 %v1336
        %2095 = vmatpush1.bf16.msra.mxu0 %v1335
        %2096 = vmatprep.mubr.bf16.mxu0 %v271
        %2097 = vmatmul.mubr.bf16.gmra.mrb[0].mxu0 %v270
        %v2098 = vpop.f32.mrb[0].mxu0
        %v2099 = vadd.f32 0.0, %v2098
        %v2100 = vpop.f32.mrb[0].mxu0
        %v2101 = vadd.f32 0.0, %v2100
        %v2102 = vpop.f32.mrb[0].mxu0
        %v2103 = vadd.f32 0.0, %v2102
        %v2104 = vpop.f32.mrb[0].mxu0
        %v2105 = vadd.f32 0.0, %v2104
        %2106 = vmatprep.mubr.bf16.mxu0 %v274
        %2107 = vmatmul.mubr.bf16.gmra.mrb[0].mxu0 %v273
        %v2108 = vpop.f32.mrb[0].mxu0
        %v2109 = vadd.f32 0.0, %v2108
        %v2110 = vpop.f32.mrb[0].mxu0
        %v2111 = vadd.f32 0.0, %v2110
        %v2112 = vpop.f32.mrb[0].mxu0
        %v2113 = vadd.f32 0.0, %v2112
        %v2114 = vpop.f32.mrb[0].mxu0
        %v2115 = vadd.f32 0.0, %v2114
        %2116 = vmatprep.mubr.bf16.mxu0 %v277
        %2117 = vmatmul.mubr.bf16.gmra.mrb[0].mxu0 %v276
        %v2118 = vpop.f32.mrb[0].mxu0
        %v2119 = vadd.f32 0.0, %v2118
        %v2120 = vpop.f32.mrb[0].mxu0
        %v2121 = vadd.f32 0.0, %v2120
        %v2122 = vpop.f32.mrb[0].mxu0
        %v2123 = vadd.f32 0.0, %v2122
        %v2124 = vpop.f32.mrb[0].mxu0
        %v2125 = vadd.f32 0.0, %v2124
        %2126 = vmatprep.mubr.bf16.mxu0 %v280
        %2127 = vmatmul.mubr.bf16.gmra.mrb[0].mxu0 %v279
        %v2128 = vpop.f32.mrb[0].mxu0
        %v2129 = vadd.f32 0.0, %v2128
        %v2130 = vpop.f32.mrb[0].mxu0
        %v2131 = vadd.f32 0.0, %v2130
        %v2132 = vpop.f32.mrb[0].mxu0
        %v2133 = vadd.f32 0.0, %v2132
        %v2134 = vpop.f32.mrb[0].mxu0
        %v2135 = vadd.f32 0.0, %v2134
        %2136 = vdwg.mxu0
        %2137 = vmatprep.subr.bf16.mxu0 %v1345
        %2138 = vmatpush1.bf16.msra.mxu0 %v1344
        %2139 = vmatprep.subr.bf16.mxu0 %v1354
        %2140 = vmatpush1.bf16.msra.mxu0 %v1353
        %2141 = vmatprep.subr.bf16.mxu0 %v1363
        %2142 = vmatpush1.bf16.msra.mxu0 %v1362
        %2143 = vmatprep.subr.bf16.mxu0 %v1372
        %2144 = vmatpush1.bf16.msra.mxu0 %v1371
        %2145 = vmatprep.subr.bf16.mxu0 %v1381
        %2146 = vmatpush1.bf16.msra.mxu0 %v1380
        %2147 = vmatprep.subr.bf16.mxu0 %v1390
        %2148 = vmatpush1.bf16.msra.mxu0 %v1389
        %2149 = vmatprep.subr.bf16.mxu0 %v1399
        %2150 = vmatpush1.bf16.msra.mxu0 %v1398
        %2151 = vmatprep.subr.bf16.mxu0 %v1408
        %2152 = vmatpush1.bf16.msra.mxu0 %v1407
        %2153 = vmatprep.subr.bf16.mxu0 0
        %2154 = vmatpush1.bf16.msra.mxu0 0
        %2155 = vmatprep.subr.bf16.mxu0 0
        %2156 = vmatpush1.bf16.msra.mxu0 0
        %2157 = vmatprep.subr.bf16.mxu0 0
        %2158 = vmatpush1.bf16.msra.mxu0 0
        %2159 = vmatprep.subr.bf16.mxu0 0
        %2160 = vmatpush1.bf16.msra.mxu0 0
        %2161 = vmatprep.subr.bf16.mxu0 0
        %2162 = vmatpush1.bf16.msra.mxu0 0
        %2163 = vmatprep.subr.bf16.mxu0 0
        %2164 = vmatpush1.bf16.msra.mxu0 0
        %2165 = vmatprep.subr.bf16.mxu0 0
        %2166 = vmatpush1.bf16.msra.mxu0 0
        %2167 = vmatprep.subr.bf16.mxu0 0
        %2168 = vmatpush1.bf16.msra.mxu0 0
        %2169 = vmatprep.mubr.bf16.mxu0 0
        %2170 = vmatmul.mubr.bf16.gmra.mrb[0].mxu0 %v272
        %v2171 = vpop.f32.mrb[0].mxu0
        %v2172 = vadd.f32 %v2099, %v2171
        %v2173 = vpop.f32.mrb[0].mxu0
        %v2174 = vadd.f32 %v2101, %v2173
        %v2175 = vpop.f32.mrb[0].mxu0
        %v2176 = vadd.f32 %v2103, %v2175
        %v2177 = vpop.f32.mrb[0].mxu0
        %v2178 = vadd.f32 %v2105, %v2177
        %2179 = vmatprep.mubr.bf16.mxu0 0
        %2180 = vmatmul.mubr.bf16.gmra.mrb[0].mxu0 %v275
        %v2181 = vpop.f32.mrb[0].mxu0
        %v2182 = vadd.f32 %v2109, %v2181
        %v2183 = vpop.f32.mrb[0].mxu0
        %v2184 = vadd.f32 %v2111, %v2183
        %v2185 = vpop.f32.mrb[0].mxu0
        %v2186 = vadd.f32 %v2113, %v2185
        %v2187 = vpop.f32.mrb[0].mxu0
        %v2188 = vadd.f32 %v2115, %v2187
        %2189 = vmatprep.mubr.bf16.mxu0 0
        %2190 = vmatmul.mubr.bf16.gmra.mrb[0].mxu0 %v278
        %v2191 = vpop.f32.mrb[0].mxu0
        %v2192 = vadd.f32 %v2119, %v2191
        %v2193 = vpop.f32.mrb[0].mxu0
        %v2194 = vadd.f32 %v2121, %v2193
        %v2195 = vpop.f32.mrb[0].mxu0
        %v2196 = vadd.f32 %v2123, %v2195
        %v2197 = vpop.f32.mrb[0].mxu0
        %v2198 = vadd.f32 %v2125, %v2197
        %2199 = vmatprep.mubr.bf16.mxu0 0
        %2200 = vmatmul.mubr.bf16.gmra.mrb[0].mxu0 %v281
        %v2201 = vpop.f32.mrb[0].mxu0
        %v2202 = vadd.f32 %v2129, %v2201
        %v2203 = vpop.f32.mrb[0].mxu0
        %v2204 = vadd.f32 %v2131, %v2203
        %v2205 = vpop.f32.mrb[0].mxu0
        %v2206 = vadd.f32 %v2133, %v2205
        %v2207 = vpop.f32.mrb[0].mxu0
        %v2208 = vadd.f32 %v2135, %v2207
        %2209 = vdwg.mxu0
        %2210 = vmatprep.subr.bf16.mxu0 0
        %2211 = vmatpush1.bf16.msra.mxu0 %v1202
        %2212 = vmatprep.subr.bf16.mxu0 0
        %2213 = vmatpush1.bf16.msra.mxu0 %v1211
        %2214 = vmatprep.subr.bf16.mxu0 0
        %2215 = vmatpush1.bf16.msra.mxu0 %v1220
        %2216 = vmatprep.subr.bf16.mxu0 0
        %2217 = vmatpush1.bf16.msra.mxu0 %v1229
        %2218 = vmatprep.subr.bf16.mxu0 0
        %2219 = vmatpush1.bf16.msra.mxu0 %v1238
        %2220 = vmatprep.subr.bf16.mxu0 0
        %2221 = vmatpush1.bf16.msra.mxu0 %v1247
        %2222 = vmatprep.subr.bf16.mxu0 0
        %2223 = vmatpush1.bf16.msra.mxu0 %v1256
        %2224 = vmatprep.subr.bf16.mxu0 0
        %2225 = vmatpush1.bf16.msra.mxu0 %v1265
        %2226 = vmatprep.subr.bf16.mxu0 0
        %2227 = vmatpush1.bf16.msra.mxu0 %v1274
        %2228 = vmatprep.subr.bf16.mxu0 0
        %2229 = vmatpush1.bf16.msra.mxu0 %v1283
        %2230 = vmatprep.subr.bf16.mxu0 0
        %2231 = vmatpush1.bf16.msra.mxu0 %v1292
        %2232 = vmatprep.subr.bf16.mxu0 0
        %2233 = vmatpush1.bf16.msra.mxu0 %v1301
        %2234 = vmatprep.subr.bf16.mxu0 0
        %2235 = vmatpush1.bf16.msra.mxu0 %v1310
        %2236 = vmatprep.subr.bf16.mxu0 0
        %2237 = vmatpush1.bf16.msra.mxu0 %v1319
        %2238 = vmatprep.subr.bf16.mxu0 0
        %2239 = vmatpush1.bf16.msra.mxu0 %v1328
        %2240 = vmatprep.subr.bf16.mxu0 0
        %2241 = vmatpush1.bf16.msra.mxu0 %v1337
        %2242 = vmatprep.mubr.bf16.mxu0 %v271
        %2243 = vmatmul.mubr.bf16.gmra.mrb[0].mxu0 %v270
        %v2244 = vpop.f32.mrb[0].mxu0
        %v2245 = vadd.f32 0.0, %v2244
        %v2246 = vpop.f32.mrb[0].mxu0
        %v2247 = vpop.f32.mrb[0].mxu0
        %v2248 = vadd.f32 0.0, %v2247
        %v2249 = vpop.f32.mrb[0].mxu0
        %2250 = vmatprep.mubr.bf16.mxu0 %v274
        %2251 = vmatmul.mubr.bf16.gmra.mrb[0].mxu0 %v273
        %v2252 = vpop.f32.mrb[0].mxu0
        %v2253 = vadd.f32 0.0, %v2252
        %v2254 = vpop.f32.mrb[0].mxu0
        %v2255 = vpop.f32.mrb[0].mxu0
        %v2256 = vadd.f32 0.0, %v2255
        %v2257 = vpop.f32.mrb[0].mxu0
        %2258 = vmatprep.mubr.bf16.mxu0 %v277
        %2259 = vmatmul.mubr.bf16.gmra.mrb[0].mxu0 %v276
        %v2260 = vpop.f32.mrb[0].mxu0
        %v2261 = vadd.f32 0.0, %v2260
        %v2262 = vpop.f32.mrb[0].mxu0
        %v2263 = vpop.f32.mrb[0].mxu0
        %v2264 = vadd.f32 0.0, %v2263
        %v2265 = vpop.f32.mrb[0].mxu0
        %2266 = vmatprep.mubr.bf16.mxu0 %v280
        %2267 = vmatmul.mubr.bf16.gmra.mrb[0].mxu0 %v279
        %v2268 = vpop.f32.mrb[0].mxu0
        %v2269 = vadd.f32 0.0, %v2268
        %v2270 = vpop.f32.mrb[0].mxu0
        %v2271 = vpop.f32.mrb[0].mxu0
        %v2272 = vadd.f32 0.0, %v2271
        %v2273 = vpop.f32.mrb[0].mxu0
        %2274 = vdwg.mxu0
        %2275 = vmatprep.subr.bf16.mxu0 0
        %2276 = vmatpush1.bf16.msra.mxu0 %v1346
        %2277 = vmatprep.subr.bf16.mxu0 0
        %2278 = vmatpush1.bf16.msra.mxu0 %v1355
        %2279 = vmatprep.subr.bf16.mxu0 0
        %2280 = vmatpush1.bf16.msra.mxu0 %v1364
        %2281 = vmatprep.subr.bf16.mxu0 0
        %2282 = vmatpush1.bf16.msra.mxu0 %v1373
        %2283 = vmatprep.subr.bf16.mxu0 0
        %2284 = vmatpush1.bf16.msra.mxu0 %v1382
        %2285 = vmatprep.subr.bf16.mxu0 0
        %2286 = vmatpush1.bf16.msra.mxu0 %v1391
        %2287 = vmatprep.subr.bf16.mxu0 0
        %2288 = vmatpush1.bf16.msra.mxu0 %v1400
        %2289 = vmatprep.subr.bf16.mxu0 0
        %2290 = vmatpush1.bf16.msra.mxu0 %v1409
        %2291 = vmatprep.subr.bf16.mxu0 0
        %2292 = vmatpush1.bf16.msra.mxu0 0
        %2293 = vmatprep.subr.bf16.mxu0 0
        %2294 = vmatpush1.bf16.msra.mxu0 0
        %2295 = vmatprep.subr.bf16.mxu0 0
        %2296 = vmatpush1.bf16.msra.mxu0 0
        %2297 = vmatprep.subr.bf16.mxu0 0
        %2298 = vmatpush1.bf16.msra.mxu0 0
        %2299 = vmatprep.subr.bf16.mxu0 0
        %2300 = vmatpush1.bf16.msra.mxu0 0
        %2301 = vmatprep.subr.bf16.mxu0 0
        %2302 = vmatpush1.bf16.msra.mxu0 0
        %2303 = vmatprep.subr.bf16.mxu0 0
        %2304 = vmatpush1.bf16.msra.mxu0 0
        %2305 = vmatprep.subr.bf16.mxu0 0
        %2306 = vmatpush1.bf16.msra.mxu0 0
        %2307 = vmatprep.mubr.bf16.mxu0 0
        %2308 = vmatmul.mubr.bf16.gmra.mrb[0].mxu0 %v272
        %v2309 = vpop.f32.mrb[0].mxu0
        %v2310 = vadd.f32 %v2245, %v2309
        %v2311 = vpop.f32.mrb[0].mxu0
        %v2312 = vpop.f32.mrb[0].mxu0
        %v2313 = vadd.f32 %v2248, %v2312
        %v2314 = vpop.f32.mrb[0].mxu0
        %2315 = vmatprep.mubr.bf16.mxu0 0
        %2316 = vmatmul.mubr.bf16.gmra.mrb[0].mxu0 %v275
        %v2317 = vpop.f32.mrb[0].mxu0
        %v2318 = vadd.f32 %v2253, %v2317
        %v2319 = vpop.f32.mrb[0].mxu0
        %v2320 = vpop.f32.mrb[0].mxu0
        %v2321 = vadd.f32 %v2256, %v2320
        %v2322 = vpop.f32.mrb[0].mxu0
        %2323 = vmatprep.mubr.bf16.mxu0 0
        %2324 = vmatmul.mubr.bf16.gmra.mrb[0].mxu0 %v278
        %v2325 = vpop.f32.mrb[0].mxu0
        %v2326 = vadd.f32 %v2261, %v2325
        %v2327 = vpop.f32.mrb[0].mxu0
        %v2328 = vpop.f32.mrb[0].mxu0
        %v2329 = vadd.f32 %v2264, %v2328
        %v2330 = vpop.f32.mrb[0].mxu0
        %2331 = vmatprep.mubr.bf16.mxu0 0
        %2332 = vmatmul.mubr.bf16.gmra.mrb[0].mxu0 %v281
        %v2333 = vpop.f32.mrb[0].mxu0
        %v2334 = vadd.f32 %v2269, %v2333
        %v2335 = vpop.f32.mrb[0].mxu0
        %v2336 = vpop.f32.mrb[0].mxu0
        %v2337 = vadd.f32 %v2272, %v2336
        %v2338 = vpop.f32.mrb[0].mxu0
        %2339 = vdwg.mxu0
        %v2340 = vpack.c.bf16 %v1738, %v1734
        %v2341 = vpack.c.bf16 %v1740, %v1736
        %v2342 = vpack.c.bf16 %v1884, %v1880
        %v2343 = vpack.c.bf16 %v1886, %v1882
        %v2344 = vpack.c.bf16 %v2030, %v2026
        %v2345 = vpack.c.bf16 %v2032, %v2028
        %v2346 = vpack.c.bf16 %v2176, %v2172
        %v2347 = vpack.c.bf16 %v2178, %v2174
        %v2348 = vpack.c.bf16 %v2313, %v2310
        %v2349 = vpack.c.bf16 %v1748, %v1744
        %v2350 = vpack.c.bf16 %v1750, %v1746
        %v2351 = vpack.c.bf16 %v1894, %v1890
        %v2352 = vpack.c.bf16 %v1896, %v1892
        %v2353 = vpack.c.bf16 %v2040, %v2036
        %v2354 = vpack.c.bf16 %v2042, %v2038
        %v2355 = vpack.c.bf16 %v2186, %v2182
        %v2356 = vpack.c.bf16 %v2188, %v2184
        %v2357 = vpack.c.bf16 %v2321, %v2318
        %v2358 = vpack.c.bf16 %v1758, %v1754
        %v2359 = vpack.c.bf16 %v1760, %v1756
        %v2360 = vpack.c.bf16 %v1904, %v1900
        %v2361 = vpack.c.bf16 %v1906, %v1902
        %v2362 = vpack.c.bf16 %v2050, %v2046
        %v2363 = vpack.c.bf16 %v2052, %v2048
        %v2364 = vpack.c.bf16 %v2196, %v2192
        %v2365 = vpack.c.bf16 %v2198, %v2194
        %v2366 = vpack.c.bf16 %v2329, %v2326
        %v2367 = vpack.c.bf16 %v1768, %v1764
        %v2368 = vpack.c.bf16 %v1770, %v1766
        %v2369 = vpack.c.bf16 %v1914, %v1910
        %v2370 = vpack.c.bf16 %v1916, %v1912
        %v2371 = vpack.c.bf16 %v2060, %v2056
        %v2372 = vpack.c.bf16 %v2062, %v2058
        %v2373 = vpack.c.bf16 %v2206, %v2202
        %v2374 = vpack.c.bf16 %v2208, %v2204
        %v2375 = vpack.c.bf16 %v2337, %v2334
        %v2376 = vlaneseq
        %v2377 = vshrl.u32 %v2376, 7
        %v2378 = vadd.s32 %v2377, 8
        %v2379 = vadd.s32 %v2377, 16
        %v2380 = vadd.s32 %v2377, 24
        %v2381 = vadd.s32 %v2377, 32
        %v2382 = vadd.s32 %v2377, 40
        %v2383 = vadd.s32 %v2377, 48
        %v2384 = vadd.s32 %v2377, 56
        %v2385 = vlaneseq
        %v2386 = vand.u32 %v2385, 127
        %vm2387 = vcmp.ge.s32.totalorder %v2377, %v2386
        %vm2388 = vcmp.ge.s32.totalorder %v2378, %v2386
        %vm2389 = vcmp.ge.s32.totalorder %v2379, %v2386
        %vm2390 = vcmp.ge.s32.totalorder %v2380, %v2386
        %vm2391 = vcmp.ge.s32.totalorder %v2381, %v2386
        %vm2392 = vcmp.ge.s32.totalorder %v2382, %v2386
        %vm2393 = vcmp.ge.s32.totalorder %v2383, %v2386
        %vm2394 = vcmp.ge.s32.totalorder %v2384, %v2386
        %vm2395 = vcmask 523264
        %v2397 = vsel %vm2395, %v2340, 0
        %v2400 = vsel %vm2395, %v2349, 0
        %v2403 = vsel %vm2395, %v2358, 0
        %v2406 = vsel %vm2395, %v2367, 0
        %v2409 = vsel %vm2395, %v2343, 0
        %v2412 = vsel %vm2395, %v2352, 0
        %v2415 = vsel %vm2395, %v2361, 0
        %v2418 = vsel %vm2395, %v2370, 0
        %2420 = vmatprep.subr.bf16.mxu0 0
        %2421 = vmatpush1.bf16.xpose.msra.mxu0 %v2409
        %2422 = vmatprep.subr.bf16.mxu0 0
        %2423 = vmatpush1.bf16.xpose.msra.mxu0 %v2412
        %2424 = vmatprep.subr.bf16.mxu0 0
        %2425 = vmatpush1.bf16.xpose.msra.mxu0 %v2415
        %2426 = vmatprep.subr.bf16.mxu0 0
        %2427 = vmatpush1.bf16.xpose.msra.mxu0 %v2418
        %2428 = vmatprep.subr.bf16.mxu0 0
        %2429 = vmatpush1.bf16.xpose.msra.mxu0 0
        %2430 = vmatprep.subr.bf16.mxu0 0
        %2431 = vmatpush1.bf16.xpose.msra.mxu0 0
        %2432 = vmatprep.subr.bf16.mxu0 0
        %2433 = vmatpush1.bf16.xpose.msra.mxu0 0
        %2434 = vmatprep.subr.bf16.mxu0 0
        %2435 = vmatpush1.bf16.xpose.msra.mxu0 0
        %2436 = vmatprep.subr.bf16.mxu0 0
        %2437 = vmatpush1.bf16.xpose.msra.mxu0 0
        %2438 = vmatprep.subr.bf16.mxu0 0
        %2439 = vmatpush1.bf16.xpose.msra.mxu0 0
        %2440 = vmatprep.subr.bf16.mxu0 0
        %2441 = vmatpush1.bf16.xpose.msra.mxu0 0
        %2442 = vmatprep.subr.bf16.mxu0 0
        %2443 = vmatpush1.bf16.xpose.msra.mxu0 0
        %2444 = vmatprep.subr.bf16.mxu0 0
        %2445 = vmatpush1.bf16.xpose.msra.mxu0 0
        %2446 = vmatprep.subr.bf16.mxu0 0
        %2447 = vmatpush1.bf16.xpose.msra.mxu0 0
        %2448 = vmatprep.subr.bf16.mxu0 0
        %2449 = vmatpush1.bf16.xpose.msra.mxu0 0
        %2450 = vmatprep.subr.bf16.mxu0 0
        %2451 = vmatpush1.bf16.xpose.msra.mxu0 0
        %2452 = vmatprep.mubr.bf16.mxu0 0
        %2453 = vmatmul.mubr.bf16.gmra.mrb[0].mxu0 %v2397
        %v2454 = vpop.f32.mrb[0].mxu0
        %v2455 = vadd.f32 0.0, %v2454
        %v2456 = vpop.f32.mrb[0].mxu0
        %v2457 = vpop.f32.mrb[0].mxu0
        %v2458 = vadd.f32 0.0, %v2457
        %v2459 = vpop.f32.mrb[0].mxu0
        %2460 = vmatprep.mubr.bf16.mxu0 0
        %2461 = vmatmul.mubr.bf16.gmra.mrb[0].mxu0 %v2400
        %v2462 = vpop.f32.mrb[0].mxu0
        %v2463 = vadd.f32 0.0, %v2462
        %v2464 = vpop.f32.mrb[0].mxu0
        %v2465 = vpop.f32.mrb[0].mxu0
        %v2466 = vadd.f32 0.0, %v2465
        %v2467 = vpop.f32.mrb[0].mxu0
        %2468 = vmatprep.mubr.bf16.mxu0 0
        %2469 = vmatmul.mubr.bf16.gmra.mrb[0].mxu0 %v2403
        %v2470 = vpop.f32.mrb[0].mxu0
        %v2471 = vadd.f32 0.0, %v2470
        %v2472 = vpop.f32.mrb[0].mxu0
        %v2473 = vpop.f32.mrb[0].mxu0
        %v2474 = vadd.f32 0.0, %v2473
        %v2475 = vpop.f32.mrb[0].mxu0
        %2476 = vmatprep.mubr.bf16.mxu0 0
        %2477 = vmatmul.mubr.bf16.gmra.mrb[0].mxu0 %v2406
        %v2478 = vpop.f32.mrb[0].mxu0
        %v2479 = vadd.f32 0.0, %v2478
        %v2480 = vpop.f32.mrb[0].mxu0
        %v2481 = vpop.f32.mrb[0].mxu0
        %v2482 = vadd.f32 0.0, %v2481
        %v2483 = vpop.f32.mrb[0].mxu0
        %2484 = vdwg.mxu0
        %v2485 = vsel %vm2387, %v2455, -1e+30
        %v2486 = vsel %vm2388, %v2458, -1e+30
        %v2487 = vsel %vm2389, %v2463, -1e+30
        %v2488 = vsel %vm2390, %v2466, -1e+30
        %v2489 = vsel %vm2391, %v2471, -1e+30
        %v2490 = vsel %vm2392, %v2474, -1e+30
        %v2491 = vsel %vm2393, %v2479, -1e+30
        %v2492 = vsel %vm2394, %v2482, -1e+30
        %v2493 = vsel %vm2395, %v2485, -inf
        %2494 = vmax.xlane.f32.xlu0 %v2493
        %v2495 = vpop.xlane.xlu0 %2494
        %v2496 = vsel %vm2395, %v2486, -inf
        %2497 = vmax.xlane.f32.xlu0 %v2496
        %v2498 = vpop.xlane.xlu0 %2497
        %v2499 = vsel %vm2395, %v2487, -inf
        %2500 = vmax.xlane.f32.xlu0 %v2499
        %v2501 = vpop.xlane.xlu0 %2500
        %v2502 = vsel %vm2395, %v2488, -inf
        %2503 = vmax.xlane.f32.xlu0 %v2502
        %v2504 = vpop.xlane.xlu0 %2503
        %v2505 = vsel %vm2395, %v2489, -inf
        %2506 = vmax.xlane.f32.xlu0 %v2505
        %v2507 = vpop.xlane.xlu0 %2506
        %v2508 = vsel %vm2395, %v2490, -inf
        %2509 = vmax.xlane.f32.xlu0 %v2508
        %v2510 = vpop.xlane.xlu0 %2509
        %v2511 = vsel %vm2395, %v2491, -inf
        %2512 = vmax.xlane.f32.xlu0 %v2511
        %v2513 = vpop.xlane.xlu0 %2512
        %v2514 = vsel %vm2395, %v2492, -inf
        %2515 = vmax.xlane.f32.xlu0 %v2514
        %v2516 = vpop.xlane.xlu0 %2515
        %v2517 = vsub.f32 %v2485, %v2495
        %v2518 = vsub.f32 %v2486, %v2498
        %v2519 = vsub.f32 %v2487, %v2501
        %v2520 = vsub.f32 %v2488, %v2504
        %v2521 = vsub.f32 %v2489, %v2507
        %v2522 = vsub.f32 %v2490, %v2510
        %v2523 = vsub.f32 %v2491, %v2513
        %v2524 = vsub.f32 %v2492, %v2516
        %v2525 = vmul.f32 %v2517, 1.442695
        %v2526 = vpow.pop %v2525
        %v2527 = vmul.f32 %v2518, 1.442695
        %v2528 = vpow.pop %v2527
        %v2529 = vmul.f32 %v2519, 1.442695
        %v2530 = vpow.pop %v2529
        %v2531 = vmul.f32 %v2520, 1.442695
        %v2532 = vpow.pop %v2531
        %v2533 = vmul.f32 %v2521, 1.442695
        %v2534 = vpow.pop %v2533
        %v2535 = vmul.f32 %v2522, 1.442695
        %v2536 = vpow.pop %v2535
        %v2537 = vmul.f32 %v2523, 1.442695
        %v2538 = vpow.pop %v2537
        %v2539 = vmul.f32 %v2524, 1.442695
        %v2540 = vpow.pop %v2539
        %v2541 = vsel %vm2395, %v2526, 0.0
        %2542 = vadd.xlane.f32.xlu0 %v2541
        %v2543 = vpop.xlane.xlu0 %2542
        %v2544 = vsel %vm2395, %v2528, 0.0
        %2545 = vadd.xlane.f32.xlu0 %v2544
        %v2546 = vpop.xlane.xlu0 %2545
        %v2547 = vsel %vm2395, %v2530, 0.0
        %2548 = vadd.xlane.f32.xlu0 %v2547
        %v2549 = vpop.xlane.xlu0 %2548
        %v2550 = vsel %vm2395, %v2532, 0.0
        %2551 = vadd.xlane.f32.xlu0 %v2550
        %v2552 = vpop.xlane.xlu0 %2551
        %v2553 = vsel %vm2395, %v2534, 0.0
        %2554 = vadd.xlane.f32.xlu0 %v2553
        %v2555 = vpop.xlane.xlu0 %2554
        %v2556 = vsel %vm2395, %v2536, 0.0
        %2557 = vadd.xlane.f32.xlu0 %v2556
        %v2558 = vpop.xlane.xlu0 %2557
        %v2559 = vsel %vm2395, %v2538, 0.0
        %2560 = vadd.xlane.f32.xlu0 %v2559
        %v2561 = vpop.xlane.xlu0 %2560
        %v2562 = vsel %vm2395, %v2540, 0.0
        %2563 = vadd.xlane.f32.xlu0 %v2562
        %v2564 = vpop.xlane.xlu0 %2563
        %v2565 = vrcp.pop %v2543
        %v2566 = vrcp.pop %v2546
        %v2567 = vrcp.pop %v2549
        %v2568 = vrcp.pop %v2552
        %v2569 = vrcp.pop %v2555
        %v2570 = vrcp.pop %v2558
        %v2571 = vrcp.pop %v2561
        %v2572 = vrcp.pop %v2564
        %v2573 = vmul.f32 %v2526, %v2565
        %v2574 = vmul.f32 %v2528, %v2566
        %v2575 = vmul.f32 %v2530, %v2567
        %v2576 = vmul.f32 %v2532, %v2568
        %v2577 = vmul.f32 %v2534, %v2569
        %v2578 = vmul.f32 %v2536, %v2570
        %v2579 = vmul.f32 %v2538, %v2571
        %v2580 = vmul.f32 %v2540, %v2572
        %v2581 = vpack.c.bf16 %v2574, %v2573
        %v2582 = vpack.c.bf16 %v2576, %v2575
        %v2583 = vpack.c.bf16 %v2578, %v2577
        %v2584 = vpack.c.bf16 %v2580, %v2579
        %v2586 = vsel %vm2395, %v2581, 0
        %v2589 = vsel %vm2395, %v2582, 0
        %v2592 = vsel %vm2395, %v2583, 0
        %v2595 = vsel %vm2395, %v2584, 0
        %2597 = vmatprep.subr.bf16.mxu0 0
        %2598 = vmatpush1.bf16.msra.mxu0 %v2346
        %2599 = vmatprep.subr.bf16.mxu0 0
        %2600 = vmatpush1.bf16.msra.mxu0 %v2355
        %2601 = vmatprep.subr.bf16.mxu0 0
        %2602 = vmatpush1.bf16.msra.mxu0 %v2364
        %2603 = vmatprep.subr.bf16.mxu0 0
        %2604 = vmatpush1.bf16.msra.mxu0 %v2373
        %2605 = vmatprep.subr.bf16.mxu0 0
        %2606 = vmatpush1.bf16.msra.mxu0 0
        %2607 = vmatprep.subr.bf16.mxu0 0
        %2608 = vmatpush1.bf16.msra.mxu0 0
        %2609 = vmatprep.subr.bf16.mxu0 0
        %2610 = vmatpush1.bf16.msra.mxu0 0
        %2611 = vmatprep.subr.bf16.mxu0 0
        %2612 = vmatpush1.bf16.msra.mxu0 0
        %2613 = vmatprep.subr.bf16.mxu0 0
        %2614 = vmatpush1.bf16.msra.mxu0 0
        %2615 = vmatprep.subr.bf16.mxu0 0
        %2616 = vmatpush1.bf16.msra.mxu0 0
        %2617 = vmatprep.subr.bf16.mxu0 0
        %2618 = vmatpush1.bf16.msra.mxu0 0
        %2619 = vmatprep.subr.bf16.mxu0 0
        %2620 = vmatpush1.bf16.msra.mxu0 0
        %2621 = vmatprep.subr.bf16.mxu0 0
        %2622 = vmatpush1.bf16.msra.mxu0 0
        %2623 = vmatprep.subr.bf16.mxu0 0
        %2624 = vmatpush1.bf16.msra.mxu0 0
        %2625 = vmatprep.subr.bf16.mxu0 0
        %2626 = vmatpush1.bf16.msra.mxu0 0
        %2627 = vmatprep.subr.bf16.mxu0 0
        %2628 = vmatpush1.bf16.msra.mxu0 0
        %2629 = vmatprep.mubr.bf16.mxu0 0
        %2630 = vmatmul.mubr.bf16.gmra.mrb[0].mxu0 %v2586
        %v2631 = vpop.f32.mrb[0].mxu0
        %v2632 = vadd.f32 0.0, %v2631
        %v2633 = vpop.f32.mrb[0].mxu0
        %v2634 = vpop.f32.mrb[0].mxu0
        %v2635 = vadd.f32 0.0, %v2634
        %v2636 = vpop.f32.mrb[0].mxu0
        %2637 = vmatprep.mubr.bf16.mxu0 0
        %2638 = vmatmul.mubr.bf16.gmra.mrb[0].mxu0 %v2589
        %v2639 = vpop.f32.mrb[0].mxu0
        %v2640 = vadd.f32 0.0, %v2639
        %v2641 = vpop.f32.mrb[0].mxu0
        %v2642 = vpop.f32.mrb[0].mxu0
        %v2643 = vadd.f32 0.0, %v2642
        %v2644 = vpop.f32.mrb[0].mxu0
        %2645 = vmatprep.mubr.bf16.mxu0 0
        %2646 = vmatmul.mubr.bf16.gmra.mrb[0].mxu0 %v2592
        %v2647 = vpop.f32.mrb[0].mxu0
        %v2648 = vadd.f32 0.0, %v2647
        %v2649 = vpop.f32.mrb[0].mxu0
        %v2650 = vpop.f32.mrb[0].mxu0
        %v2651 = vadd.f32 0.0, %v2650
        %v2652 = vpop.f32.mrb[0].mxu0
        %2653 = vmatprep.mubr.bf16.mxu0 0
        %2654 = vmatmul.mubr.bf16.gmra.mrb[0].mxu0 %v2595
        %v2655 = vpop.f32.mrb[0].mxu0
        %v2656 = vadd.f32 0.0, %v2655
        %v2657 = vpop.f32.mrb[0].mxu0
        %v2658 = vpop.f32.mrb[0].mxu0
        %v2659 = vadd.f32 0.0, %v2658
        %v2660 = vpop.f32.mrb[0].mxu0
        %2661 = vdwg.mxu0
        %v2662 = vpack.c.bf16 %v2635, %v2632
        %v2663 = vpack.c.bf16 %v2643, %v2640
        %v2664 = vpack.c.bf16 %v2651, %v2648
        %v2665 = vpack.c.bf16 %v2659, %v2656
        %2670 = vrot.lane.b32.xlu0 %v2340, 64
        %v2671 = vpop.permute.xlu0 %2670
        %2672 = vrot.lane.b32.xlu0 %v2349, 64
        %v2673 = vpop.permute.xlu0 %2672
        %2674 = vrot.lane.b32.xlu0 %v2358, 64
        %v2675 = vpop.permute.xlu0 %2674
        %2676 = vrot.lane.b32.xlu0 %v2367, 64
        %v2677 = vpop.permute.xlu0 %2676
        %2682 = vrot.lane.b32.xlu0 %v2343, 64
        %v2683 = vpop.permute.xlu0 %2682
        %2684 = vrot.lane.b32.xlu0 %v2352, 64
        %v2685 = vpop.permute.xlu0 %2684
        %2686 = vrot.lane.b32.xlu0 %v2361, 64
        %v2687 = vpop.permute.xlu0 %2686
        %2688 = vrot.lane.b32.xlu0 %v2370, 64
        %v2689 = vpop.permute.xlu0 %2688
        %v2691 = vsel %vm2395, %v2671, 0
        %v2694 = vsel %vm2395, %v2673, 0
        %v2697 = vsel %vm2395, %v2675, 0
        %v2700 = vsel %vm2395, %v2677, 0
        %v2703 = vsel %vm2395, %v2683, 0
        %v2706 = vsel %vm2395, %v2685, 0
        %v2709 = vsel %vm2395, %v2687, 0
        %v2712 = vsel %vm2395, %v2689, 0
        %2714 = vmatprep.subr.bf16.mxu0 0
        %2715 = vmatpush1.bf16.xpose.msra.mxu0 %v2703
        %2716 = vmatprep.subr.bf16.mxu0 0
        %2717 = vmatpush1.bf16.xpose.msra.mxu0 %v2706
        %2718 = vmatprep.subr.bf16.mxu0 0
        %2719 = vmatpush1.bf16.xpose.msra.mxu0 %v2709
        %2720 = vmatprep.subr.bf16.mxu0 0
        %2721 = vmatpush1.bf16.xpose.msra.mxu0 %v2712
        %2722 = vmatprep.subr.bf16.mxu0 0
        %2723 = vmatpush1.bf16.xpose.msra.mxu0 0
        %2724 = vmatprep.subr.bf16.mxu0 0
        %2725 = vmatpush1.bf16.xpose.msra.mxu0 0
        %2726 = vmatprep.subr.bf16.mxu0 0
        %2727 = vmatpush1.bf16.xpose.msra.mxu0 0
        %2728 = vmatprep.subr.bf16.mxu0 0
        %2729 = vmatpush1.bf16.xpose.msra.mxu0 0
        %2730 = vmatprep.subr.bf16.mxu0 0
        %2731 = vmatpush1.bf16.xpose.msra.mxu0 0
        %2732 = vmatprep.subr.bf16.mxu0 0
        %2733 = vmatpush1.bf16.xpose.msra.mxu0 0
        %2734 = vmatprep.subr.bf16.mxu0 0
        %2735 = vmatpush1.bf16.xpose.msra.mxu0 0
        %2736 = vmatprep.subr.bf16.mxu0 0
        %2737 = vmatpush1.bf16.xpose.msra.mxu0 0
        %2738 = vmatprep.subr.bf16.mxu0 0
        %2739 = vmatpush1.bf16.xpose.msra.mxu0 0
        %2740 = vmatprep.subr.bf16.mxu0 0
        %2741 = vmatpush1.bf16.xpose.msra.mxu0 0
        %2742 = vmatprep.subr.bf16.mxu0 0
        %2743 = vmatpush1.bf16.xpose.msra.mxu0 0
        %2744 = vmatprep.subr.bf16.mxu0 0
        %2745 = vmatpush1.bf16.xpose.msra.mxu0 0
        %2746 = vmatprep.mubr.bf16.mxu0 0
        %2747 = vmatmul.mubr.bf16.gmra.mrb[0].mxu0 %v2691
        %v2748 = vpop.f32.mrb[0].mxu0
        %v2749 = vadd.f32 0.0, %v2748
        %v2750 = vpop.f32.mrb[0].mxu0
        %v2751 = vpop.f32.mrb[0].mxu0
        %v2752 = vadd.f32 0.0, %v2751
        %v2753 = vpop.f32.mrb[0].mxu0
        %2754 = vmatprep.mubr.bf16.mxu0 0
        %2755 = vmatmul.mubr.bf16.gmra.mrb[0].mxu0 %v2694
        %v2756 = vpop.f32.mrb[0].mxu0
        %v2757 = vadd.f32 0.0, %v2756
        %v2758 = vpop.f32.mrb[0].mxu0
        %v2759 = vpop.f32.mrb[0].mxu0
        %v2760 = vadd.f32 0.0, %v2759
        %v2761 = vpop.f32.mrb[0].mxu0
        %2762 = vmatprep.mubr.bf16.mxu0 0
        %2763 = vmatmul.mubr.bf16.gmra.mrb[0].mxu0 %v2697
        %v2764 = vpop.f32.mrb[0].mxu0
        %v2765 = vadd.f32 0.0, %v2764
        %v2766 = vpop.f32.mrb[0].mxu0
        %v2767 = vpop.f32.mrb[0].mxu0
        %v2768 = vadd.f32 0.0, %v2767
        %v2769 = vpop.f32.mrb[0].mxu0
        %2770 = vmatprep.mubr.bf16.mxu0 0
        %2771 = vmatmul.mubr.bf16.gmra.mrb[0].mxu0 %v2700
        %v2772 = vpop.f32.mrb[0].mxu0
        %v2773 = vadd.f32 0.0, %v2772
        %v2774 = vpop.f32.mrb[0].mxu0
        %v2775 = vpop.f32.mrb[0].mxu0
        %v2776 = vadd.f32 0.0, %v2775
        %v2777 = vpop.f32.mrb[0].mxu0
        %2778 = vdwg.mxu0
        %v2779 = vsel %vm2387, %v2749, -1e+30
        %v2780 = vsel %vm2388, %v2752, -1e+30
        %v2781 = vsel %vm2389, %v2757, -1e+30
        %v2782 = vsel %vm2390, %v2760, -1e+30
        %v2783 = vsel %vm2391, %v2765, -1e+30
        %v2784 = vsel %vm2392, %v2768, -1e+30
        %v2785 = vsel %vm2393, %v2773, -1e+30
        %v2786 = vsel %vm2394, %v2776, -1e+30
        %v2787 = vsel %vm2395, %v2779, -inf
        %2788 = vmax.xlane.f32.xlu0 %v2787
        %v2789 = vpop.xlane.xlu0 %2788
        %v2790 = vsel %vm2395, %v2780, -inf
        %2791 = vmax.xlane.f32.xlu0 %v2790
        %v2792 = vpop.xlane.xlu0 %2791
        %v2793 = vsel %vm2395, %v2781, -inf
        %2794 = vmax.xlane.f32.xlu0 %v2793
        %v2795 = vpop.xlane.xlu0 %2794
        %v2796 = vsel %vm2395, %v2782, -inf
        %2797 = vmax.xlane.f32.xlu0 %v2796
        %v2798 = vpop.xlane.xlu0 %2797
        %v2799 = vsel %vm2395, %v2783, -inf
        %2800 = vmax.xlane.f32.xlu0 %v2799
        %v2801 = vpop.xlane.xlu0 %2800
        %v2802 = vsel %vm2395, %v2784, -inf
        %2803 = vmax.xlane.f32.xlu0 %v2802
        %v2804 = vpop.xlane.xlu0 %2803
        %v2805 = vsel %vm2395, %v2785, -inf
        %2806 = vmax.xlane.f32.xlu0 %v2805
        %v2807 = vpop.xlane.xlu0 %2806
        %v2808 = vsel %vm2395, %v2786, -inf
        %2809 = vmax.xlane.f32.xlu0 %v2808
        %v2810 = vpop.xlane.xlu0 %2809
        %v2811 = vsub.f32 %v2779, %v2789
        %v2812 = vsub.f32 %v2780, %v2792
        %v2813 = vsub.f32 %v2781, %v2795
        %v2814 = vsub.f32 %v2782, %v2798
        %v2815 = vsub.f32 %v2783, %v2801
        %v2816 = vsub.f32 %v2784, %v2804
        %v2817 = vsub.f32 %v2785, %v2807
        %v2818 = vsub.f32 %v2786, %v2810
        %v2819 = vmul.f32 %v2811, 1.442695
        %v2820 = vpow.pop %v2819
        %v2821 = vmul.f32 %v2812, 1.442695
        %v2822 = vpow.pop %v2821
        %v2823 = vmul.f32 %v2813, 1.442695
        %v2824 = vpow.pop %v2823
        %v2825 = vmul.f32 %v2814, 1.442695
        %v2826 = vpow.pop %v2825
        %v2827 = vmul.f32 %v2815, 1.442695
        %v2828 = vpow.pop %v2827
        %v2829 = vmul.f32 %v2816, 1.442695
        %v2830 = vpow.pop %v2829
        %v2831 = vmul.f32 %v2817, 1.442695
        %v2832 = vpow.pop %v2831
        %v2833 = vmul.f32 %v2818, 1.442695
        %v2834 = vpow.pop %v2833
        %v2835 = vsel %vm2395, %v2820, 0.0
        %2836 = vadd.xlane.f32.xlu0 %v2835
        %v2837 = vpop.xlane.xlu0 %2836
        %v2838 = vsel %vm2395, %v2822, 0.0
        %2839 = vadd.xlane.f32.xlu0 %v2838
        %v2840 = vpop.xlane.xlu0 %2839
        %v2841 = vsel %vm2395, %v2824, 0.0
        %2842 = vadd.xlane.f32.xlu0 %v2841
        %v2843 = vpop.xlane.xlu0 %2842
        %v2844 = vsel %vm2395, %v2826, 0.0
        %2845 = vadd.xlane.f32.xlu0 %v2844
        %v2846 = vpop.xlane.xlu0 %2845
        %v2847 = vsel %vm2395, %v2828, 0.0
        %2848 = vadd.xlane.f32.xlu0 %v2847
        %v2849 = vpop.xlane.xlu0 %2848
        %v2850 = vsel %vm2395, %v2830, 0.0
        %2851 = vadd.xlane.f32.xlu0 %v2850
        %v2852 = vpop.xlane.xlu0 %2851
        %v2853 = vsel %vm2395, %v2832, 0.0
        %2854 = vadd.xlane.f32.xlu0 %v2853
        %v2855 = vpop.xlane.xlu0 %2854
        %v2856 = vsel %vm2395, %v2834, 0.0
        %2857 = vadd.xlane.f32.xlu0 %v2856
        %v2858 = vpop.xlane.xlu0 %2857
        %v2859 = vrcp.pop %v2837
        %v2860 = vrcp.pop %v2840
        %v2861 = vrcp.pop %v2843
        %v2862 = vrcp.pop %v2846
        %v2863 = vrcp.pop %v2849
        %v2864 = vrcp.pop %v2852
        %v2865 = vrcp.pop %v2855
        %v2866 = vrcp.pop %v2858
        %v2867 = vmul.f32 %v2820, %v2859
        %v2868 = vmul.f32 %v2822, %v2860
        %v2869 = vmul.f32 %v2824, %v2861
        %v2870 = vmul.f32 %v2826, %v2862
        %v2871 = vmul.f32 %v2828, %v2863
        %v2872 = vmul.f32 %v2830, %v2864
        %v2873 = vmul.f32 %v2832, %v2865
        %v2874 = vmul.f32 %v2834, %v2866
        %v2875 = vpack.c.bf16 %v2868, %v2867
        %v2876 = vpack.c.bf16 %v2870, %v2869
        %v2877 = vpack.c.bf16 %v2872, %v2871
        %v2878 = vpack.c.bf16 %v2874, %v2873
        %2883 = vrot.lane.b32.xlu0 %v2346, 64
        %v2884 = vpop.permute.xlu0 %2883
        %2885 = vrot.lane.b32.xlu0 %v2355, 64
        %v2886 = vpop.permute.xlu0 %2885
        %2887 = vrot.lane.b32.xlu0 %v2364, 64
        %v2888 = vpop.permute.xlu0 %2887
        %2889 = vrot.lane.b32.xlu0 %v2373, 64
        %v2890 = vpop.permute.xlu0 %2889
        %v2896 = vsel %vm2395, %v2875, 0
        %v2899 = vsel %vm2395, %v2876, 0
        %v2902 = vsel %vm2395, %v2877, 0
        %v2905 = vsel %vm2395, %v2878, 0
        %2907 = vmatprep.subr.bf16.mxu0 0
        %2908 = vmatpush1.bf16.msra.mxu0 %v2884
        %2909 = vmatprep.subr.bf16.mxu0 0
        %2910 = vmatpush1.bf16.msra.mxu0 %v2886
        %2911 = vmatprep.subr.bf16.mxu0 0
        %2912 = vmatpush1.bf16.msra.mxu0 %v2888
        %2913 = vmatprep.subr.bf16.mxu0 0
        %2914 = vmatpush1.bf16.msra.mxu0 %v2890
        %2915 = vmatprep.subr.bf16.mxu0 0
        %2916 = vmatpush1.bf16.msra.mxu0 0
        %2917 = vmatprep.subr.bf16.mxu0 0
        %2918 = vmatpush1.bf16.msra.mxu0 0
        %2919 = vmatprep.subr.bf16.mxu0 0
        %2920 = vmatpush1.bf16.msra.mxu0 0
        %2921 = vmatprep.subr.bf16.mxu0 0
        %2922 = vmatpush1.bf16.msra.mxu0 0
        %2923 = vmatprep.subr.bf16.mxu0 0
        %2924 = vmatpush1.bf16.msra.mxu0 0
        %2925 = vmatprep.subr.bf16.mxu0 0
        %2926 = vmatpush1.bf16.msra.mxu0 0
        %2927 = vmatprep.subr.bf16.mxu0 0
        %2928 = vmatpush1.bf16.msra.mxu0 0
        %2929 = vmatprep.subr.bf16.mxu0 0
        %2930 = vmatpush1.bf16.msra.mxu0 0
        %2931 = vmatprep.subr.bf16.mxu0 0
        %2932 = vmatpush1.bf16.msra.mxu0 0
        %2933 = vmatprep.subr.bf16.mxu0 0
        %2934 = vmatpush1.bf16.msra.mxu0 0
        %2935 = vmatprep.subr.bf16.mxu0 0
        %2936 = vmatpush1.bf16.msra.mxu0 0
        %2937 = vmatprep.subr.bf16.mxu0 0
        %2938 = vmatpush1.bf16.msra.mxu0 0
        %2939 = vmatprep.mubr.bf16.mxu0 0
        %2940 = vmatmul.mubr.bf16.gmra.mrb[0].mxu0 %v2896
        %v2941 = vpop.f32.mrb[0].mxu0
        %v2942 = vadd.f32 0.0, %v2941
        %v2943 = vpop.f32.mrb[0].mxu0
        %v2944 = vpop.f32.mrb[0].mxu0
        %v2945 = vadd.f32 0.0, %v2944
        %v2946 = vpop.f32.mrb[0].mxu0
        %2947 = vmatprep.mubr.bf16.mxu0 0
        %2948 = vmatmul.mubr.bf16.gmra.mrb[0].mxu0 %v2899
        %v2949 = vpop.f32.mrb[0].mxu0
        %v2950 = vadd.f32 0.0, %v2949
        %v2951 = vpop.f32.mrb[0].mxu0
        %v2952 = vpop.f32.mrb[0].mxu0
        %v2953 = vadd.f32 0.0, %v2952
        %v2954 = vpop.f32.mrb[0].mxu0
        %2955 = vmatprep.mubr.bf16.mxu0 0
        %2956 = vmatmul.mubr.bf16.gmra.mrb[0].mxu0 %v2902
        %v2957 = vpop.f32.mrb[0].mxu0
        %v2958 = vadd.f32 0.0, %v2957
        %v2959 = vpop.f32.mrb[0].mxu0
        %v2960 = vpop.f32.mrb[0].mxu0
        %v2961 = vadd.f32 0.0, %v2960
        %v2962 = vpop.f32.mrb[0].mxu0
        %2963 = vmatprep.mubr.bf16.mxu0 0
        %2964 = vmatmul.mubr.bf16.gmra.mrb[0].mxu0 %v2905
        %v2965 = vpop.f32.mrb[0].mxu0
        %v2966 = vadd.f32 0.0, %v2965
        %v2967 = vpop.f32.mrb[0].mxu0
        %v2968 = vpop.f32.mrb[0].mxu0
        %v2969 = vadd.f32 0.0, %v2968
        %v2970 = vpop.f32.mrb[0].mxu0
        %2971 = vdwg.mxu0
        %v2972 = vpack.c.bf16 %v2945, %v2942
        %v2973 = vpack.c.bf16 %v2953, %v2950
        %v2974 = vpack.c.bf16 %v2961, %v2958
        %v2975 = vpack.c.bf16 %v2969, %v2966
        %v2977 = vsel %vm2395, %v2341, 0
        %v2980 = vsel %vm2395, %v2350, 0
        %v2983 = vsel %vm2395, %v2359, 0
        %v2986 = vsel %vm2395, %v2368, 0
        %v2989 = vsel %vm2395, %v2344, 0
        %v2992 = vsel %vm2395, %v2353, 0
        %v2995 = vsel %vm2395, %v2362, 0
        %v2998 = vsel %vm2395, %v2371, 0
        %3000 = vmatprep.subr.bf16.mxu0 0
        %3001 = vmatpush1.bf16.xpose.msra.mxu0 %v2989
        %3002 = vmatprep.subr.bf16.mxu0 0
        %3003 = vmatpush1.bf16.xpose.msra.mxu0 %v2992
        %3004 = vmatprep.subr.bf16.mxu0 0
        %3005 = vmatpush1.bf16.xpose.msra.mxu0 %v2995
        %3006 = vmatprep.subr.bf16.mxu0 0
        %3007 = vmatpush1.bf16.xpose.msra.mxu0 %v2998
        %3008 = vmatprep.subr.bf16.mxu0 0
        %3009 = vmatpush1.bf16.xpose.msra.mxu0 0
        %3010 = vmatprep.subr.bf16.mxu0 0
        %3011 = vmatpush1.bf16.xpose.msra.mxu0 0
        %3012 = vmatprep.subr.bf16.mxu0 0
        %3013 = vmatpush1.bf16.xpose.msra.mxu0 0
        %3014 = vmatprep.subr.bf16.mxu0 0
        %3015 = vmatpush1.bf16.xpose.msra.mxu0 0
        %3016 = vmatprep.subr.bf16.mxu0 0
        %3017 = vmatpush1.bf16.xpose.msra.mxu0 0
        %3018 = vmatprep.subr.bf16.mxu0 0
        %3019 = vmatpush1.bf16.xpose.msra.mxu0 0
        %3020 = vmatprep.subr.bf16.mxu0 0
        %3021 = vmatpush1.bf16.xpose.msra.mxu0 0
        %3022 = vmatprep.subr.bf16.mxu0 0
        %3023 = vmatpush1.bf16.xpose.msra.mxu0 0
        %3024 = vmatprep.subr.bf16.mxu0 0
        %3025 = vmatpush1.bf16.xpose.msra.mxu0 0
        %3026 = vmatprep.subr.bf16.mxu0 0
        %3027 = vmatpush1.bf16.xpose.msra.mxu0 0
        %3028 = vmatprep.subr.bf16.mxu0 0
        %3029 = vmatpush1.bf16.xpose.msra.mxu0 0
        %3030 = vmatprep.subr.bf16.mxu0 0
        %3031 = vmatpush1.bf16.xpose.msra.mxu0 0
        %3032 = vmatprep.mubr.bf16.mxu0 0
        %3033 = vmatmul.mubr.bf16.gmra.mrb[0].mxu0 %v2977
        %v3034 = vpop.f32.mrb[0].mxu0
        %v3035 = vadd.f32 0.0, %v3034
        %v3036 = vpop.f32.mrb[0].mxu0
        %v3037 = vpop.f32.mrb[0].mxu0
        %v3038 = vadd.f32 0.0, %v3037
        %v3039 = vpop.f32.mrb[0].mxu0
        %3040 = vmatprep.mubr.bf16.mxu0 0
        %3041 = vmatmul.mubr.bf16.gmra.mrb[0].mxu0 %v2980
        %v3042 = vpop.f32.mrb[0].mxu0
        %v3043 = vadd.f32 0.0, %v3042
        %v3044 = vpop.f32.mrb[0].mxu0
        %v3045 = vpop.f32.mrb[0].mxu0
        %v3046 = vadd.f32 0.0, %v3045
        %v3047 = vpop.f32.mrb[0].mxu0
        %3048 = vmatprep.mubr.bf16.mxu0 0
        %3049 = vmatmul.mubr.bf16.gmra.mrb[0].mxu0 %v2983
        %v3050 = vpop.f32.mrb[0].mxu0
        %v3051 = vadd.f32 0.0, %v3050
        %v3052 = vpop.f32.mrb[0].mxu0
        %v3053 = vpop.f32.mrb[0].mxu0
        %v3054 = vadd.f32 0.0, %v3053
        %v3055 = vpop.f32.mrb[0].mxu0
        %3056 = vmatprep.mubr.bf16.mxu0 0
        %3057 = vmatmul.mubr.bf16.gmra.mrb[0].mxu0 %v2986
        %v3058 = vpop.f32.mrb[0].mxu0
        %v3059 = vadd.f32 0.0, %v3058
        %v3060 = vpop.f32.mrb[0].mxu0
        %v3061 = vpop.f32.mrb[0].mxu0
        %v3062 = vadd.f32 0.0, %v3061
        %v3063 = vpop.f32.mrb[0].mxu0
        %3064 = vdwg.mxu0
        %v3065 = vsel %vm2387, %v3035, -1e+30
        %v3066 = vsel %vm2388, %v3038, -1e+30
        %v3067 = vsel %vm2389, %v3043, -1e+30
        %v3068 = vsel %vm2390, %v3046, -1e+30
        %v3069 = vsel %vm2391, %v3051, -1e+30
        %v3070 = vsel %vm2392, %v3054, -1e+30
        %v3071 = vsel %vm2393, %v3059, -1e+30
        %v3072 = vsel %vm2394, %v3062, -1e+30
        %v3073 = vsel %vm2395, %v3065, -inf
        %3074 = vmax.xlane.f32.xlu0 %v3073
        %v3075 = vpop.xlane.xlu0 %3074
        %v3076 = vsel %vm2395, %v3066, -inf
        %3077 = vmax.xlane.f32.xlu0 %v3076
        %v3078 = vpop.xlane.xlu0 %3077
        %v3079 = vsel %vm2395, %v3067, -inf
        %3080 = vmax.xlane.f32.xlu0 %v3079
        %v3081 = vpop.xlane.xlu0 %3080
        %v3082 = vsel %vm2395, %v3068, -inf
        %3083 = vmax.xlane.f32.xlu0 %v3082
        %v3084 = vpop.xlane.xlu0 %3083
        %v3085 = vsel %vm2395, %v3069, -inf
        %3086 = vmax.xlane.f32.xlu0 %v3085
        %v3087 = vpop.xlane.xlu0 %3086
        %v3088 = vsel %vm2395, %v3070, -inf
        %3089 = vmax.xlane.f32.xlu0 %v3088
        %v3090 = vpop.xlane.xlu0 %3089
        %v3091 = vsel %vm2395, %v3071, -inf
        %3092 = vmax.xlane.f32.xlu0 %v3091
        %v3093 = vpop.xlane.xlu0 %3092
        %v3094 = vsel %vm2395, %v3072, -inf
        %3095 = vmax.xlane.f32.xlu0 %v3094
        %v3096 = vpop.xlane.xlu0 %3095
        %v3097 = vsub.f32 %v3065, %v3075
        %v3098 = vsub.f32 %v3066, %v3078
        %v3099 = vsub.f32 %v3067, %v3081
        %v3100 = vsub.f32 %v3068, %v3084
        %v3101 = vsub.f32 %v3069, %v3087
        %v3102 = vsub.f32 %v3070, %v3090
        %v3103 = vsub.f32 %v3071, %v3093
        %v3104 = vsub.f32 %v3072, %v3096
        %v3105 = vmul.f32 %v3097, 1.442695
        %v3106 = vpow.pop %v3105
        %v3107 = vmul.f32 %v3098, 1.442695
        %v3108 = vpow.pop %v3107
        %v3109 = vmul.f32 %v3099, 1.442695
        %v3110 = vpow.pop %v3109
        %v3111 = vmul.f32 %v3100, 1.442695
        %v3112 = vpow.pop %v3111
        %v3113 = vmul.f32 %v3101, 1.442695
        %v3114 = vpow.pop %v3113
        %v3115 = vmul.f32 %v3102, 1.442695
        %v3116 = vpow.pop %v3115
        %v3117 = vmul.f32 %v3103, 1.442695
        %v3118 = vpow.pop %v3117
        %v3119 = vmul.f32 %v3104, 1.442695
        %v3120 = vpow.pop %v3119
        %v3121 = vsel %vm2395, %v3106, 0.0
        %3122 = vadd.xlane.f32.xlu0 %v3121
        %v3123 = vpop.xlane.xlu0 %3122
        %v3124 = vsel %vm2395, %v3108, 0.0
        %3125 = vadd.xlane.f32.xlu0 %v3124
        %v3126 = vpop.xlane.xlu0 %3125
        %v3127 = vsel %vm2395, %v3110, 0.0
        %3128 = vadd.xlane.f32.xlu0 %v3127
        %v3129 = vpop.xlane.xlu0 %3128
        %v3130 = vsel %vm2395, %v3112, 0.0
        %3131 = vadd.xlane.f32.xlu0 %v3130
        %v3132 = vpop.xlane.xlu0 %3131
        %v3133 = vsel %vm2395, %v3114, 0.0
        %3134 = vadd.xlane.f32.xlu0 %v3133
        %v3135 = vpop.xlane.xlu0 %3134
        %v3136 = vsel %vm2395, %v3116, 0.0
        %3137 = vadd.xlane.f32.xlu0 %v3136
        %v3138 = vpop.xlane.xlu0 %3137
        %v3139 = vsel %vm2395, %v3118, 0.0
        %3140 = vadd.xlane.f32.xlu0 %v3139
        %v3141 = vpop.xlane.xlu0 %3140
        %v3142 = vsel %vm2395, %v3120, 0.0
        %3143 = vadd.xlane.f32.xlu0 %v3142
        %v3144 = vpop.xlane.xlu0 %3143
        %v3145 = vrcp.pop %v3123
        %v3146 = vrcp.pop %v3126
        %v3147 = vrcp.pop %v3129
        %v3148 = vrcp.pop %v3132
        %v3149 = vrcp.pop %v3135
        %v3150 = vrcp.pop %v3138
        %v3151 = vrcp.pop %v3141
        %v3152 = vrcp.pop %v3144
        %v3153 = vmul.f32 %v3106, %v3145
        %v3154 = vmul.f32 %v3108, %v3146
        %v3155 = vmul.f32 %v3110, %v3147
        %v3156 = vmul.f32 %v3112, %v3148
        %v3157 = vmul.f32 %v3114, %v3149
        %v3158 = vmul.f32 %v3116, %v3150
        %v3159 = vmul.f32 %v3118, %v3151
        %v3160 = vmul.f32 %v3120, %v3152
        %v3161 = vpack.c.bf16 %v3154, %v3153
        %v3162 = vpack.c.bf16 %v3156, %v3155
        %v3163 = vpack.c.bf16 %v3158, %v3157
        %v3164 = vpack.c.bf16 %v3160, %v3159
        %v3166 = vsel %vm2395, %v3161, 0
        %v3169 = vsel %vm2395, %v3162, 0
        %v3172 = vsel %vm2395, %v3163, 0
        %v3175 = vsel %vm2395, %v3164, 0
        %3177 = vmatprep.subr.bf16.mxu0 0
        %3178 = vmatpush1.bf16.msra.mxu0 %v2347
        %3179 = vmatprep.subr.bf16.mxu0 0
        %3180 = vmatpush1.bf16.msra.mxu0 %v2356
        %3181 = vmatprep.subr.bf16.mxu0 0
        %3182 = vmatpush1.bf16.msra.mxu0 %v2365
        %3183 = vmatprep.subr.bf16.mxu0 0
        %3184 = vmatpush1.bf16.msra.mxu0 %v2374
        %3185 = vmatprep.subr.bf16.mxu0 0
        %3186 = vmatpush1.bf16.msra.mxu0 0
        %3187 = vmatprep.subr.bf16.mxu0 0
        %3188 = vmatpush1.bf16.msra.mxu0 0
        %3189 = vmatprep.subr.bf16.mxu0 0
        %3190 = vmatpush1.bf16.msra.mxu0 0
        %3191 = vmatprep.subr.bf16.mxu0 0
        %3192 = vmatpush1.bf16.msra.mxu0 0
        %3193 = vmatprep.subr.bf16.mxu0 0
        %3194 = vmatpush1.bf16.msra.mxu0 0
        %3195 = vmatprep.subr.bf16.mxu0 0
        %3196 = vmatpush1.bf16.msra.mxu0 0
        %3197 = vmatprep.subr.bf16.mxu0 0
        %3198 = vmatpush1.bf16.msra.mxu0 0
        %3199 = vmatprep.subr.bf16.mxu0 0
        %3200 = vmatpush1.bf16.msra.mxu0 0
        %3201 = vmatprep.subr.bf16.mxu0 0
        %3202 = vmatpush1.bf16.msra.mxu0 0
        %3203 = vmatprep.subr.bf16.mxu0 0
        %3204 = vmatpush1.bf16.msra.mxu0 0
        %3205 = vmatprep.subr.bf16.mxu0 0
        %3206 = vmatpush1.bf16.msra.mxu0 0
        %3207 = vmatprep.subr.bf16.mxu0 0
        %3208 = vmatpush1.bf16.msra.mxu0 0
        %3209 = vmatprep.mubr.bf16.mxu0 0
        %3210 = vmatmul.mubr.bf16.gmra.mrb[0].mxu0 %v3166
        %v3211 = vpop.f32.mrb[0].mxu0
        %v3212 = vadd.f32 0.0, %v3211
        %v3213 = vpop.f32.mrb[0].mxu0
        %v3214 = vpop.f32.mrb[0].mxu0
        %v3215 = vadd.f32 0.0, %v3214
        %v3216 = vpop.f32.mrb[0].mxu0
        %3217 = vmatprep.mubr.bf16.mxu0 0
        %3218 = vmatmul.mubr.bf16.gmra.mrb[0].mxu0 %v3169
        %v3219 = vpop.f32.mrb[0].mxu0
        %v3220 = vadd.f32 0.0, %v3219
        %v3221 = vpop.f32.mrb[0].mxu0
        %v3222 = vpop.f32.mrb[0].mxu0
        %v3223 = vadd.f32 0.0, %v3222
        %v3224 = vpop.f32.mrb[0].mxu0
        %3225 = vmatprep.mubr.bf16.mxu0 0
        %3226 = vmatmul.mubr.bf16.gmra.mrb[0].mxu0 %v3172
        %v3227 = vpop.f32.mrb[0].mxu0
        %v3228 = vadd.f32 0.0, %v3227
        %v3229 = vpop.f32.mrb[0].mxu0
        %v3230 = vpop.f32.mrb[0].mxu0
        %v3231 = vadd.f32 0.0, %v3230
        %v3232 = vpop.f32.mrb[0].mxu0
        %3233 = vmatprep.mubr.bf16.mxu0 0
        %3234 = vmatmul.mubr.bf16.gmra.mrb[0].mxu0 %v3175
        %v3235 = vpop.f32.mrb[0].mxu0
        %v3236 = vadd.f32 0.0, %v3235
        %v3237 = vpop.f32.mrb[0].mxu0
        %v3238 = vpop.f32.mrb[0].mxu0
        %v3239 = vadd.f32 0.0, %v3238
        %v3240 = vpop.f32.mrb[0].mxu0
        %3241 = vdwg.mxu0
        %v3242 = vpack.c.bf16 %v3215, %v3212
        %v3243 = vpack.c.bf16 %v3223, %v3220
        %v3244 = vpack.c.bf16 %v3231, %v3228
        %v3245 = vpack.c.bf16 %v3239, %v3236
        %3250 = vrot.lane.b32.xlu0 %v2341, 64
        %v3251 = vpop.permute.xlu0 %3250
        %3252 = vrot.lane.b32.xlu0 %v2350, 64
        %v3253 = vpop.permute.xlu0 %3252
        %3254 = vrot.lane.b32.xlu0 %v2359, 64
        %v3255 = vpop.permute.xlu0 %3254
        %3256 = vrot.lane.b32.xlu0 %v2368, 64
        %v3257 = vpop.permute.xlu0 %3256
        %3262 = vrot.lane.b32.xlu0 %v2344, 64
        %v3263 = vpop.permute.xlu0 %3262
        %3264 = vrot.lane.b32.xlu0 %v2353, 64
        %v3265 = vpop.permute.xlu0 %3264
        %3266 = vrot.lane.b32.xlu0 %v2362, 64
        %v3267 = vpop.permute.xlu0 %3266
        %3268 = vrot.lane.b32.xlu0 %v2371, 64
        %v3269 = vpop.permute.xlu0 %3268
        %v3271 = vsel %vm2395, %v3251, 0
        %v3274 = vsel %vm2395, %v3253, 0
        %v3277 = vsel %vm2395, %v3255, 0
        %v3280 = vsel %vm2395, %v3257, 0
        %v3283 = vsel %vm2395, %v3263, 0
        %v3286 = vsel %vm2395, %v3265, 0
        %v3289 = vsel %vm2395, %v3267, 0
        %v3292 = vsel %vm2395, %v3269, 0
        %3294 = vmatprep.subr.bf16.mxu0 0
        %3295 = vmatpush1.bf16.xpose.msra.mxu0 %v3283
        %3296 = vmatprep.subr.bf16.mxu0 0
        %3297 = vmatpush1.bf16.xpose.msra.mxu0 %v3286
        %3298 = vmatprep.subr.bf16.mxu0 0
        %3299 = vmatpush1.bf16.xpose.msra.mxu0 %v3289
        %3300 = vmatprep.subr.bf16.mxu0 0
        %3301 = vmatpush1.bf16.xpose.msra.mxu0 %v3292
        %3302 = vmatprep.subr.bf16.mxu0 0
        %3303 = vmatpush1.bf16.xpose.msra.mxu0 0
        %3304 = vmatprep.subr.bf16.mxu0 0
        %3305 = vmatpush1.bf16.xpose.msra.mxu0 0
        %3306 = vmatprep.subr.bf16.mxu0 0
        %3307 = vmatpush1.bf16.xpose.msra.mxu0 0
        %3308 = vmatprep.subr.bf16.mxu0 0
        %3309 = vmatpush1.bf16.xpose.msra.mxu0 0
        %3310 = vmatprep.subr.bf16.mxu0 0
        %3311 = vmatpush1.bf16.xpose.msra.mxu0 0
        %3312 = vmatprep.subr.bf16.mxu0 0
        %3313 = vmatpush1.bf16.xpose.msra.mxu0 0
        %3314 = vmatprep.subr.bf16.mxu0 0
        %3315 = vmatpush1.bf16.xpose.msra.mxu0 0
        %3316 = vmatprep.subr.bf16.mxu0 0
        %3317 = vmatpush1.bf16.xpose.msra.mxu0 0
        %3318 = vmatprep.subr.bf16.mxu0 0
        %3319 = vmatpush1.bf16.xpose.msra.mxu0 0
        %3320 = vmatprep.subr.bf16.mxu0 0
        %3321 = vmatpush1.bf16.xpose.msra.mxu0 0
        %3322 = vmatprep.subr.bf16.mxu0 0
        %3323 = vmatpush1.bf16.xpose.msra.mxu0 0
        %3324 = vmatprep.subr.bf16.mxu0 0
        %3325 = vmatpush1.bf16.xpose.msra.mxu0 0
        %3326 = vmatprep.mubr.bf16.mxu0 0
        %3327 = vmatmul.mubr.bf16.gmra.mrb[0].mxu0 %v3271
        %v3328 = vpop.f32.mrb[0].mxu0
        %v3329 = vadd.f32 0.0, %v3328
        %v3330 = vpop.f32.mrb[0].mxu0
        %v3331 = vpop.f32.mrb[0].mxu0
        %v3332 = vadd.f32 0.0, %v3331
        %v3333 = vpop.f32.mrb[0].mxu0
        %3334 = vmatprep.mubr.bf16.mxu0 0
        %3335 = vmatmul.mubr.bf16.gmra.mrb[0].mxu0 %v3274
        %v3336 = vpop.f32.mrb[0].mxu0
        %v3337 = vadd.f32 0.0, %v3336
        %v3338 = vpop.f32.mrb[0].mxu0
        %v3339 = vpop.f32.mrb[0].mxu0
        %v3340 = vadd.f32 0.0, %v3339
        %v3341 = vpop.f32.mrb[0].mxu0
        %3342 = vmatprep.mubr.bf16.mxu0 0
        %3343 = vmatmul.mubr.bf16.gmra.mrb[0].mxu0 %v3277
        %v3344 = vpop.f32.mrb[0].mxu0
        %v3345 = vadd.f32 0.0, %v3344
        %v3346 = vpop.f32.mrb[0].mxu0
        %v3347 = vpop.f32.mrb[0].mxu0
        %v3348 = vadd.f32 0.0, %v3347
        %v3349 = vpop.f32.mrb[0].mxu0
        %3350 = vmatprep.mubr.bf16.mxu0 0
        %3351 = vmatmul.mubr.bf16.gmra.mrb[0].mxu0 %v3280
        %v3352 = vpop.f32.mrb[0].mxu0
        %v3353 = vadd.f32 0.0, %v3352
        %v3354 = vpop.f32.mrb[0].mxu0
        %v3355 = vpop.f32.mrb[0].mxu0
        %v3356 = vadd.f32 0.0, %v3355
        %v3357 = vpop.f32.mrb[0].mxu0
        %3358 = vdwg.mxu0
        %v3359 = vsel %vm2387, %v3329, -1e+30
        %v3360 = vsel %vm2388, %v3332, -1e+30
        %v3361 = vsel %vm2389, %v3337, -1e+30
        %v3362 = vsel %vm2390, %v3340, -1e+30
        %v3363 = vsel %vm2391, %v3345, -1e+30
        %v3364 = vsel %vm2392, %v3348, -1e+30
        %v3365 = vsel %vm2393, %v3353, -1e+30
        %v3366 = vsel %vm2394, %v3356, -1e+30
        %v3367 = vsel %vm2395, %v3359, -inf
        %3368 = vmax.xlane.f32.xlu0 %v3367
        %v3369 = vpop.xlane.xlu0 %3368
        %v3370 = vsel %vm2395, %v3360, -inf
        %3371 = vmax.xlane.f32.xlu0 %v3370
        %v3372 = vpop.xlane.xlu0 %3371
        %v3373 = vsel %vm2395, %v3361, -inf
        %3374 = vmax.xlane.f32.xlu0 %v3373
        %v3375 = vpop.xlane.xlu0 %3374
        %v3376 = vsel %vm2395, %v3362, -inf
        %3377 = vmax.xlane.f32.xlu0 %v3376
        %v3378 = vpop.xlane.xlu0 %3377
        %v3379 = vsel %vm2395, %v3363, -inf
        %3380 = vmax.xlane.f32.xlu0 %v3379
        %v3381 = vpop.xlane.xlu0 %3380
        %v3382 = vsel %vm2395, %v3364, -inf
        %3383 = vmax.xlane.f32.xlu0 %v3382
        %v3384 = vpop.xlane.xlu0 %3383
        %v3385 = vsel %vm2395, %v3365, -inf
        %3386 = vmax.xlane.f32.xlu0 %v3385
        %v3387 = vpop.xlane.xlu0 %3386
        %v3388 = vsel %vm2395, %v3366, -inf
        %3389 = vmax.xlane.f32.xlu0 %v3388
        %v3390 = vpop.xlane.xlu0 %3389
        %v3391 = vsub.f32 %v3359, %v3369
        %v3392 = vsub.f32 %v3360, %v3372
        %v3393 = vsub.f32 %v3361, %v3375
        %v3394 = vsub.f32 %v3362, %v3378
        %v3395 = vsub.f32 %v3363, %v3381
        %v3396 = vsub.f32 %v3364, %v3384
        %v3397 = vsub.f32 %v3365, %v3387
        %v3398 = vsub.f32 %v3366, %v3390
        %v3399 = vmul.f32 %v3391, 1.442695
        %v3400 = vpow.pop %v3399
        %v3401 = vmul.f32 %v3392, 1.442695
        %v3402 = vpow.pop %v3401
        %v3403 = vmul.f32 %v3393, 1.442695
        %v3404 = vpow.pop %v3403
        %v3405 = vmul.f32 %v3394, 1.442695
        %v3406 = vpow.pop %v3405
        %v3407 = vmul.f32 %v3395, 1.442695
        %v3408 = vpow.pop %v3407
        %v3409 = vmul.f32 %v3396, 1.442695
        %v3410 = vpow.pop %v3409
        %v3411 = vmul.f32 %v3397, 1.442695
        %v3412 = vpow.pop %v3411
        %v3413 = vmul.f32 %v3398, 1.442695
        %v3414 = vpow.pop %v3413
        %v3415 = vsel %vm2395, %v3400, 0.0
        %3416 = vadd.xlane.f32.xlu0 %v3415
        %v3417 = vpop.xlane.xlu0 %3416
        %v3418 = vsel %vm2395, %v3402, 0.0
        %3419 = vadd.xlane.f32.xlu0 %v3418
        %v3420 = vpop.xlane.xlu0 %3419
        %v3421 = vsel %vm2395, %v3404, 0.0
        %3422 = vadd.xlane.f32.xlu0 %v3421
        %v3423 = vpop.xlane.xlu0 %3422
        %v3424 = vsel %vm2395, %v3406, 0.0
        %3425 = vadd.xlane.f32.xlu0 %v3424
        %v3426 = vpop.xlane.xlu0 %3425
        %v3427 = vsel %vm2395, %v3408, 0.0
        %3428 = vadd.xlane.f32.xlu0 %v3427
        %v3429 = vpop.xlane.xlu0 %3428
        %v3430 = vsel %vm2395, %v3410, 0.0
        %3431 = vadd.xlane.f32.xlu0 %v3430
        %v3432 = vpop.xlane.xlu0 %3431
        %v3433 = vsel %vm2395, %v3412, 0.0
        %3434 = vadd.xlane.f32.xlu0 %v3433
        %v3435 = vpop.xlane.xlu0 %3434
        %v3436 = vsel %vm2395, %v3414, 0.0
        %3437 = vadd.xlane.f32.xlu0 %v3436
        %v3438 = vpop.xlane.xlu0 %3437
        %v3439 = vrcp.pop %v3417
        %v3440 = vrcp.pop %v3420
        %v3441 = vrcp.pop %v3423
        %v3442 = vrcp.pop %v3426
        %v3443 = vrcp.pop %v3429
        %v3444 = vrcp.pop %v3432
        %v3445 = vrcp.pop %v3435
        %v3446 = vrcp.pop %v3438
        %v3447 = vmul.f32 %v3400, %v3439
        %v3448 = vmul.f32 %v3402, %v3440
        %v3449 = vmul.f32 %v3404, %v3441
        %v3450 = vmul.f32 %v3406, %v3442
        %v3451 = vmul.f32 %v3408, %v3443
        %v3452 = vmul.f32 %v3410, %v3444
        %v3453 = vmul.f32 %v3412, %v3445
        %v3454 = vmul.f32 %v3414, %v3446
        %v3455 = vpack.c.bf16 %v3448, %v3447
        %v3456 = vpack.c.bf16 %v3450, %v3449
        %v3457 = vpack.c.bf16 %v3452, %v3451
        %v3458 = vpack.c.bf16 %v3454, %v3453
        %3463 = vrot.lane.b32.xlu0 %v2347, 64
        %v3464 = vpop.permute.xlu0 %3463
        %3465 = vrot.lane.b32.xlu0 %v2356, 64
        %v3466 = vpop.permute.xlu0 %3465
        %3467 = vrot.lane.b32.xlu0 %v2365, 64
        %v3468 = vpop.permute.xlu0 %3467
        %3469 = vrot.lane.b32.xlu0 %v2374, 64
        %v3470 = vpop.permute.xlu0 %3469
        %v3476 = vsel %vm2395, %v3455, 0
        %v3479 = vsel %vm2395, %v3456, 0
        %v3482 = vsel %vm2395, %v3457, 0
        %v3485 = vsel %vm2395, %v3458, 0
        %3487 = vmatprep.subr.bf16.mxu0 0
        %3488 = vmatpush1.bf16.msra.mxu0 %v3464
        %3489 = vmatprep.subr.bf16.mxu0 0
        %3490 = vmatpush1.bf16.msra.mxu0 %v3466
        %3491 = vmatprep.subr.bf16.mxu0 0
        %3492 = vmatpush1.bf16.msra.mxu0 %v3468
        %3493 = vmatprep.subr.bf16.mxu0 0
        %3494 = vmatpush1.bf16.msra.mxu0 %v3470
        %3495 = vmatprep.subr.bf16.mxu0 0
        %3496 = vmatpush1.bf16.msra.mxu0 0
        %3497 = vmatprep.subr.bf16.mxu0 0
        %3498 = vmatpush1.bf16.msra.mxu0 0
        %3499 = vmatprep.subr.bf16.mxu0 0
        %3500 = vmatpush1.bf16.msra.mxu0 0
        %3501 = vmatprep.subr.bf16.mxu0 0
        %3502 = vmatpush1.bf16.msra.mxu0 0
        %3503 = vmatprep.subr.bf16.mxu0 0
        %3504 = vmatpush1.bf16.msra.mxu0 0
        %3505 = vmatprep.subr.bf16.mxu0 0
        %3506 = vmatpush1.bf16.msra.mxu0 0
        %3507 = vmatprep.subr.bf16.mxu0 0
        %3508 = vmatpush1.bf16.msra.mxu0 0
        %3509 = vmatprep.subr.bf16.mxu0 0
        %3510 = vmatpush1.bf16.msra.mxu0 0
        %3511 = vmatprep.subr.bf16.mxu0 0
        %3512 = vmatpush1.bf16.msra.mxu0 0
        %3513 = vmatprep.subr.bf16.mxu0 0
        %3514 = vmatpush1.bf16.msra.mxu0 0
        %3515 = vmatprep.subr.bf16.mxu0 0
        %3516 = vmatpush1.bf16.msra.mxu0 0
        %3517 = vmatprep.subr.bf16.mxu0 0
        %3518 = vmatpush1.bf16.msra.mxu0 0
        %3519 = vmatprep.mubr.bf16.mxu0 0
        %3520 = vmatmul.mubr.bf16.gmra.mrb[0].mxu0 %v3476
        %v3521 = vpop.f32.mrb[0].mxu0
        %v3522 = vadd.f32 0.0, %v3521
        %v3523 = vpop.f32.mrb[0].mxu0
        %v3524 = vpop.f32.mrb[0].mxu0
        %v3525 = vadd.f32 0.0, %v3524
        %v3526 = vpop.f32.mrb[0].mxu0
        %3527 = vmatprep.mubr.bf16.mxu0 0
        %3528 = vmatmul.mubr.bf16.gmra.mrb[0].mxu0 %v3479
        %v3529 = vpop.f32.mrb[0].mxu0
        %v3530 = vadd.f32 0.0, %v3529
        %v3531 = vpop.f32.mrb[0].mxu0
        %v3532 = vpop.f32.mrb[0].mxu0
        %v3533 = vadd.f32 0.0, %v3532
        %v3534 = vpop.f32.mrb[0].mxu0
        %3535 = vmatprep.mubr.bf16.mxu0 0
        %3536 = vmatmul.mubr.bf16.gmra.mrb[0].mxu0 %v3482
        %v3537 = vpop.f32.mrb[0].mxu0
        %v3538 = vadd.f32 0.0, %v3537
        %v3539 = vpop.f32.mrb[0].mxu0
        %v3540 = vpop.f32.mrb[0].mxu0
        %v3541 = vadd.f32 0.0, %v3540
        %v3542 = vpop.f32.mrb[0].mxu0
        %3543 = vmatprep.mubr.bf16.mxu0 0
        %3544 = vmatmul.mubr.bf16.gmra.mrb[0].mxu0 %v3485
        %v3545 = vpop.f32.mrb[0].mxu0
        %v3546 = vadd.f32 0.0, %v3545
        %v3547 = vpop.f32.mrb[0].mxu0
        %v3548 = vpop.f32.mrb[0].mxu0
        %v3549 = vadd.f32 0.0, %v3548
        %v3550 = vpop.f32.mrb[0].mxu0
        %3551 = vdwg.mxu0
        %v3552 = vpack.c.bf16 %v3525, %v3522
        %v3553 = vpack.c.bf16 %v3533, %v3530
        %v3554 = vpack.c.bf16 %v3541, %v3538
        %v3555 = vpack.c.bf16 %v3549, %v3546
        %v3557 = vsel %vm2395, %v2342, 0
        %v3560 = vsel %vm2395, %v2351, 0
        %v3563 = vsel %vm2395, %v2360, 0
        %v3566 = vsel %vm2395, %v2369, 0
        %v3569 = vsel %vm2395, %v2345, 0
        %v3572 = vsel %vm2395, %v2354, 0
        %v3575 = vsel %vm2395, %v2363, 0
        %v3578 = vsel %vm2395, %v2372, 0
        %3580 = vmatprep.subr.bf16.mxu0 0
        %3581 = vmatpush1.bf16.xpose.msra.mxu0 %v3569
        %3582 = vmatprep.subr.bf16.mxu0 0
        %3583 = vmatpush1.bf16.xpose.msra.mxu0 %v3572
        %3584 = vmatprep.subr.bf16.mxu0 0
        %3585 = vmatpush1.bf16.xpose.msra.mxu0 %v3575
        %3586 = vmatprep.subr.bf16.mxu0 0
        %3587 = vmatpush1.bf16.xpose.msra.mxu0 %v3578
        %3588 = vmatprep.subr.bf16.mxu0 0
        %3589 = vmatpush1.bf16.xpose.msra.mxu0 0
        %3590 = vmatprep.subr.bf16.mxu0 0
        %3591 = vmatpush1.bf16.xpose.msra.mxu0 0
        %3592 = vmatprep.subr.bf16.mxu0 0
        %3593 = vmatpush1.bf16.xpose.msra.mxu0 0
        %3594 = vmatprep.subr.bf16.mxu0 0
        %3595 = vmatpush1.bf16.xpose.msra.mxu0 0
        %3596 = vmatprep.subr.bf16.mxu0 0
        %3597 = vmatpush1.bf16.xpose.msra.mxu0 0
        %3598 = vmatprep.subr.bf16.mxu0 0
        %3599 = vmatpush1.bf16.xpose.msra.mxu0 0
        %3600 = vmatprep.subr.bf16.mxu0 0
        %3601 = vmatpush1.bf16.xpose.msra.mxu0 0
        %3602 = vmatprep.subr.bf16.mxu0 0
        %3603 = vmatpush1.bf16.xpose.msra.mxu0 0
        %3604 = vmatprep.subr.bf16.mxu0 0
        %3605 = vmatpush1.bf16.xpose.msra.mxu0 0
        %3606 = vmatprep.subr.bf16.mxu0 0
        %3607 = vmatpush1.bf16.xpose.msra.mxu0 0
        %3608 = vmatprep.subr.bf16.mxu0 0
        %3609 = vmatpush1.bf16.xpose.msra.mxu0 0
        %3610 = vmatprep.subr.bf16.mxu0 0
        %3611 = vmatpush1.bf16.xpose.msra.mxu0 0
        %3612 = vmatprep.mubr.bf16.mxu0 0
        %3613 = vmatmul.mubr.bf16.gmra.mrb[0].mxu0 %v3557
        %v3614 = vpop.f32.mrb[0].mxu0
        %v3615 = vadd.f32 0.0, %v3614
        %v3616 = vpop.f32.mrb[0].mxu0
        %v3617 = vpop.f32.mrb[0].mxu0
        %v3618 = vadd.f32 0.0, %v3617
        %v3619 = vpop.f32.mrb[0].mxu0
        %3620 = vmatprep.mubr.bf16.mxu0 0
        %3621 = vmatmul.mubr.bf16.gmra.mrb[0].mxu0 %v3560
        %v3622 = vpop.f32.mrb[0].mxu0
        %v3623 = vadd.f32 0.0, %v3622
        %v3624 = vpop.f32.mrb[0].mxu0
        %v3625 = vpop.f32.mrb[0].mxu0
        %v3626 = vadd.f32 0.0, %v3625
        %v3627 = vpop.f32.mrb[0].mxu0
        %3628 = vmatprep.mubr.bf16.mxu0 0
        %3629 = vmatmul.mubr.bf16.gmra.mrb[0].mxu0 %v3563
        %v3630 = vpop.f32.mrb[0].mxu0
        %v3631 = vadd.f32 0.0, %v3630
        %v3632 = vpop.f32.mrb[0].mxu0
        %v3633 = vpop.f32.mrb[0].mxu0
        %v3634 = vadd.f32 0.0, %v3633
        %v3635 = vpop.f32.mrb[0].mxu0
        %3636 = vmatprep.mubr.bf16.mxu0 0
        %3637 = vmatmul.mubr.bf16.gmra.mrb[0].mxu0 %v3566
        %v3638 = vpop.f32.mrb[0].mxu0
        %v3639 = vadd.f32 0.0, %v3638
        %v3640 = vpop.f32.mrb[0].mxu0
        %v3641 = vpop.f32.mrb[0].mxu0
        %v3642 = vadd.f32 0.0, %v3641
        %v3643 = vpop.f32.mrb[0].mxu0
        %3644 = vdwg.mxu0
        %v3645 = vsel %vm2387, %v3615, -1e+30
        %v3646 = vsel %vm2388, %v3618, -1e+30
        %v3647 = vsel %vm2389, %v3623, -1e+30
        %v3648 = vsel %vm2390, %v3626, -1e+30
        %v3649 = vsel %vm2391, %v3631, -1e+30
        %v3650 = vsel %vm2392, %v3634, -1e+30
        %v3651 = vsel %vm2393, %v3639, -1e+30
        %v3652 = vsel %vm2394, %v3642, -1e+30
        %v3653 = vsel %vm2395, %v3645, -inf
        %3654 = vmax.xlane.f32.xlu0 %v3653
        %v3655 = vpop.xlane.xlu0 %3654
        %v3656 = vsel %vm2395, %v3646, -inf
        %3657 = vmax.xlane.f32.xlu0 %v3656
        %v3658 = vpop.xlane.xlu0 %3657
        %v3659 = vsel %vm2395, %v3647, -inf
        %3660 = vmax.xlane.f32.xlu0 %v3659
        %v3661 = vpop.xlane.xlu0 %3660
        %v3662 = vsel %vm2395, %v3648, -inf
        %3663 = vmax.xlane.f32.xlu0 %v3662
        %v3664 = vpop.xlane.xlu0 %3663
        %v3665 = vsel %vm2395, %v3649, -inf
        %3666 = vmax.xlane.f32.xlu0 %v3665
        %v3667 = vpop.xlane.xlu0 %3666
        %v3668 = vsel %vm2395, %v3650, -inf
        %3669 = vmax.xlane.f32.xlu0 %v3668
        %v3670 = vpop.xlane.xlu0 %3669
        %v3671 = vsel %vm2395, %v3651, -inf
        %3672 = vmax.xlane.f32.xlu0 %v3671
        %v3673 = vpop.xlane.xlu0 %3672
        %v3674 = vsel %vm2395, %v3652, -inf
        %3675 = vmax.xlane.f32.xlu0 %v3674
        %v3676 = vpop.xlane.xlu0 %3675
        %v3677 = vsub.f32 %v3645, %v3655
        %v3678 = vsub.f32 %v3646, %v3658
        %v3679 = vsub.f32 %v3647, %v3661
        %v3680 = vsub.f32 %v3648, %v3664
        %v3681 = vsub.f32 %v3649, %v3667
        %v3682 = vsub.f32 %v3650, %v3670
        %v3683 = vsub.f32 %v3651, %v3673
        %v3684 = vsub.f32 %v3652, %v3676
        %v3685 = vmul.f32 %v3677, 1.442695
        %v3686 = vpow.pop %v3685
        %v3687 = vmul.f32 %v3678, 1.442695
        %v3688 = vpow.pop %v3687
        %v3689 = vmul.f32 %v3679, 1.442695
        %v3690 = vpow.pop %v3689
        %v3691 = vmul.f32 %v3680, 1.442695
        %v3692 = vpow.pop %v3691
        %v3693 = vmul.f32 %v3681, 1.442695
        %v3694 = vpow.pop %v3693
        %v3695 = vmul.f32 %v3682, 1.442695
        %v3696 = vpow.pop %v3695
        %v3697 = vmul.f32 %v3683, 1.442695
        %v3698 = vpow.pop %v3697
        %v3699 = vmul.f32 %v3684, 1.442695
        %v3700 = vpow.pop %v3699
        %v3701 = vsel %vm2395, %v3686, 0.0
        %3702 = vadd.xlane.f32.xlu0 %v3701
        %v3703 = vpop.xlane.xlu0 %3702
        %v3704 = vsel %vm2395, %v3688, 0.0
        %3705 = vadd.xlane.f32.xlu0 %v3704
        %v3706 = vpop.xlane.xlu0 %3705
        %v3707 = vsel %vm2395, %v3690, 0.0
        %3708 = vadd.xlane.f32.xlu0 %v3707
        %v3709 = vpop.xlane.xlu0 %3708
        %v3710 = vsel %vm2395, %v3692, 0.0
        %3711 = vadd.xlane.f32.xlu0 %v3710
        %v3712 = vpop.xlane.xlu0 %3711
        %v3713 = vsel %vm2395, %v3694, 0.0
        %3714 = vadd.xlane.f32.xlu0 %v3713
        %v3715 = vpop.xlane.xlu0 %3714
        %v3716 = vsel %vm2395, %v3696, 0.0
        %3717 = vadd.xlane.f32.xlu0 %v3716
        %v3718 = vpop.xlane.xlu0 %3717
        %v3719 = vsel %vm2395, %v3698, 0.0
        %3720 = vadd.xlane.f32.xlu0 %v3719
        %v3721 = vpop.xlane.xlu0 %3720
        %v3722 = vsel %vm2395, %v3700, 0.0
        %3723 = vadd.xlane.f32.xlu0 %v3722
        %v3724 = vpop.xlane.xlu0 %3723
        %v3725 = vrcp.pop %v3703
        %v3726 = vrcp.pop %v3706
        %v3727 = vrcp.pop %v3709
        %v3728 = vrcp.pop %v3712
        %v3729 = vrcp.pop %v3715
        %v3730 = vrcp.pop %v3718
        %v3731 = vrcp.pop %v3721
        %v3732 = vrcp.pop %v3724
        %v3733 = vmul.f32 %v3686, %v3725
        %v3734 = vmul.f32 %v3688, %v3726
        %v3735 = vmul.f32 %v3690, %v3727
        %v3736 = vmul.f32 %v3692, %v3728
        %v3737 = vmul.f32 %v3694, %v3729
        %v3738 = vmul.f32 %v3696, %v3730
        %v3739 = vmul.f32 %v3698, %v3731
        %v3740 = vmul.f32 %v3700, %v3732
        %v3741 = vpack.c.bf16 %v3734, %v3733
        %v3742 = vpack.c.bf16 %v3736, %v3735
        %v3743 = vpack.c.bf16 %v3738, %v3737
        %v3744 = vpack.c.bf16 %v3740, %v3739
        %v3746 = vsel %vm2395, %v3741, 0
        %v3749 = vsel %vm2395, %v3742, 0
        %v3752 = vsel %vm2395, %v3743, 0
        %v3755 = vsel %vm2395, %v3744, 0
        %3757 = vmatprep.subr.bf16.mxu0 0
        %3758 = vmatpush1.bf16.msra.mxu0 %v2348
        %3759 = vmatprep.subr.bf16.mxu0 0
        %3760 = vmatpush1.bf16.msra.mxu0 %v2357
        %3761 = vmatprep.subr.bf16.mxu0 0
        %3762 = vmatpush1.bf16.msra.mxu0 %v2366
        %3763 = vmatprep.subr.bf16.mxu0 0
        %3764 = vmatpush1.bf16.msra.mxu0 %v2375
        %3765 = vmatprep.subr.bf16.mxu0 0
        %3766 = vmatpush1.bf16.msra.mxu0 0
        %3767 = vmatprep.subr.bf16.mxu0 0
        %3768 = vmatpush1.bf16.msra.mxu0 0
        %3769 = vmatprep.subr.bf16.mxu0 0
        %3770 = vmatpush1.bf16.msra.mxu0 0
        %3771 = vmatprep.subr.bf16.mxu0 0
        %3772 = vmatpush1.bf16.msra.mxu0 0
        %3773 = vmatprep.subr.bf16.mxu0 0
        %3774 = vmatpush1.bf16.msra.mxu0 0
        %3775 = vmatprep.subr.bf16.mxu0 0
        %3776 = vmatpush1.bf16.msra.mxu0 0
        %3777 = vmatprep.subr.bf16.mxu0 0
        %3778 = vmatpush1.bf16.msra.mxu0 0
        %3779 = vmatprep.subr.bf16.mxu0 0
        %3780 = vmatpush1.bf16.msra.mxu0 0
        %3781 = vmatprep.subr.bf16.mxu0 0
        %3782 = vmatpush1.bf16.msra.mxu0 0
        %3783 = vmatprep.subr.bf16.mxu0 0
        %3784 = vmatpush1.bf16.msra.mxu0 0
        %3785 = vmatprep.subr.bf16.mxu0 0
        %3786 = vmatpush1.bf16.msra.mxu0 0
        %3787 = vmatprep.subr.bf16.mxu0 0
        %3788 = vmatpush1.bf16.msra.mxu0 0
        %3789 = vmatprep.mubr.bf16.mxu0 0
        %3790 = vmatmul.mubr.bf16.gmra.mrb[0].mxu0 %v3746
        %v3791 = vpop.f32.mrb[0].mxu0
        %v3792 = vadd.f32 0.0, %v3791
        %v3793 = vpop.f32.mrb[0].mxu0
        %v3794 = vpop.f32.mrb[0].mxu0
        %v3795 = vadd.f32 0.0, %v3794
        %v3796 = vpop.f32.mrb[0].mxu0
        %3797 = vmatprep.mubr.bf16.mxu0 0
        %3798 = vmatmul.mubr.bf16.gmra.mrb[0].mxu0 %v3749
        %v3799 = vpop.f32.mrb[0].mxu0
        %v3800 = vadd.f32 0.0, %v3799
        %v3801 = vpop.f32.mrb[0].mxu0
        %v3802 = vpop.f32.mrb[0].mxu0
        %v3803 = vadd.f32 0.0, %v3802
        %v3804 = vpop.f32.mrb[0].mxu0
        %3805 = vmatprep.mubr.bf16.mxu0 0
        %3806 = vmatmul.mubr.bf16.gmra.mrb[0].mxu0 %v3752
        %v3807 = vpop.f32.mrb[0].mxu0
        %v3808 = vadd.f32 0.0, %v3807
        %v3809 = vpop.f32.mrb[0].mxu0
        %v3810 = vpop.f32.mrb[0].mxu0
        %v3811 = vadd.f32 0.0, %v3810
        %v3812 = vpop.f32.mrb[0].mxu0
        %3813 = vmatprep.mubr.bf16.mxu0 0
        %3814 = vmatmul.mubr.bf16.gmra.mrb[0].mxu0 %v3755
        %v3815 = vpop.f32.mrb[0].mxu0
        %v3816 = vadd.f32 0.0, %v3815
        %v3817 = vpop.f32.mrb[0].mxu0
        %v3818 = vpop.f32.mrb[0].mxu0
        %v3819 = vadd.f32 0.0, %v3818
        %v3820 = vpop.f32.mrb[0].mxu0
        %3821 = vdwg.mxu0
        %v3822 = vpack.c.bf16 %v3795, %v3792
        %v3823 = vpack.c.bf16 %v3803, %v3800
        %v3824 = vpack.c.bf16 %v3811, %v3808
        %v3825 = vpack.c.bf16 %v3819, %v3816
        %3830 = vrot.lane.b32.xlu0 %v2342, 64
        %v3831 = vpop.permute.xlu0 %3830
        %3832 = vrot.lane.b32.xlu0 %v2351, 64
        %v3833 = vpop.permute.xlu0 %3832
        %3834 = vrot.lane.b32.xlu0 %v2360, 64
        %v3835 = vpop.permute.xlu0 %3834
        %3836 = vrot.lane.b32.xlu0 %v2369, 64
        %v3837 = vpop.permute.xlu0 %3836
        %3842 = vrot.lane.b32.xlu0 %v2345, 64
        %v3843 = vpop.permute.xlu0 %3842
        %3844 = vrot.lane.b32.xlu0 %v2354, 64
        %v3845 = vpop.permute.xlu0 %3844
        %3846 = vrot.lane.b32.xlu0 %v2363, 64
        %v3847 = vpop.permute.xlu0 %3846
        %3848 = vrot.lane.b32.xlu0 %v2372, 64
        %v3849 = vpop.permute.xlu0 %3848
        %v3851 = vsel %vm2395, %v3831, 0
        %v3854 = vsel %vm2395, %v3833, 0
        %v3857 = vsel %vm2395, %v3835, 0
        %v3860 = vsel %vm2395, %v3837, 0
        %v3863 = vsel %vm2395, %v3843, 0
        %v3866 = vsel %vm2395, %v3845, 0
        %v3869 = vsel %vm2395, %v3847, 0
        %v3872 = vsel %vm2395, %v3849, 0
        %3874 = vmatprep.subr.bf16.mxu0 0
        %3875 = vmatpush1.bf16.xpose.msra.mxu0 %v3863
        %3876 = vmatprep.subr.bf16.mxu0 0
        %3877 = vmatpush1.bf16.xpose.msra.mxu0 %v3866
        %3878 = vmatprep.subr.bf16.mxu0 0
        %3879 = vmatpush1.bf16.xpose.msra.mxu0 %v3869
        %3880 = vmatprep.subr.bf16.mxu0 0
        %3881 = vmatpush1.bf16.xpose.msra.mxu0 %v3872
        %3882 = vmatprep.subr.bf16.mxu0 0
        %3883 = vmatpush1.bf16.xpose.msra.mxu0 0
        %3884 = vmatprep.subr.bf16.mxu0 0
        %3885 = vmatpush1.bf16.xpose.msra.mxu0 0
        %3886 = vmatprep.subr.bf16.mxu0 0
        %3887 = vmatpush1.bf16.xpose.msra.mxu0 0
        %3888 = vmatprep.subr.bf16.mxu0 0
        %3889 = vmatpush1.bf16.xpose.msra.mxu0 0
        %3890 = vmatprep.subr.bf16.mxu0 0
        %3891 = vmatpush1.bf16.xpose.msra.mxu0 0
        %3892 = vmatprep.subr.bf16.mxu0 0
        %3893 = vmatpush1.bf16.xpose.msra.mxu0 0
        %3894 = vmatprep.subr.bf16.mxu0 0
        %3895 = vmatpush1.bf16.xpose.msra.mxu0 0
        %3896 = vmatprep.subr.bf16.mxu0 0
        %3897 = vmatpush1.bf16.xpose.msra.mxu0 0
        %3898 = vmatprep.subr.bf16.mxu0 0
        %3899 = vmatpush1.bf16.xpose.msra.mxu0 0
        %3900 = vmatprep.subr.bf16.mxu0 0
        %3901 = vmatpush1.bf16.xpose.msra.mxu0 0
        %3902 = vmatprep.subr.bf16.mxu0 0
        %3903 = vmatpush1.bf16.xpose.msra.mxu0 0
        %3904 = vmatprep.subr.bf16.mxu0 0
        %3905 = vmatpush1.bf16.xpose.msra.mxu0 0
        %3906 = vmatprep.mubr.bf16.mxu0 0
        %3907 = vmatmul.mubr.bf16.gmra.mrb[0].mxu0 %v3851
        %v3908 = vpop.f32.mrb[0].mxu0
        %v3909 = vadd.f32 0.0, %v3908
        %v3910 = vpop.f32.mrb[0].mxu0
        %v3911 = vpop.f32.mrb[0].mxu0
        %v3912 = vadd.f32 0.0, %v3911
        %v3913 = vpop.f32.mrb[0].mxu0
        %3914 = vmatprep.mubr.bf16.mxu0 0
        %3915 = vmatmul.mubr.bf16.gmra.mrb[0].mxu0 %v3854
        %v3916 = vpop.f32.mrb[0].mxu0
        %v3917 = vadd.f32 0.0, %v3916
        %v3918 = vpop.f32.mrb[0].mxu0
        %v3919 = vpop.f32.mrb[0].mxu0
        %v3920 = vadd.f32 0.0, %v3919
        %v3921 = vpop.f32.mrb[0].mxu0
        %3922 = vmatprep.mubr.bf16.mxu0 0
        %3923 = vmatmul.mubr.bf16.gmra.mrb[0].mxu0 %v3857
        %v3924 = vpop.f32.mrb[0].mxu0
        %v3925 = vadd.f32 0.0, %v3924
        %v3926 = vpop.f32.mrb[0].mxu0
        %v3927 = vpop.f32.mrb[0].mxu0
        %v3928 = vadd.f32 0.0, %v3927
        %v3929 = vpop.f32.mrb[0].mxu0
        %3930 = vmatprep.mubr.bf16.mxu0 0
        %3931 = vmatmul.mubr.bf16.gmra.mrb[0].mxu0 %v3860
        %v3932 = vpop.f32.mrb[0].mxu0
        %v3933 = vadd.f32 0.0, %v3932
        %v3934 = vpop.f32.mrb[0].mxu0
        %v3935 = vpop.f32.mrb[0].mxu0
        %v3936 = vadd.f32 0.0, %v3935
        %v3937 = vpop.f32.mrb[0].mxu0
        %3938 = vdwg.mxu0
        %v3939 = vsel %vm2387, %v3909, -1e+30
        %v3940 = vsel %vm2388, %v3912, -1e+30
        %v3941 = vsel %vm2389, %v3917, -1e+30
        %v3942 = vsel %vm2390, %v3920, -1e+30
        %v3943 = vsel %vm2391, %v3925, -1e+30
        %v3944 = vsel %vm2392, %v3928, -1e+30
        %v3945 = vsel %vm2393, %v3933, -1e+30
        %v3946 = vsel %vm2394, %v3936, -1e+30
        %v3947 = vsel %vm2395, %v3939, -inf
        %3948 = vmax.xlane.f32.xlu0 %v3947
        %v3949 = vpop.xlane.xlu0 %3948
        %v3950 = vsel %vm2395, %v3940, -inf
        %3951 = vmax.xlane.f32.xlu0 %v3950
        %v3952 = vpop.xlane.xlu0 %3951
        %v3953 = vsel %vm2395, %v3941, -inf
        %3954 = vmax.xlane.f32.xlu0 %v3953
        %v3955 = vpop.xlane.xlu0 %3954
        %v3956 = vsel %vm2395, %v3942, -inf
        %3957 = vmax.xlane.f32.xlu0 %v3956
        %v3958 = vpop.xlane.xlu0 %3957
        %v3959 = vsel %vm2395, %v3943, -inf
        %3960 = vmax.xlane.f32.xlu0 %v3959
        %v3961 = vpop.xlane.xlu0 %3960
        %v3962 = vsel %vm2395, %v3944, -inf
        %3963 = vmax.xlane.f32.xlu0 %v3962
        %v3964 = vpop.xlane.xlu0 %3963
        %v3965 = vsel %vm2395, %v3945, -inf
        %3966 = vmax.xlane.f32.xlu0 %v3965
        %v3967 = vpop.xlane.xlu0 %3966
        %v3968 = vsel %vm2395, %v3946, -inf
        %3969 = vmax.xlane.f32.xlu0 %v3968
        %v3970 = vpop.xlane.xlu0 %3969
        %v3971 = vsub.f32 %v3939, %v3949
        %v3972 = vsub.f32 %v3940, %v3952
        %v3973 = vsub.f32 %v3941, %v3955
        %v3974 = vsub.f32 %v3942, %v3958
        %v3975 = vsub.f32 %v3943, %v3961
        %v3976 = vsub.f32 %v3944, %v3964
        %v3977 = vsub.f32 %v3945, %v3967
        %v3978 = vsub.f32 %v3946, %v3970
        %v3979 = vmul.f32 %v3971, 1.442695
        %v3980 = vpow.pop %v3979
        %v3981 = vmul.f32 %v3972, 1.442695
        %v3982 = vpow.pop %v3981
        %v3983 = vmul.f32 %v3973, 1.442695
        %v3984 = vpow.pop %v3983
        %v3985 = vmul.f32 %v3974, 1.442695
        %v3986 = vpow.pop %v3985
        %v3987 = vmul.f32 %v3975, 1.442695
        %v3988 = vpow.pop %v3987
        %v3989 = vmul.f32 %v3976, 1.442695
        %v3990 = vpow.pop %v3989
        %v3991 = vmul.f32 %v3977, 1.442695
        %v3992 = vpow.pop %v3991
        %v3993 = vmul.f32 %v3978, 1.442695
        %v3994 = vpow.pop %v3993
        %v3995 = vsel %vm2395, %v3980, 0.0
        %3996 = vadd.xlane.f32.xlu0 %v3995
        %v3997 = vpop.xlane.xlu0 %3996
        %v3998 = vsel %vm2395, %v3982, 0.0
        %3999 = vadd.xlane.f32.xlu0 %v3998
        %v4000 = vpop.xlane.xlu0 %3999
        %v4001 = vsel %vm2395, %v3984, 0.0
        %4002 = vadd.xlane.f32.xlu0 %v4001
        %v4003 = vpop.xlane.xlu0 %4002
        %v4004 = vsel %vm2395, %v3986, 0.0
        %4005 = vadd.xlane.f32.xlu0 %v4004
        %v4006 = vpop.xlane.xlu0 %4005
        %v4007 = vsel %vm2395, %v3988, 0.0
        %4008 = vadd.xlane.f32.xlu0 %v4007
        %v4009 = vpop.xlane.xlu0 %4008
        %v4010 = vsel %vm2395, %v3990, 0.0
        %4011 = vadd.xlane.f32.xlu0 %v4010
        %v4012 = vpop.xlane.xlu0 %4011
        %v4013 = vsel %vm2395, %v3992, 0.0
        %4014 = vadd.xlane.f32.xlu0 %v4013
        %v4015 = vpop.xlane.xlu0 %4014
        %v4016 = vsel %vm2395, %v3994, 0.0
        %4017 = vadd.xlane.f32.xlu0 %v4016
        %v4018 = vpop.xlane.xlu0 %4017
        %v4019 = vrcp.pop %v3997
        %v4020 = vrcp.pop %v4000
        %v4021 = vrcp.pop %v4003
        %v4022 = vrcp.pop %v4006
        %v4023 = vrcp.pop %v4009
        %v4024 = vrcp.pop %v4012
        %v4025 = vrcp.pop %v4015
        %v4026 = vrcp.pop %v4018
        %v4027 = vmul.f32 %v3980, %v4019
        %v4028 = vmul.f32 %v3982, %v4020
        %v4029 = vmul.f32 %v3984, %v4021
        %v4030 = vmul.f32 %v3986, %v4022
        %v4031 = vmul.f32 %v3988, %v4023
        %v4032 = vmul.f32 %v3990, %v4024
        %v4033 = vmul.f32 %v3992, %v4025
        %v4034 = vmul.f32 %v3994, %v4026
        %v4035 = vpack.c.bf16 %v4028, %v4027
        %v4036 = vpack.c.bf16 %v4030, %v4029
        %v4037 = vpack.c.bf16 %v4032, %v4031
        %v4038 = vpack.c.bf16 %v4034, %v4033
        %4043 = vrot.lane.b32.xlu0 %v2348, 64
        %v4044 = vpop.permute.xlu0 %4043
        %4045 = vrot.lane.b32.xlu0 %v2357, 64
        %v4046 = vpop.permute.xlu0 %4045
        %4047 = vrot.lane.b32.xlu0 %v2366, 64
        %v4048 = vpop.permute.xlu0 %4047
        %4049 = vrot.lane.b32.xlu0 %v2375, 64
        %v4050 = vpop.permute.xlu0 %4049
        %v4056 = vsel %vm2395, %v4035, 0
        %v4059 = vsel %vm2395, %v4036, 0
        %v4062 = vsel %vm2395, %v4037, 0
        %v4065 = vsel %vm2395, %v4038, 0
        %4067 = vmatprep.subr.bf16.mxu0 0
        %4068 = vmatpush1.bf16.msra.mxu0 %v4044
        %4069 = vmatprep.subr.bf16.mxu0 0
        %4070 = vmatpush1.bf16.msra.mxu0 %v4046
        %4071 = vmatprep.subr.bf16.mxu0 0
        %4072 = vmatpush1.bf16.msra.mxu0 %v4048
        %4073 = vmatprep.subr.bf16.mxu0 0
        %4074 = vmatpush1.bf16.msra.mxu0 %v4050
        %4075 = vmatprep.subr.bf16.mxu0 0
        %4076 = vmatpush1.bf16.msra.mxu0 0
        %4077 = vmatprep.subr.bf16.mxu0 0
        %4078 = vmatpush1.bf16.msra.mxu0 0
        %4079 = vmatprep.subr.bf16.mxu0 0
        %4080 = vmatpush1.bf16.msra.mxu0 0
        %4081 = vmatprep.subr.bf16.mxu0 0
        %4082 = vmatpush1.bf16.msra.mxu0 0
        %4083 = vmatprep.subr.bf16.mxu0 0
        %4084 = vmatpush1.bf16.msra.mxu0 0
        %4085 = vmatprep.subr.bf16.mxu0 0
        %4086 = vmatpush1.bf16.msra.mxu0 0
        %4087 = vmatprep.subr.bf16.mxu0 0
        %4088 = vmatpush1.bf16.msra.mxu0 0
        %4089 = vmatprep.subr.bf16.mxu0 0
        %4090 = vmatpush1.bf16.msra.mxu0 0
        %4091 = vmatprep.subr.bf16.mxu0 0
        %4092 = vmatpush1.bf16.msra.mxu0 0
        %4093 = vmatprep.subr.bf16.mxu0 0
        %4094 = vmatpush1.bf16.msra.mxu0 0
        %4095 = vmatprep.subr.bf16.mxu0 0
        %4096 = vmatpush1.bf16.msra.mxu0 0
        %4097 = vmatprep.subr.bf16.mxu0 0
        %4098 = vmatpush1.bf16.msra.mxu0 0
        %4099 = vmatprep.mubr.bf16.mxu0 0
        %4100 = vmatmul.mubr.bf16.gmra.mrb[0].mxu0 %v4056
        %v4101 = vpop.f32.mrb[0].mxu0
        %v4102 = vadd.f32 0.0, %v4101
        %v4103 = vpop.f32.mrb[0].mxu0
        %v4104 = vpop.f32.mrb[0].mxu0
        %v4105 = vadd.f32 0.0, %v4104
        %v4106 = vpop.f32.mrb[0].mxu0
        %4107 = vmatprep.mubr.bf16.mxu0 0
        %4108 = vmatmul.mubr.bf16.gmra.mrb[0].mxu0 %v4059
        %v4109 = vpop.f32.mrb[0].mxu0
        %v4110 = vadd.f32 0.0, %v4109
        %v4111 = vpop.f32.mrb[0].mxu0
        %v4112 = vpop.f32.mrb[0].mxu0
        %v4113 = vadd.f32 0.0, %v4112
        %v4114 = vpop.f32.mrb[0].mxu0
        %4115 = vmatprep.mubr.bf16.mxu0 0
        %4116 = vmatmul.mubr.bf16.gmra.mrb[0].mxu0 %v4062
        %v4117 = vpop.f32.mrb[0].mxu0
        %v4118 = vadd.f32 0.0, %v4117
        %v4119 = vpop.f32.mrb[0].mxu0
        %v4120 = vpop.f32.mrb[0].mxu0
        %v4121 = vadd.f32 0.0, %v4120
        %v4122 = vpop.f32.mrb[0].mxu0
        %4123 = vmatprep.mubr.bf16.mxu0 0
        %4124 = vmatmul.mubr.bf16.gmra.mrb[0].mxu0 %v4065
        %v4125 = vpop.f32.mrb[0].mxu0
        %v4126 = vadd.f32 0.0, %v4125
        %v4127 = vpop.f32.mrb[0].mxu0
        %v4128 = vpop.f32.mrb[0].mxu0
        %v4129 = vadd.f32 0.0, %v4128
        %v4130 = vpop.f32.mrb[0].mxu0
        %4131 = vdwg.mxu0
        %v4132 = vpack.c.bf16 %v4105, %v4102
        %v4133 = vpack.c.bf16 %v4113, %v4110
        %v4134 = vpack.c.bf16 %v4121, %v4118
        %v4135 = vpack.c.bf16 %v4129, %v4126
        %4140 = vrot.lane.b32.xlu0 %v2972, 64
        %v4141 = vpop.permute.xlu0 %4140
        %4142 = vrot.lane.b32.xlu0 %v2973, 64
        %v4143 = vpop.permute.xlu0 %4142
        %4144 = vrot.lane.b32.xlu0 %v2974, 64
        %v4145 = vpop.permute.xlu0 %4144
        %4146 = vrot.lane.b32.xlu0 %v2975, 64
        %v4147 = vpop.permute.xlu0 %4146
        %4152 = vrot.lane.b32.xlu0 %v3552, 64
        %v4153 = vpop.permute.xlu0 %4152
        %4154 = vrot.lane.b32.xlu0 %v3553, 64
        %v4155 = vpop.permute.xlu0 %4154
        %4156 = vrot.lane.b32.xlu0 %v3554, 64
        %v4157 = vpop.permute.xlu0 %4156
        %4158 = vrot.lane.b32.xlu0 %v3555, 64
        %v4159 = vpop.permute.xlu0 %4158
        %4164 = vrot.lane.b32.xlu0 %v4132, 64
        %v4165 = vpop.permute.xlu0 %4164
        %4166 = vrot.lane.b32.xlu0 %v4133, 64
        %v4167 = vpop.permute.xlu0 %4166
        %4168 = vrot.lane.b32.xlu0 %v4134, 64
        %v4169 = vpop.permute.xlu0 %4168
        %4170 = vrot.lane.b32.xlu0 %v4135, 64
        %v4171 = vpop.permute.xlu0 %4170
        %v4174 = vsel %vm2395, %v2662, %v4141
        %v4178 = vsel %vm2395, %v2663, %v4143
        %v4182 = vsel %vm2395, %v2664, %v4145
        %v4186 = vsel %vm2395, %v2665, %v4147
        %v4190 = vsel %vm2395, %v3242, %v4153
        %v4194 = vsel %vm2395, %v3243, %v4155
        %v4198 = vsel %vm2395, %v3244, %v4157
        %v4202 = vsel %vm2395, %v3245, %v4159
        %v4206 = vsel %vm2395, %v3822, %v4165
        %v4210 = vsel %vm2395, %v3823, %v4167
        %v4214 = vsel %vm2395, %v3824, %v4169
        %v4218 = vsel %vm2395, %v3825, %v4171
        %v4220 = vld [vmem:[#allocation7] sm:$0xff]
        %v4221 = vld [vmem:[#allocation7 + $0x8] sm:$0xf]
        %v4222 = vld [vmem:[#allocation7 + $0xc] sm:$0xff]
        %v4223 = vld [vmem:[#allocation7 + $0x14] sm:$0xf]
        %v4224 = vld [vmem:[#allocation7 + $0x18] sm:$0xff]
        %v4225 = vld [vmem:[#allocation7 + $0x20] sm:$0xf]
        %v4226 = vld [vmem:[#allocation7 + $0x24] sm:$0xff]
        %v4227 = vld [vmem:[#allocation7 + $0x2c] sm:$0xf]
        %v4228 = vld [vmem:[#allocation7 + $0x30] sm:$0xff]
        %v4229 = vld [vmem:[#allocation7 + $0x38] sm:$0xf]
        %v4230 = vld [vmem:[#allocation7 + $0x3c] sm:$0xff]
        %v4231 = vld [vmem:[#allocation7 + $0x44] sm:$0xf]
        %v4232 = vld [vmem:[#allocation7 + $0x48] sm:$0xff]
        %v4233 = vld [vmem:[#allocation7 + $0x50] sm:$0xf]
        %v4234 = vld [vmem:[#allocation7 + $0x54] sm:$0xff]
        %v4235 = vld [vmem:[#allocation7 + $0x5c] sm:$0xf]
        %v4236 = vld [vmem:[#allocation7 + $0x60] sm:$0xff]
        %v4237 = vld [vmem:[#allocation7 + $0x68] sm:$0xf]
        %v4238 = vld [vmem:[#allocation7 + $0x6c] sm:$0xff]
        %v4239 = vld [vmem:[#allocation7 + $0x74] sm:$0xf]
        %v4240 = vld [vmem:[#allocation7 + $0x78] sm:$0xff]
        %v4241 = vld [vmem:[#allocation7 + $0x80] sm:$0xf]
        %v4242 = vld [vmem:[#allocation7 + $0x84] sm:$0xff]
        %v4243 = vld [vmem:[#allocation7 + $0x8c] sm:$0xf]
        %v4244 = vld [vmem:[#allocation7 + $0x90] sm:$0xff]
        %v4245 = vld [vmem:[#allocation7 + $0x98] sm:$0xf]
        %v4246 = vld [vmem:[#allocation7 + $0x9c] sm:$0xff]
        %v4247 = vld [vmem:[#allocation7 + $0xa4] sm:$0xf]
        %v4248 = vld [vmem:[#allocation7 + $0xa8] sm:$0xff]
        %v4249 = vld [vmem:[#allocation7 + $0xb0] sm:$0xf]
        %v4250 = vld [vmem:[#allocation7 + $0xb4] sm:$0xff]
        %v4251 = vld [vmem:[#allocation7 + $0xbc] sm:$0xf]
        %v4252 = vld [vmem:[#allocation7 + $0xc0] sm:$0xff]
        %v4253 = vld [vmem:[#allocation7 + $0xc8] sm:$0xf]
        %v4254 = vld [vmem:[#allocation7 + $0xcc] sm:$0xff]
        %v4255 = vld [vmem:[#allocation7 + $0xd4] sm:$0xf]
        %v4256 = vld [vmem:[#allocation7 + $0xd8] sm:$0xff]
        %v4257 = vld [vmem:[#allocation7 + $0xe0] sm:$0xf]
        %v4258 = vld [vmem:[#allocation7 + $0xe4] sm:$0xff]
        %v4259 = vld [vmem:[#allocation7 + $0xec] sm:$0xf]
        %v4260 = vld [vmem:[#allocation7 + $0xf0] sm:$0xff]
        %v4261 = vld [vmem:[#allocation7 + $0xf8] sm:$0xf]
        %v4262 = vld [vmem:[#allocation7 + $0xfc] sm:$0xff]
        %v4263 = vld [vmem:[#allocation7 + $0x104] sm:$0xf]
        %v4264 = vld [vmem:[#allocation7 + $0x108] sm:$0xff]
        %v4265 = vld [vmem:[#allocation7 + $0x110] sm:$0xf]
        %v4266 = vld [vmem:[#allocation7 + $0x114] sm:$0xff]
        %v4267 = vld [vmem:[#allocation7 + $0x11c] sm:$0xf]
        %v4268 = vld [vmem:[#allocation7 + $0x120] sm:$0xff]
        %v4269 = vld [vmem:[#allocation7 + $0x128] sm:$0xf]
        %v4270 = vld [vmem:[#allocation7 + $0x12c] sm:$0xff]
        %v4271 = vld [vmem:[#allocation7 + $0x134] sm:$0xf]
        %v4272 = vld [vmem:[#allocation7 + $0x138] sm:$0xff]
        %v4273 = vld [vmem:[#allocation7 + $0x140] sm:$0xf]
        %v4274 = vld [vmem:[#allocation7 + $0x144] sm:$0xff]
        %v4275 = vld [vmem:[#allocation7 + $0x14c] sm:$0xf]
        %v4276 = vld [vmem:[#allocation7 + $0x150] sm:$0xff]
        %v4277 = vld [vmem:[#allocation7 + $0x158] sm:$0xf]
        %v4278 = vld [vmem:[#allocation7 + $0x15c] sm:$0xff]
        %v4279 = vld [vmem:[#allocation7 + $0x164] sm:$0xf]
        %v4280 = vld [vmem:[#allocation7 + $0x168] sm:$0xff]
        %v4281 = vld [vmem:[#allocation7 + $0x170] sm:$0xf]
        %v4282 = vld [vmem:[#allocation7 + $0x174] sm:$0xff]
        %v4283 = vld [vmem:[#allocation7 + $0x17c] sm:$0xf]
        %v4284 = vld [vmem:[#allocation7 + $0x180] sm:$0xff]
        %v4285 = vld [vmem:[#allocation7 + $0x188] sm:$0xf]
        %v4286 = vld [vmem:[#allocation7 + $0x18c] sm:$0xff]
        %v4287 = vld [vmem:[#allocation7 + $0x194] sm:$0xf]
        %v4288 = vld [vmem:[#allocation7 + $0x198] sm:$0xff]
        %v4289 = vld [vmem:[#allocation7 + $0x1a0] sm:$0xf]
        %v4290 = vld [vmem:[#allocation7 + $0x1a4] sm:$0xff]
        %v4291 = vld [vmem:[#allocation7 + $0x1ac] sm:$0xf]
        %v4292 = vld [vmem:[#allocation7 + $0x1b0] sm:$0xff]
        %v4293 = vld [vmem:[#allocation7 + $0x1b8] sm:$0xf]
        %v4294 = vld [vmem:[#allocation7 + $0x1bc] sm:$0xff]
        %v4295 = vld [vmem:[#allocation7 + $0x1c4] sm:$0xf]
        %v4296 = vld [vmem:[#allocation7 + $0x1c8] sm:$0xff]
        %v4297 = vld [vmem:[#allocation7 + $0x1d0] sm:$0xf]
        %v4298 = vld [vmem:[#allocation7 + $0x1d4] sm:$0xff]
        %v4299 = vld [vmem:[#allocation7 + $0x1dc] sm:$0xf]
        %v4300 = vld [vmem:[#allocation7 + $0x1e0] sm:$0xff]
        %v4301 = vld [vmem:[#allocation7 + $0x1e8] sm:$0xf]
        %v4302 = vld [vmem:[#allocation7 + $0x1ec] sm:$0xff]
        %v4303 = vld [vmem:[#allocation7 + $0x1f4] sm:$0xf]
        %v4304 = vld [vmem:[#allocation7 + $0x1f8] sm:$0xff]
        %v4305 = vld [vmem:[#allocation7 + $0x200] sm:$0xf]
        %v4306 = vld [vmem:[#allocation7 + $0x204] sm:$0xff]
        %v4307 = vld [vmem:[#allocation7 + $0x20c] sm:$0xf]
        %v4308 = vld [vmem:[#allocation7 + $0x210] sm:$0xff]
        %v4309 = vld [vmem:[#allocation7 + $0x218] sm:$0xf]
        %v4310 = vld [vmem:[#allocation7 + $0x21c] sm:$0xff]
        %v4311 = vld [vmem:[#allocation7 + $0x224] sm:$0xf]
        %v4312 = vld [vmem:[#allocation7 + $0x228] sm:$0xff]
        %v4313 = vld [vmem:[#allocation7 + $0x230] sm:$0xf]
        %v4314 = vld [vmem:[#allocation7 + $0x234] sm:$0xff]
        %v4315 = vld [vmem:[#allocation7 + $0x23c] sm:$0xf]
        %v4316 = vld [vmem:[%s3] sm:$0x7]
        %v4318 = vlaneseq
        %v4319 = vshrl.u32 %v4318, 7
        %v4320 = vsub.s32 0, %v4319
        %v4321 = vrot.slane %v4316, %v4320
        %v4322 = vlaneseq
        %v4323 = vshrl.u32 %v4322, 7
        %v4324 = vsub.s32 1, %v4323
        %v4325 = vrot.slane %v4316, %v4324
        %v4326 = vlaneseq
        %v4327 = vshrl.u32 %v4326, 7
        %v4328 = vsub.s32 2, %v4327
        %v4329 = vrot.slane %v4316, %v4328
        %v4429 = vunpack.c.l.b16 %v4220
        %v4430 = vunpack.c.h.b16 %v4220
        %v4431 = vunpack.c.l.b16 %v4221
        %v4432 = vunpack.c.l.b16 %v4222
        %v4433 = vunpack.c.h.b16 %v4222
        %v4434 = vunpack.c.l.b16 %v4223
        %v4435 = vunpack.c.l.b16 %v4224
        %v4436 = vunpack.c.h.b16 %v4224
        %v4437 = vunpack.c.l.b16 %v4225
        %v4438 = vunpack.c.l.b16 %v4226
        %v4439 = vunpack.c.h.b16 %v4226
        %v4440 = vunpack.c.l.b16 %v4227
        %v4441 = vunpack.c.l.b16 %v4228
        %v4442 = vunpack.c.h.b16 %v4228
        %v4443 = vunpack.c.l.b16 %v4229
        %v4444 = vunpack.c.l.b16 %v4230
        %v4445 = vunpack.c.h.b16 %v4230
        %v4446 = vunpack.c.l.b16 %v4231
        %v4447 = vunpack.c.l.b16 %v4232
        %v4448 = vunpack.c.h.b16 %v4232
        %v4449 = vunpack.c.l.b16 %v4233
        %v4450 = vunpack.c.l.b16 %v4234
        %v4451 = vunpack.c.h.b16 %v4234
        %v4452 = vunpack.c.l.b16 %v4235
        %v4453 = vunpack.c.l.b16 %v4236
        %v4454 = vunpack.c.h.b16 %v4236
        %v4455 = vunpack.c.l.b16 %v4237
        %v4456 = vunpack.c.l.b16 %v4238
        %v4457 = vunpack.c.h.b16 %v4238
        %v4458 = vunpack.c.l.b16 %v4239
        %v4459 = vunpack.c.l.b16 %v4240
        %v4460 = vunpack.c.h.b16 %v4240
        %v4461 = vunpack.c.l.b16 %v4241
        %v4462 = vunpack.c.l.b16 %v4242
        %v4463 = vunpack.c.h.b16 %v4242
        %v4464 = vunpack.c.l.b16 %v4243
        %v4465 = vunpack.c.l.b16 %v4244
        %v4466 = vunpack.c.h.b16 %v4244
        %v4467 = vunpack.c.l.b16 %v4245
        %v4468 = vunpack.c.l.b16 %v4246
        %v4469 = vunpack.c.h.b16 %v4246
        %v4470 = vunpack.c.l.b16 %v4247
        %v4471 = vunpack.c.l.b16 %v4248
        %v4472 = vunpack.c.h.b16 %v4248
        %v4473 = vunpack.c.l.b16 %v4249
        %v4474 = vunpack.c.l.b16 %v4250
        %v4475 = vunpack.c.h.b16 %v4250
        %v4476 = vunpack.c.l.b16 %v4251
        %v4477 = vunpack.c.l.b16 %v4252
        %v4478 = vunpack.c.h.b16 %v4252
        %v4479 = vunpack.c.l.b16 %v4253
        %v4480 = vunpack.c.l.b16 %v4254
        %v4481 = vunpack.c.h.b16 %v4254
        %v4482 = vunpack.c.l.b16 %v4255
        %v4483 = vunpack.c.l.b16 %v4256
        %v4484 = vunpack.c.h.b16 %v4256
        %v4485 = vunpack.c.l.b16 %v4257
        %v4486 = vunpack.c.l.b16 %v4258
        %v4487 = vunpack.c.h.b16 %v4258
        %v4488 = vunpack.c.l.b16 %v4259
        %v4489 = vunpack.c.l.b16 %v4260
        %v4490 = vunpack.c.h.b16 %v4260
        %v4491 = vunpack.c.l.b16 %v4261
        %v4492 = vunpack.c.l.b16 %v4262
        %v4493 = vunpack.c.h.b16 %v4262
        %v4494 = vunpack.c.l.b16 %v4263
        %v4495 = vunpack.c.l.b16 %v4264
        %v4496 = vunpack.c.h.b16 %v4264
        %v4497 = vunpack.c.l.b16 %v4265
        %v4498 = vunpack.c.l.b16 %v4266
        %v4499 = vunpack.c.h.b16 %v4266
        %v4500 = vunpack.c.l.b16 %v4267
        %v4501 = vunpack.c.l.b16 %v4268
        %v4502 = vunpack.c.h.b16 %v4268
        %v4503 = vunpack.c.l.b16 %v4269
        %v4504 = vunpack.c.l.b16 %v4270
        %v4505 = vunpack.c.h.b16 %v4270
        %v4506 = vunpack.c.l.b16 %v4271
        %v4507 = vunpack.c.l.b16 %v4272
        %v4508 = vunpack.c.h.b16 %v4272
        %v4509 = vunpack.c.l.b16 %v4273
        %v4510 = vunpack.c.l.b16 %v4274
        %v4511 = vunpack.c.h.b16 %v4274
        %v4512 = vunpack.c.l.b16 %v4275
        %v4513 = vunpack.c.l.b16 %v4276
        %v4514 = vunpack.c.h.b16 %v4276
        %v4515 = vunpack.c.l.b16 %v4277
        %v4516 = vunpack.c.l.b16 %v4278
        %v4517 = vunpack.c.h.b16 %v4278
        %v4518 = vunpack.c.l.b16 %v4279
        %v4519 = vunpack.c.l.b16 %v4280
        %v4520 = vunpack.c.h.b16 %v4280
        %v4521 = vunpack.c.l.b16 %v4281
        %v4522 = vunpack.c.l.b16 %v4282
        %v4523 = vunpack.c.h.b16 %v4282
        %v4524 = vunpack.c.l.b16 %v4283
        %v4525 = vunpack.c.l.b16 %v4284
        %v4526 = vunpack.c.h.b16 %v4284
        %v4527 = vunpack.c.l.b16 %v4285
        %v4528 = vunpack.c.l.b16 %v4286
        %v4529 = vunpack.c.h.b16 %v4286
        %v4530 = vunpack.c.l.b16 %v4287
        %v4531 = vunpack.c.l.b16 %v4288
        %v4532 = vunpack.c.h.b16 %v4288
        %v4533 = vunpack.c.l.b16 %v4289
        %v4534 = vunpack.c.l.b16 %v4290
        %v4535 = vunpack.c.h.b16 %v4290
        %v4536 = vunpack.c.l.b16 %v4291
        %v4537 = vunpack.c.l.b16 %v4292
        %v4538 = vunpack.c.h.b16 %v4292
        %v4539 = vunpack.c.l.b16 %v4293
        %v4540 = vunpack.c.l.b16 %v4294
        %v4541 = vunpack.c.h.b16 %v4294
        %v4542 = vunpack.c.l.b16 %v4295
        %v4543 = vunpack.c.l.b16 %v4296
        %v4544 = vunpack.c.h.b16 %v4296
        %v4545 = vunpack.c.l.b16 %v4297
        %v4546 = vunpack.c.l.b16 %v4298
        %v4547 = vunpack.c.h.b16 %v4298
        %v4548 = vunpack.c.l.b16 %v4299
        %v4549 = vunpack.c.l.b16 %v4300
        %v4550 = vunpack.c.h.b16 %v4300
        %v4551 = vunpack.c.l.b16 %v4301
        %v4552 = vunpack.c.l.b16 %v4302
        %v4553 = vunpack.c.h.b16 %v4302
        %v4554 = vunpack.c.l.b16 %v4303
        %v4555 = vunpack.c.l.b16 %v4304
        %v4556 = vunpack.c.h.b16 %v4304
        %v4557 = vunpack.c.l.b16 %v4305
        %v4558 = vunpack.c.l.b16 %v4306
        %v4559 = vunpack.c.h.b16 %v4306
        %v4560 = vunpack.c.l.b16 %v4307
        %v4561 = vunpack.c.l.b16 %v4308
        %v4562 = vunpack.c.h.b16 %v4308
        %v4563 = vunpack.c.l.b16 %v4309
        %v4564 = vunpack.c.l.b16 %v4310
        %v4565 = vunpack.c.h.b16 %v4310
        %v4566 = vunpack.c.l.b16 %v4311
        %v4567 = vunpack.c.l.b16 %v4312
        %v4568 = vunpack.c.h.b16 %v4312
        %v4569 = vunpack.c.l.b16 %v4313
        %v4570 = vunpack.c.l.b16 %v4314
        %v4571 = vunpack.c.h.b16 %v4314
        %v4572 = vunpack.c.l.b16 %v4315
        %v4573 = vpack.c.b16 %v4432, %v4429
        %v4574 = vpack.c.b16 %v4433, %v4430
        %v4575 = vpack.c.b16 %v4434, %v4431
        %v4576 = vpack.c.b16 %v4438, %v4435
        %v4577 = vpack.c.b16 %v4439, %v4436
        %v4578 = vpack.c.b16 %v4440, %v4437
        %v4579 = vpack.c.b16 %v4444, %v4441
        %v4580 = vpack.c.b16 %v4445, %v4442
        %v4581 = vpack.c.b16 %v4446, %v4443
        %v4582 = vpack.c.b16 %v4450, %v4447
        %v4583 = vpack.c.b16 %v4451, %v4448
        %v4584 = vpack.c.b16 %v4452, %v4449
        %v4585 = vpack.c.b16 %v4456, %v4453
        %v4586 = vpack.c.b16 %v4457, %v4454
        %v4587 = vpack.c.b16 %v4458, %v4455
        %v4588 = vpack.c.b16 %v4462, %v4459
        %v4589 = vpack.c.b16 %v4463, %v4460
        %v4590 = vpack.c.b16 %v4464, %v4461
        %v4591 = vpack.c.b16 %v4468, %v4465
        %v4592 = vpack.c.b16 %v4469, %v4466
        %v4593 = vpack.c.b16 %v4470, %v4467
        %v4594 = vpack.c.b16 %v4474, %v4471
        %v4595 = vpack.c.b16 %v4475, %v4472
        %v4596 = vpack.c.b16 %v4476, %v4473
        %v4597 = vpack.c.b16 %v4480, %v4477
        %v4598 = vpack.c.b16 %v4481, %v4478
        %v4599 = vpack.c.b16 %v4482, %v4479
        %v4600 = vpack.c.b16 %v4486, %v4483
        %v4601 = vpack.c.b16 %v4487, %v4484
        %v4602 = vpack.c.b16 %v4488, %v4485
        %v4603 = vpack.c.b16 %v4492, %v4489
        %v4604 = vpack.c.b16 %v4493, %v4490
        %v4605 = vpack.c.b16 %v4494, %v4491
        %v4606 = vpack.c.b16 %v4498, %v4495
        %v4607 = vpack.c.b16 %v4499, %v4496
        %v4608 = vpack.c.b16 %v4500, %v4497
        %v4609 = vpack.c.b16 %v4504, %v4501
        %v4610 = vpack.c.b16 %v4505, %v4502
        %v4611 = vpack.c.b16 %v4506, %v4503
        %v4612 = vpack.c.b16 %v4510, %v4507
        %v4613 = vpack.c.b16 %v4511, %v4508
        %v4614 = vpack.c.b16 %v4512, %v4509
        %v4615 = vpack.c.b16 %v4516, %v4513
        %v4616 = vpack.c.b16 %v4517, %v4514
        %v4617 = vpack.c.b16 %v4518, %v4515
        %v4618 = vpack.c.b16 %v4522, %v4519
        %v4619 = vpack.c.b16 %v4523, %v4520
        %v4620 = vpack.c.b16 %v4524, %v4521
        %v4621 = vpack.c.b16 %v4528, %v4525
        %v4622 = vpack.c.b16 %v4529, %v4526
        %v4623 = vpack.c.b16 %v4530, %v4527
        %v4624 = vpack.c.b16 %v4534, %v4531
        %v4625 = vpack.c.b16 %v4535, %v4532
        %v4626 = vpack.c.b16 %v4536, %v4533
        %v4627 = vpack.c.b16 %v4540, %v4537
        %v4628 = vpack.c.b16 %v4541, %v4538
        %v4629 = vpack.c.b16 %v4542, %v4539
        %v4630 = vpack.c.b16 %v4546, %v4543
        %v4631 = vpack.c.b16 %v4547, %v4544
        %v4632 = vpack.c.b16 %v4548, %v4545
        %v4633 = vpack.c.b16 %v4552, %v4549
        %v4634 = vpack.c.b16 %v4553, %v4550
        %v4635 = vpack.c.b16 %v4554, %v4551
        %v4636 = vpack.c.b16 %v4558, %v4555
        %v4637 = vpack.c.b16 %v4559, %v4556
        %v4638 = vpack.c.b16 %v4560, %v4557
        %v4639 = vpack.c.b16 %v4564, %v4561
        %v4640 = vpack.c.b16 %v4565, %v4562
        %v4641 = vpack.c.b16 %v4566, %v4563
        %v4642 = vpack.c.b16 %v4570, %v4567
        %v4643 = vpack.c.b16 %v4571, %v4568
        %v4644 = vpack.c.b16 %v4572, %v4569
        %4717 = vmatprep.subr.bf16.mxu0 %v4574
        %4718 = vmatpush1.bf16.msra.mxu0 %v4573
        %4719 = vmatprep.subr.bf16.mxu0 %v4577
        %4720 = vmatpush1.bf16.msra.mxu0 %v4576
        %4721 = vmatprep.subr.bf16.mxu0 %v4580
        %4722 = vmatpush1.bf16.msra.mxu0 %v4579
        %4723 = vmatprep.subr.bf16.mxu0 %v4583
        %4724 = vmatpush1.bf16.msra.mxu0 %v4582
        %4725 = vmatprep.subr.bf16.mxu0 %v4586
        %4726 = vmatpush1.bf16.msra.mxu0 %v4585
        %4727 = vmatprep.subr.bf16.mxu0 %v4589
        %4728 = vmatpush1.bf16.msra.mxu0 %v4588
        %4729 = vmatprep.subr.bf16.mxu0 %v4592
        %4730 = vmatpush1.bf16.msra.mxu0 %v4591
        %4731 = vmatprep.subr.bf16.mxu0 %v4595
        %4732 = vmatpush1.bf16.msra.mxu0 %v4594
        %4733 = vmatprep.subr.bf16.mxu0 %v4598
        %4734 = vmatpush1.bf16.msra.mxu0 %v4597
        %4735 = vmatprep.subr.bf16.mxu0 %v4601
        %4736 = vmatpush1.bf16.msra.mxu0 %v4600
        %4737 = vmatprep.subr.bf16.mxu0 %v4604
        %4738 = vmatpush1.bf16.msra.mxu0 %v4603
        %4739 = vmatprep.subr.bf16.mxu0 %v4607
        %4740 = vmatpush1.bf16.msra.mxu0 %v4606
        %4741 = vmatprep.subr.bf16.mxu0 %v4610
        %4742 = vmatpush1.bf16.msra.mxu0 %v4609
        %4743 = vmatprep.subr.bf16.mxu0 %v4613
        %4744 = vmatpush1.bf16.msra.mxu0 %v4612
        %4745 = vmatprep.subr.bf16.mxu0 %v4616
        %4746 = vmatpush1.bf16.msra.mxu0 %v4615
        %4747 = vmatprep.subr.bf16.mxu0 %v4619
        %4748 = vmatpush1.bf16.msra.mxu0 %v4618
        %4749 = vmatprep.mubr.bf16.mxu0 %v4190
        %4750 = vmatmul.mubr.bf16.gmra.mrb[0].mxu0 %v4174
        %v4751 = vpop.f32.mrb[0].mxu0
        %v4752 = vadd.f32 %v4321, %v4751
        %v4753 = vpop.f32.mrb[0].mxu0
        %v4754 = vadd.f32 %v4325, %v4753
        %v4755 = vpop.f32.mrb[0].mxu0
        %v4756 = vadd.f32 %v4321, %v4755
        %v4757 = vpop.f32.mrb[0].mxu0
        %v4758 = vadd.f32 %v4325, %v4757
        %4759 = vmatprep.mubr.bf16.mxu0 %v4194
        %4760 = vmatmul.mubr.bf16.gmra.mrb[0].mxu0 %v4178
        %v4761 = vpop.f32.mrb[0].mxu0
        %v4762 = vadd.f32 %v4321, %v4761
        %v4763 = vpop.f32.mrb[0].mxu0
        %v4764 = vadd.f32 %v4325, %v4763
        %v4765 = vpop.f32.mrb[0].mxu0
        %v4766 = vadd.f32 %v4321, %v4765
        %v4767 = vpop.f32.mrb[0].mxu0
        %v4768 = vadd.f32 %v4325, %v4767
        %4769 = vmatprep.mubr.bf16.mxu0 %v4198
        %4770 = vmatmul.mubr.bf16.gmra.mrb[0].mxu0 %v4182
        %v4771 = vpop.f32.mrb[0].mxu0
        %v4772 = vadd.f32 %v4321, %v4771
        %v4773 = vpop.f32.mrb[0].mxu0
        %v4774 = vadd.f32 %v4325, %v4773
        %v4775 = vpop.f32.mrb[0].mxu0
        %v4776 = vadd.f32 %v4321, %v4775
        %v4777 = vpop.f32.mrb[0].mxu0
        %v4778 = vadd.f32 %v4325, %v4777
        %4779 = vmatprep.mubr.bf16.mxu0 %v4202
        %4780 = vmatmul.mubr.bf16.gmra.mrb[0].mxu0 %v4186
        %v4781 = vpop.f32.mrb[0].mxu0
        %v4782 = vadd.f32 %v4321, %v4781
        %v4783 = vpop.f32.mrb[0].mxu0
        %v4784 = vadd.f32 %v4325, %v4783
        %v4785 = vpop.f32.mrb[0].mxu0
        %v4786 = vadd.f32 %v4321, %v4785
        %v4787 = vpop.f32.mrb[0].mxu0
        %v4788 = vadd.f32 %v4325, %v4787
        %4789 = vdwg.mxu0
        %4790 = vmatprep.subr.bf16.mxu0 %v4622
        %4791 = vmatpush1.bf16.msra.mxu0 %v4621
        %4792 = vmatprep.subr.bf16.mxu0 %v4625
        %4793 = vmatpush1.bf16.msra.mxu0 %v4624
        %4794 = vmatprep.subr.bf16.mxu0 %v4628
        %4795 = vmatpush1.bf16.msra.mxu0 %v4627
        %4796 = vmatprep.subr.bf16.mxu0 %v4631
        %4797 = vmatpush1.bf16.msra.mxu0 %v4630
        %4798 = vmatprep.subr.bf16.mxu0 %v4634
        %4799 = vmatpush1.bf16.msra.mxu0 %v4633
        %4800 = vmatprep.subr.bf16.mxu0 %v4637
        %4801 = vmatpush1.bf16.msra.mxu0 %v4636
        %4802 = vmatprep.subr.bf16.mxu0 %v4640
        %4803 = vmatpush1.bf16.msra.mxu0 %v4639
        %4804 = vmatprep.subr.bf16.mxu0 %v4643
        %4805 = vmatpush1.bf16.msra.mxu0 %v4642
        %4806 = vmatprep.subr.bf16.mxu0 0
        %4807 = vmatpush1.bf16.msra.mxu0 0
        %4808 = vmatprep.subr.bf16.mxu0 0
        %4809 = vmatpush1.bf16.msra.mxu0 0
        %4810 = vmatprep.subr.bf16.mxu0 0
        %4811 = vmatpush1.bf16.msra.mxu0 0
        %4812 = vmatprep.subr.bf16.mxu0 0
        %4813 = vmatpush1.bf16.msra.mxu0 0
        %4814 = vmatprep.subr.bf16.mxu0 0
        %4815 = vmatpush1.bf16.msra.mxu0 0
        %4816 = vmatprep.subr.bf16.mxu0 0
        %4817 = vmatpush1.bf16.msra.mxu0 0
        %4818 = vmatprep.subr.bf16.mxu0 0
        %4819 = vmatpush1.bf16.msra.mxu0 0
        %4820 = vmatprep.subr.bf16.mxu0 0
        %4821 = vmatpush1.bf16.msra.mxu0 0
        %4822 = vmatprep.mubr.bf16.mxu0 0
        %4823 = vmatmul.mubr.bf16.gmra.mrb[0].mxu0 %v4206
        %v4824 = vpop.f32.mrb[0].mxu0
        %v4825 = vadd.f32 %v4752, %v4824
        %v4826 = vpop.f32.mrb[0].mxu0
        %v4827 = vadd.f32 %v4754, %v4826
        %v4828 = vpop.f32.mrb[0].mxu0
        %v4829 = vadd.f32 %v4756, %v4828
        %v4830 = vpop.f32.mrb[0].mxu0
        %v4831 = vadd.f32 %v4758, %v4830
        %4832 = vmatprep.mubr.bf16.mxu0 0
        %4833 = vmatmul.mubr.bf16.gmra.mrb[0].mxu0 %v4210
        %v4834 = vpop.f32.mrb[0].mxu0
        %v4835 = vadd.f32 %v4762, %v4834
        %v4836 = vpop.f32.mrb[0].mxu0
        %v4837 = vadd.f32 %v4764, %v4836
        %v4838 = vpop.f32.mrb[0].mxu0
        %v4839 = vadd.f32 %v4766, %v4838
        %v4840 = vpop.f32.mrb[0].mxu0
        %v4841 = vadd.f32 %v4768, %v4840
        %4842 = vmatprep.mubr.bf16.mxu0 0
        %4843 = vmatmul.mubr.bf16.gmra.mrb[0].mxu0 %v4214
        %v4844 = vpop.f32.mrb[0].mxu0
        %v4845 = vadd.f32 %v4772, %v4844
        %v4846 = vpop.f32.mrb[0].mxu0
        %v4847 = vadd.f32 %v4774, %v4846
        %v4848 = vpop.f32.mrb[0].mxu0
        %v4849 = vadd.f32 %v4776, %v4848
        %v4850 = vpop.f32.mrb[0].mxu0
        %v4851 = vadd.f32 %v4778, %v4850
        %4852 = vmatprep.mubr.bf16.mxu0 0
        %4853 = vmatmul.mubr.bf16.gmra.mrb[0].mxu0 %v4218
        %v4854 = vpop.f32.mrb[0].mxu0
        %v4855 = vadd.f32 %v4782, %v4854
        %v4856 = vpop.f32.mrb[0].mxu0
        %v4857 = vadd.f32 %v4784, %v4856
        %v4858 = vpop.f32.mrb[0].mxu0
        %v4859 = vadd.f32 %v4786, %v4858
        %v4860 = vpop.f32.mrb[0].mxu0
        %v4861 = vadd.f32 %v4788, %v4860
        %4862 = vdwg.mxu0
        %4863 = vmatprep.subr.bf16.mxu0 0
        %4864 = vmatpush1.bf16.msra.mxu0 %v4575
        %4865 = vmatprep.subr.bf16.mxu0 0
        %4866 = vmatpush1.bf16.msra.mxu0 %v4578
        %4867 = vmatprep.subr.bf16.mxu0 0
        %4868 = vmatpush1.bf16.msra.mxu0 %v4581
        %4869 = vmatprep.subr.bf16.mxu0 0
        %4870 = vmatpush1.bf16.msra.mxu0 %v4584
        %4871 = vmatprep.subr.bf16.mxu0 0
        %4872 = vmatpush1.bf16.msra.mxu0 %v4587
        %4873 = vmatprep.subr.bf16.mxu0 0
        %4874 = vmatpush1.bf16.msra.mxu0 %v4590
        %4875 = vmatprep.subr.bf16.mxu0 0
        %4876 = vmatpush1.bf16.msra.mxu0 %v4593
        %4877 = vmatprep.subr.bf16.mxu0 0
        %4878 = vmatpush1.bf16.msra.mxu0 %v4596
        %4879 = vmatprep.subr.bf16.mxu0 0
        %4880 = vmatpush1.bf16.msra.mxu0 %v4599
        %4881 = vmatprep.subr.bf16.mxu0 0
        %4882 = vmatpush1.bf16.msra.mxu0 %v4602
        %4883 = vmatprep.subr.bf16.mxu0 0
        %4884 = vmatpush1.bf16.msra.mxu0 %v4605
        %4885 = vmatprep.subr.bf16.mxu0 0
        %4886 = vmatpush1.bf16.msra.mxu0 %v4608
        %4887 = vmatprep.subr.bf16.mxu0 0
        %4888 = vmatpush1.bf16.msra.mxu0 %v4611
        %4889 = vmatprep.subr.bf16.mxu0 0
        %4890 = vmatpush1.bf16.msra.mxu0 %v4614
        %4891 = vmatprep.subr.bf16.mxu0 0
        %4892 = vmatpush1.bf16.msra.mxu0 %v4617
        %4893 = vmatprep.subr.bf16.mxu0 0
        %4894 = vmatpush1.bf16.msra.mxu0 %v4620
        %4895 = vmatprep.mubr.bf16.mxu0 %v4190
        %4896 = vmatmul.mubr.bf16.gmra.mrb[0].mxu0 %v4174
        %v4897 = vpop.f32.mrb[0].mxu0
        %v4898 = vadd.f32 %v4329, %v4897
        %v4899 = vpop.f32.mrb[0].mxu0
        %v4900 = vpop.f32.mrb[0].mxu0
        %v4901 = vadd.f32 %v4329, %v4900
        %v4902 = vpop.f32.mrb[0].mxu0
        %4903 = vmatprep.mubr.bf16.mxu0 %v4194
        %4904 = vmatmul.mubr.bf16.gmra.mrb[0].mxu0 %v4178
        %v4905 = vpop.f32.mrb[0].mxu0
        %v4906 = vadd.f32 %v4329, %v4905
        %v4907 = vpop.f32.mrb[0].mxu0
        %v4908 = vpop.f32.mrb[0].mxu0
        %v4909 = vadd.f32 %v4329, %v4908
        %v4910 = vpop.f32.mrb[0].mxu0
        %4911 = vmatprep.mubr.bf16.mxu0 %v4198
        %4912 = vmatmul.mubr.bf16.gmra.mrb[0].mxu0 %v4182
        %v4913 = vpop.f32.mrb[0].mxu0
        %v4914 = vadd.f32 %v4329, %v4913
        %v4915 = vpop.f32.mrb[0].mxu0
        %v4916 = vpop.f32.mrb[0].mxu0
        %v4917 = vadd.f32 %v4329, %v4916
        %v4918 = vpop.f32.mrb[0].mxu0
        %4919 = vmatprep.mubr.bf16.mxu0 %v4202
        %4920 = vmatmul.mubr.bf16.gmra.mrb[0].mxu0 %v4186
        %v4921 = vpop.f32.mrb[0].mxu0
        %v4922 = vadd.f32 %v4329, %v4921
        %v4923 = vpop.f32.mrb[0].mxu0
        %v4924 = vpop.f32.mrb[0].mxu0
        %v4925 = vadd.f32 %v4329, %v4924
        %v4926 = vpop.f32.mrb[0].mxu0
        %4927 = vdwg.mxu0
        %4928 = vmatprep.subr.bf16.mxu0 0
        %4929 = vmatpush1.bf16.msra.mxu0 %v4623
        %4930 = vmatprep.subr.bf16.mxu0 0
        %4931 = vmatpush1.bf16.msra.mxu0 %v4626
        %4932 = vmatprep.subr.bf16.mxu0 0
        %4933 = vmatpush1.bf16.msra.mxu0 %v4629
        %4934 = vmatprep.subr.bf16.mxu0 0
        %4935 = vmatpush1.bf16.msra.mxu0 %v4632
        %4936 = vmatprep.subr.bf16.mxu0 0
        %4937 = vmatpush1.bf16.msra.mxu0 %v4635
        %4938 = vmatprep.subr.bf16.mxu0 0
        %4939 = vmatpush1.bf16.msra.mxu0 %v4638
        %4940 = vmatprep.subr.bf16.mxu0 0
        %4941 = vmatpush1.bf16.msra.mxu0 %v4641
        %4942 = vmatprep.subr.bf16.mxu0 0
        %4943 = vmatpush1.bf16.msra.mxu0 %v4644
        %4944 = vmatprep.subr.bf16.mxu0 0
        %4945 = vmatpush1.bf16.msra.mxu0 0
        %4946 = vmatprep.subr.bf16.mxu0 0
        %4947 = vmatpush1.bf16.msra.mxu0 0
        %4948 = vmatprep.subr.bf16.mxu0 0
        %4949 = vmatpush1.bf16.msra.mxu0 0
        %4950 = vmatprep.subr.bf16.mxu0 0
        %4951 = vmatpush1.bf16.msra.mxu0 0
        %4952 = vmatprep.subr.bf16.mxu0 0
        %4953 = vmatpush1.bf16.msra.mxu0 0
        %4954 = vmatprep.subr.bf16.mxu0 0
        %4955 = vmatpush1.bf16.msra.mxu0 0
        %4956 = vmatprep.subr.bf16.mxu0 0
        %4957 = vmatpush1.bf16.msra.mxu0 0
        %4958 = vmatprep.subr.bf16.mxu0 0
        %4959 = vmatpush1.bf16.msra.mxu0 0
        %4960 = vmatprep.mubr.bf16.mxu0 0
        %4961 = vmatmul.mubr.bf16.gmra.mrb[0].mxu0 %v4206
        %v4962 = vpop.f32.mrb[0].mxu0
        %v4963 = vadd.f32 %v4898, %v4962
        %v4964 = vpop.f32.mrb[0].mxu0
        %v4965 = vpop.f32.mrb[0].mxu0
        %v4966 = vadd.f32 %v4901, %v4965
        %v4967 = vpop.f32.mrb[0].mxu0
        %4968 = vmatprep.mubr.bf16.mxu0 0
        %4969 = vmatmul.mubr.bf16.gmra.mrb[0].mxu0 %v4210
        %v4970 = vpop.f32.mrb[0].mxu0
        %v4971 = vadd.f32 %v4906, %v4970
        %v4972 = vpop.f32.mrb[0].mxu0
        %v4973 = vpop.f32.mrb[0].mxu0
        %v4974 = vadd.f32 %v4909, %v4973
        %v4975 = vpop.f32.mrb[0].mxu0
        %4976 = vmatprep.mubr.bf16.mxu0 0
        %4977 = vmatmul.mubr.bf16.gmra.mrb[0].mxu0 %v4214
        %v4978 = vpop.f32.mrb[0].mxu0
        %v4979 = vadd.f32 %v4914, %v4978
        %v4980 = vpop.f32.mrb[0].mxu0
        %v4981 = vpop.f32.mrb[0].mxu0
        %v4982 = vadd.f32 %v4917, %v4981
        %v4983 = vpop.f32.mrb[0].mxu0
        %4984 = vmatprep.mubr.bf16.mxu0 0
        %4985 = vmatmul.mubr.bf16.gmra.mrb[0].mxu0 %v4218
        %v4986 = vpop.f32.mrb[0].mxu0
        %v4987 = vadd.f32 %v4922, %v4986
        %v4988 = vpop.f32.mrb[0].mxu0
        %v4989 = vpop.f32.mrb[0].mxu0
        %v4990 = vadd.f32 %v4925, %v4989
        %v4991 = vpop.f32.mrb[0].mxu0
        %4992 = vdwg.mxu0
        %4993 = vst [vmem:[%s244] sm:$0xff] %v4825
        %4994 = vst [vmem:[%s244 + $0x8] sm:$0xff] %v4827
        %4995 = vst [vmem:[%s244 + $0x10] sm:$0xff] %v4963
        %4996 = vst [vmem:[%s244 + $0x18] sm:$0xff] %v4829
        %4997 = vst [vmem:[%s244 + $0x20] sm:$0xff] %v4831
        %4998 = vst [vmem:[%s244 + $0x28] sm:$0xff] %v4966
        %4999 = vst [vmem:[%s244 + $0x30] sm:$0xff] %v4835
        %5000 = vst [vmem:[%s244 + $0x38] sm:$0xff] %v4837
        %5001 = vst [vmem:[%s244 + $0x40] sm:$0xff] %v4971
        %5002 = vst [vmem:[%s244 + $0x48] sm:$0xff] %v4839
        %5003 = vst [vmem:[%s244 + $0x50] sm:$0xff] %v4841
        %5004 = vst [vmem:[%s244 + $0x58] sm:$0xff] %v4974
        %5005 = vst [vmem:[%s244 + $0x60] sm:$0xff] %v4845
        %5006 = vst [vmem:[%s244 + $0x68] sm:$0xff] %v4847
        %5007 = vst [vmem:[%s244 + $0x70] sm:$0xff] %v4979
        %5008 = vst [vmem:[%s244 + $0x78] sm:$0xff] %v4849
        %5009 = vst [vmem:[%s244 + $0x80] sm:$0xff] %v4851
        %5010 = vst [vmem:[%s244 + $0x88] sm:$0xff] %v4982
        %5011 = vst [vmem:[%s244 + $0x90] sm:$0xff] %v4855
        %5012 = vst [vmem:[%s244 + $0x98] sm:$0xff] %v4857
        %5013 = vst [vmem:[%s244 + $0xa0] sm:$0xff] %v4987
        %5014 = vst [vmem:[%s244 + $0xa8] sm:$0xff] %v4859
        %5015 = vst [vmem:[%s244 + $0xb0] sm:$0xff] %v4861
        %5016 = vst [vmem:[%s244 + $0xb8] sm:$0xff] %v4990
        %s5017 = sand.u32 %s119, 1
        %s5018 = scalar_lea.sflag [#allocation4], %s5017
        %s5019 = sand.u32 %s119, 1
        %s5020 = smul.addr %s5019, 192
        %s5021 = scalar_lea.vmem [#allocation8], %s5020
        // Predicated region
        $region49: #{tpu_custom_call.1} parent=35 // pred_check
          %p5022 = pneg %p129
        $region50: #{tpu_custom_call.1} parent=35 // pred_check_branch
          %5024 = sbr.rel (%p5022) target = $region52
        $region51: #{tpu_custom_call.1} parent=35 // pred_region
          %s5026 = ssub.s32 3072, 3072
          %5027 = vsyncadd %s5018, %s5026
          %s5028 = smul.addr %s22, 24
          %s5029 = smul.addr %s5028, 128
          %s5030 = scalar_lea.hbm %s4, %s5029
          %s5031 = sshll.u32 %s5021, 4
          %s5032 = int_to_ptr.vmem [resolvable:$true] %s5031
          %5037 = dma.vmem_to_hbm [thread:$0]  %s5032, 3072, %s5030, %s5018, 384, 384, 24
        $region52: #{tpu_custom_call.1} parent=35 // pred_fallthru
          _
      $region36: #{tpu_custom_call.1} parent=5 // pred_fallthru
        _
      %p5038 = scmp.le.s32.totalorder 2, %s17
      // Predicated region
      $region53: #{tpu_custom_call.1} parent=5 // pred_check
        %p5039 = pneg %p5038
      $region54: #{tpu_custom_call.1} parent=5 // pred_check_branch
        %5041 = sbr.rel (%p5039) target = $region56
      $region55: #{tpu_custom_call.1} parent=5 // pred_region
        %s5042 = ssub.s32 %s17, 2
        // Predicated region
        $region57: #{tpu_custom_call.1} parent=55 // pred_check
          %p5043 = pneg %p135
        $region58: #{tpu_custom_call.1} parent=55 // pred_check_branch
          %5045 = sbr.rel (%p5043) target = $region60
        $region59: #{tpu_custom_call.1} parent=55 // pred_region
          %s5046 = sand.u32 %s120, 1
          %s5047 = scalar_lea.sflag [#allocation4], %s5046
          %s5048 = sand.u32 %s120, 1
          %s5049 = smul.addr %s5048, 192
          %s5050 = scalar_lea.vmem [#allocation8], %s5049
          %5051 = dma.done %s5047, 3072
        $region60: #{tpu_custom_call.1} parent=55 // pred_fallthru
          _
      $region56: #{tpu_custom_call.1} parent=5 // pred_fallthru
        _
    $region6: #{tpu_custom_call.1} parent=1 // loop_footer
      %s21 = sadd.s32 1, %s17
    $region7: #{tpu_custom_call.1} parent=1 // loop_footer_branch
      %16 = sbr.rel target = $region3
    $region8: #{tpu_custom_call.1} parent=1 // loop_exit
      _
    %5052 = vsyncpa [#allocation3], 1
    %s5053 = scalar_lea.sflag [#allocation3], 1
    %5054 = vsyncpa %s5053, 1
    %5055 = vsyncpa [#allocation6], 1
    %5056 = vsyncpa [#allocation4], 1
    %s5057 = scalar_lea.sflag [#allocation4], 1
    %5058 = vsyncpa %s5057, 1

</llo_original>
